<compile_context>
chip_gen: v6e
topology: v6e:2x2x1
jax: 0.10.0
libtpu: 0.0.40
codegen_flags: <defaults>
</compile_context>

<pallas_src>
import functools

import jax
import jax.numpy as jnp
from jax.experimental import pallas as pl
from jax.experimental.pallas import tpu as pltpu


# Safe on every generation (v5e/v6e: 128 MiB physical, v7x: 64 MiB physical).
VMEM_LIMIT_BYTES = 64 * 1024 * 1024


# --------------------------------------------------------------------------
# Fused multi-layer LSTM kernel: one batch tile per grid step, all L layers
# and all T timesteps VMEM-resident.  PyTorch gate order (i, f, g, o) is
# permuted at packing time to (i, f, o | g).
# --------------------------------------------------------------------------
def _make_fused_lstm_kernel(T, TB, H, L):
    # Manual unroll factor for the recurrence body (review: unroll 4..8).
    U = max(u for u in (8, 4, 2, 1) if T % u == 0)

    def kernel(*refs):
        emb_ref = refs[0]                          # [T*TB, E] bf16, rows (t, b)
        layer_refs = refs[1:1 + 3 * L]             # per layer: w_ih, w_hh, bias
        y_ref, h_ref, c_ref, xproj_sc, act_sc = refs[1 + 3 * L:]

        x2d = emb_ref[...]                         # [T*TB, In] bf16
        for l in range(L):
            w_ih = layer_refs[3 * l][...]          # [In, 4H] bf16
            w_hh = layer_refs[3 * l + 1][...]      # [H, 4H]  bf16
            bias = layer_refs[3 * l + 2][...]      # [1, 4H]  f32
            # Hoisted broadcast (JAX does not CSE broadcast_in_dim in loops).
            bias_b = jnp.broadcast_to(bias, (TB, 4 * H))

            # Hoisted input projection: ONE [T*TB, In] @ [In, 4H] MXU matmul
            # over all timesteps of the tile; stored bf16 (halves VMEM), bias
            # and gate math stay f32 at the point of use.
            xproj_sc[...] = jnp.dot(
                x2d, w_ih, preferred_element_type=jnp.float32
            ).astype(jnp.bfloat16)

            last_layer = (l == L - 1)

            def step_block(s, carry, w_hh=w_hh, bias_b=bias_b,
                           last_layer=last_layer):
                h, c = carry
                for u in range(U):
                    t = s * U + u
                    row = pl.multiple_of(t * TB, TB)
                    gates = (xproj_sc[pl.ds(row, TB), :].astype(jnp.float32)
                             + bias_b
                             + jnp.dot(h.astype(jnp.bfloat16), w_hh,
                                       preferred_element_type=jnp.float32))
                    # Gates pre-permuted to (i, f, o | g): one sigmoid over a
                    # contiguous [TB, 3H] region, one tanh over [TB, H].
                    sig = jax.nn.sigmoid(gates[:, :3 * H])
                    g_g = jnp.tanh(gates[:, 3 * H:])
                    i_g = sig[:, 0 * H:1 * H]
                    f_g = sig[:, 1 * H:2 * H]
                    o_g = sig[:, 2 * H:3 * H]
                    c = f_g * c + i_g * g_g
                    h = o_g * jnp.tanh(c)
                    if last_layer:
                        y_ref[pl.ds(row, TB), :] = h.astype(y_ref.dtype)
                    else:
                        act_sc[pl.ds(row, TB), :] = h.astype(act_sc.dtype)
                return h, c

            h0 = jnp.zeros((TB, H), jnp.float32)
            c0 = jnp.zeros((TB, H), jnp.float32)
            # Sequential recurrence: only the small [TB,H]@[H,4H] matmul plus
            # VPU/EUP gate math per step; h/c carried in vregs, not VMEM.
            h, c = jax.lax.fori_loop(0, T // U, step_block, (h0, c0))

            h_ref[l] = h
            c_ref[l] = c
            if not last_layer:
                x2d = act_sc[...]                  # next layer's input (bf16)

    return kernel


def fused_lstm(emb_tiles, layers, T, TB, H):
    """emb_tiles: [nb, T*TB, E] bf16 (rows within a tile ordered (t, b_local)).
    layers: list of dicts with 'w_ih_t' [In,4H] bf16, 'w_hh_t' [H,4H] bf16,
    'bias' [1,4H] f32 (gate columns already permuted to (i,f,o,g)).
    Returns (y_tiles [nb, T*TB, H] bf16, hidden [L,B,H] f32, cell [L,B,H] f32).
    """
    nb, _, E = emb_tiles.shape
    L = len(layers)
    B = nb * TB

    args = [emb_tiles]
    in_specs = [pl.BlockSpec((None, T * TB, E), lambda b: (b, 0, 0))]
    for layer in layers:
        args += [layer["w_ih_t"], layer["w_hh_t"], layer["bias"]]
        # Grid-invariant weights (constant index maps) are not re-DMA'd across
        # grid steps.  NOTE: for very large production weights, single-buffer
        # them (pipeline_mode=pl.Buffered(1)) to halve their VMEM footprint.
        in_specs += [
            pl.BlockSpec(layer["w_ih_t"].shape, lambda b: (0, 0)),
            pl.BlockSpec(layer["w_hh_t"].shape, lambda b: (0, 0)),
            pl.BlockSpec(layer["bias"].shape, lambda b: (0, 0)),
        ]

    y_tiles, hidden, cell = pl.pallas_call(
        _make_fused_lstm_kernel(T, TB, H, L),
        out_shape=(jax.ShapeDtypeStruct((nb, T * TB, H), jnp.bfloat16),
                   jax.ShapeDtypeStruct((L, B, H), jnp.float32),
                   jax.ShapeDtypeStruct((L, B, H), jnp.float32)),
        grid_spec=pltpu.PrefetchScalarGridSpec(
            num_scalar_prefetch=0,
            grid=(nb,),                                   # batch tiles
            in_specs=in_specs,
            out_specs=[pl.BlockSpec((None, T * TB, H), lambda b: (b, 0, 0)),
                       pl.BlockSpec((L, TB, H), lambda b: (0, b, 0)),
                       pl.BlockSpec((L, TB, H), lambda b: (0, b, 0))],
            scratch_shapes=[pltpu.VMEM((T * TB, 4 * H), jnp.bfloat16),  # xproj
                            pltpu.VMEM((T * TB, H), jnp.bfloat16)],     # acts
        ),
        compiler_params=pltpu.CompilerParams(
            dimension_semantics=("parallel",),
            vmem_limit_bytes=VMEM_LIMIT_BYTES),
    )(*args)
    return y_tiles, hidden, cell


# --------------------------------------------------------------------------
# Dot self-attention: grid over (batch, q-tiles), both "parallel"; bf16 MXU
# matmuls with f32 accumulation; exact softmax denominator.
# --------------------------------------------------------------------------
def _dot_attn_kernel(q_ref, kv_ref, o_ref):
    q = q_ref[...]                                       # [TQ, H] bf16
    kv = kv_ref[...]                                     # [T,  H] bf16
    # Q K^T via dot_general contracting the last dims (no transpose).
    s = jax.lax.dot_general(q, kv, (((1,), (1,)), ((), ())),
                            preferred_element_type=jnp.float32)   # [TQ, T]
    m = jnp.max(s, axis=-1, keepdims=True)
    e = jnp.exp(s - m)
    attn = e / jnp.sum(e, axis=-1, keepdims=True)
    o_ref[...] = jnp.dot(attn.astype(kv.dtype), kv,
                         preferred_element_type=jnp.float32).astype(o_ref.dtype)


def dot_self_attention(x_btH):
    """x_btH: [B, T, H] bf16 -> [B, T, H] f32 (softmax(Q K^T) V, Q=K=V=x)."""
    B, T, H = x_btH.shape
    TQ = 128 if (T > 128 and T % 128 == 0) else T
    # TODO(synk): flash-style online softmax over K tiles for very large T.
    return pl.pallas_call(
        _dot_attn_kernel,
        out_shape=jax.ShapeDtypeStruct((B, T, H), jnp.float32),
        grid_spec=pltpu.PrefetchScalarGridSpec(
            num_scalar_prefetch=0,
            grid=(B, T // TQ),
            in_specs=[pl.BlockSpec((None, TQ, H), lambda b, qi: (b, qi, 0)),
                      pl.BlockSpec((None, T, H), lambda b, qi: (b, 0, 0))],
            out_specs=pl.BlockSpec((None, TQ, H), lambda b, qi: (b, qi, 0)),
        ),
        compiler_params=pltpu.CompilerParams(
            dimension_semantics=("parallel", "parallel"),
            vmem_limit_bytes=VMEM_LIMIT_BYTES),
    )(x_btH, x_btH)


# --------------------------------------------------------------------------
# Encoder forward (embedding gather + light layout plumbing in XLA,
# hot paths in Pallas).
# --------------------------------------------------------------------------
def encoder_forward(src, params):
    """src: [T, B] int32 tokens.  Returns (outputs [T,B,H], (hidden, cell))."""
    emb_table = params["embedding"]                     # [V, E] f32
    T, B = src.shape
    H = params["lstm"][0]["w_hh_t"].shape[0]
    TB = 8 if B % 8 == 0 else B                         # batch tile
    nb = B // TB

    # Embedding gather (data-dependent -> XLA).  The index order is permuted
    # so the gather emits the kernel's (tile, t, b_local) layout directly: no
    # separate transpose of the embedded activations.
    idx = src.reshape(T, nb, TB).transpose(1, 0, 2).reshape(nb, T * TB)
    embedded = jnp.take(emb_table, idx, axis=0).astype(jnp.bfloat16)
    # TODO(synk): training-mode dropout (eval-mode identity here).

    y_tiles, hidden, cell = fused_lstm(embedded, params["lstm"], T, TB, H)

    # bf16 layout plumbing to batch-major for attention (half the f32 traffic).
    y_btH = (y_tiles.reshape(nb, T, TB, H)
             .transpose(0, 2, 1, 3).reshape(B, T, H))

    attn_out = dot_self_attention(y_btH)                # [B, T, H] f32
    outputs = jnp.transpose(attn_out, (1, 0, 2))        # [T, B, H] f32
    return outputs, (hidden, cell)


# --------------------------------------------------------------------------
# Parameter construction (PyTorch nn.Embedding / nn.LSTM shapes), packed into
# the kernel layout: transposed weights, bf16, gate columns (i,f,g,o)->(i,f,o,g).
# --------------------------------------------------------------------------
def _pack_layer(w_ih, w_hh, b_ih, b_hh, H):
    def permute(x):       # last axis is 4H in PyTorch (i, f, g, o) order
        i, f, g, o = x[..., :H], x[..., H:2 * H], x[..., 2 * H:3 * H], x[..., 3 * H:]
        return jnp.concatenate([i, f, o, g], axis=-1)

    return {
        "w_ih_t": permute(w_ih.T).astype(jnp.bfloat16),             # [In, 4H]
        "w_hh_t": permute(w_hh.T).astype(jnp.bfloat16),             # [H, 4H]
        "bias": permute(b_ih + b_hh)[None, :].astype(jnp.float32),  # [1, 4H]
    }


def init_params(key, input_dim, emb_dim, hid_dim, n_layers):
    k_emb, *k_layers = jax.random.split(key, 1 + n_layers)
    scale = hid_dim ** -0.5
    params = {
        "embedding": jax.random.normal(k_emb, (input_dim, emb_dim), jnp.float32),
        "lstm": [],
    }
    for l in range(n_layers):
        in_dim = emb_dim if l == 0 else hid_dim
        k1, k2, k3, k4 = jax.random.split(k_layers[l], 4)
        # PyTorch shapes: weight_ih [4H, in], weight_hh [4H, H], biases [4H].
        w_ih = jax.random.uniform(k1, (4 * hid_dim, in_dim), jnp.float32, -scale, scale)
        w_hh = jax.random.uniform(k2, (4 * hid_dim, hid_dim), jnp.float32, -scale, scale)
        b_ih = jax.random.uniform(k3, (4 * hid_dim,), jnp.float32, -scale, scale)
        b_hh = jax.random.uniform(k4, (4 * hid_dim,), jnp.float32, -scale, scale)
        params["lstm"].append(_pack_layer(w_ih, w_hh, b_ih, b_hh, hid_dim))
    return params


if __name__ == "__main__":
    INPUT_DIM = 50     # vocab size
    EMB_DIM = 32
    HID_DIM = 32
    N_LAYERS = 2
    SEQ_LEN = 8
    BATCH = 16         # multiple of 8 -> batch tile TB=8, grid=(2,) "parallel"

    key = jax.random.PRNGKey(0)
    k_param, k_src = jax.random.split(key)
    params = init_params(k_param, INPUT_DIM, EMB_DIM, HID_DIM, N_LAYERS)
    src = jax.random.randint(k_src, (SEQ_LEN, BATCH), 0, INPUT_DIM,
                             dtype=jnp.int32)

    fwd = jax.jit(functools.partial(encoder_forward, params=params))
    outputs, (hidden, cell) = fwd(src)
    jax.block_until_ready((outputs, hidden, cell))

    assert outputs.shape == (SEQ_LEN, BATCH, HID_DIM)
    assert hidden.shape == (N_LAYERS, BATCH, HID_DIM)
    assert cell.shape == (N_LAYERS, BATCH, HID_DIM)
    assert bool(jnp.isfinite(outputs).all())
    assert bool(jnp.isfinite(hidden).all()) and bool(jnp.isfinite(cell).all())
    print("KERNEL_OK")
</pallas_src>

<mosaic_0001>
module attributes {stable_mosaic.version = 11 : i64} {
  func.func @_dot_attn_kernel(%arg0: i32, %arg1: i32, %arg2: memref<1x8x32xbf16, #tpu.memory_space<vmem>>, %arg3: memref<1x8x32xbf16, #tpu.memory_space<vmem>>, %arg4: memref<1x8x32xf32, #tpu.memory_space<vmem>>) attributes {dimension_semantics = [#tpu.dimension_semantics<parallel>, #tpu.dimension_semantics<parallel>], iteration_bounds = array<i64: 16, 1>, scalar_prefetch = 0 : i64, scratch_operands = 0 : i64, tpu.core_type = #tpu.core_type<tc>, window_params = [{transform_indices = @transform_0, window_bounds = array<i64: 1, 8, 32>}, {transform_indices = @transform_1, window_bounds = array<i64: 1, 8, 32>}, {transform_indices = @transform_2, window_bounds = array<i64: 1, 8, 32>}]} {
    %c0 = arith.constant 0 : index
    %c0_0 = arith.constant 0 : index
    %c0_1 = arith.constant 0 : index
    %0 = vector.load %arg2[%c0, %c0_0, %c0_1] : memref<1x8x32xbf16, #tpu.memory_space<vmem>>, vector<1x8x32xbf16>
    %1 = vector.shape_cast %0 : vector<1x8x32xbf16> to vector<8x32xbf16>
    %c0_2 = arith.constant 0 : index
    %c0_3 = arith.constant 0 : index
    %c0_4 = arith.constant 0 : index
    %2 = vector.load %arg3[%c0_2, %c0_3, %c0_4] : memref<1x8x32xbf16, #tpu.memory_space<vmem>>, vector<1x8x32xbf16>
    %3 = vector.shape_cast %2 : vector<1x8x32xbf16> to vector<8x32xbf16>
    %cst = arith.constant dense<0.000000e+00> : vector<8x8xf32>
    %4 = tpu.matmul %1, %3, %cst {dimension_numbers = #tpu.dot_dimension_numbers<[1], [1], [0], [0], [0, 0, 1, 0], [], []>} : vector<8x32xbf16>, vector<8x32xbf16>, vector<8x8xf32> -> vector<8x8xf32>
    %cst_5 = arith.constant dense<0xFF800000> : vector<8xf32>
    %5 = vector.multi_reduction <maximumf>, %4, %cst_5 [1] : vector<8x8xf32> to vector<8xf32>
    %6 = vector.shape_cast %5 : vector<8xf32> to vector<8x1xf32>
    %7 = vector.broadcast %6 : vector<8x1xf32> to vector<8x8xf32>
    %8 = arith.subf %4, %7 : vector<8x8xf32>
    %9 = math.exp %8 : vector<8x8xf32>
    %cst_6 = arith.constant dense<0.000000e+00> : vector<8xf32>
    %10 = vector.multi_reduction <add>, %9, %cst_6 [1] : vector<8x8xf32> to vector<8xf32>
    %11 = vector.shape_cast %10 : vector<8xf32> to vector<8x1xf32>
    %12 = vector.broadcast %11 : vector<8x1xf32> to vector<8x8xf32>
    %13 = arith.divf %9, %12 : vector<8x8xf32>
    %14 = arith.truncf %13 : vector<8x8xf32> to vector<8x8xbf16>
    %cst_7 = arith.constant dense<0.000000e+00> : vector<8x32xf32>
    %15 = tpu.matmul %14, %3, %cst_7 {dimension_numbers = #tpu.dot_dimension_numbers<[1], [0], [0], [1], [0, 0, 1, 1], [], []>} : vector<8x8xbf16>, vector<8x32xbf16>, vector<8x32xf32> -> vector<8x32xf32>
    %c0_8 = arith.constant 0 : index
    %c0_9 = arith.constant 0 : index
    %c0_10 = arith.constant 0 : index
    %16 = vector.load %arg4[%c0_8, %c0_9, %c0_10] : memref<1x8x32xf32, #tpu.memory_space<vmem>>, vector<1x8x32xf32>
    %17 = vector.shape_cast %16 : vector<1x8x32xf32> to vector<8x32xf32>
    %18 = vector.shape_cast %15 : vector<8x32xf32> to vector<1x8x32xf32>
    tpu.vector_store %arg4[%c0_8, %c0_9, %c0_10], %18 {strides = array<i32>} : memref<1x8x32xf32, #tpu.memory_space<vmem>>, vector<1x8x32xf32>,
    return
  }
  func.func @transform_0(%arg0: i32, %arg1: i32) -> (i32, i32, i32) {
    %c0_i32 = arith.constant 0 : i32
    %c0_i32_0 = arith.constant 0 : i32
    return %arg0, %arg1, %c0_i32 : i32, i32, i32
  }
  func.func @transform_1(%arg0: i32, %arg1: i32) -> (i32, i32, i32) {
    %c0_i32 = arith.constant 0 : i32
    %c0_i32_0 = arith.constant 0 : i32
    %c0_i32_1 = arith.constant 0 : i32
    return %arg0, %c0_i32, %c0_i32_0 : i32, i32, i32
  }
  func.func @transform_2(%arg0: i32, %arg1: i32) -> (i32, i32, i32) {
    %c0_i32 = arith.constant 0 : i32
    %c0_i32_0 = arith.constant 0 : i32
    return %arg0, %arg1, %c0_i32 : i32, i32, i32
  }
}

module attributes {stable_mosaic.version = 11 : i64} {
  func.func @kernel(%arg0: i32, %arg1: memref<1x64x32xbf16, #tpu.memory_space<vmem>>, %arg2: memref<32x128xbf16, #tpu.memory_space<vmem>>, %arg3: memref<32x128xbf16, #tpu.memory_space<vmem>>, %arg4: memref<1x128xf32, #tpu.memory_space<vmem>>, %arg5: memref<32x128xbf16, #tpu.memory_space<vmem>>, %arg6: memref<32x128xbf16, #tpu.memory_space<vmem>>, %arg7: memref<1x128xf32, #tpu.memory_space<vmem>>, %arg8: memref<1x64x32xbf16, #tpu.memory_space<vmem>>, %arg9: memref<2x8x32xf32, #tpu.memory_space<vmem>>, %arg10: memref<2x8x32xf32, #tpu.memory_space<vmem>>, %arg11: memref<64x128xbf16, #tpu.memory_space<vmem>>, %arg12: memref<64x32xbf16, #tpu.memory_space<vmem>>) attributes {dimension_semantics = [#tpu.dimension_semantics<parallel>], iteration_bounds = array<i64: 2>, scalar_prefetch = 0 : i64, scratch_operands = 2 : i64, tpu.core_type = #tpu.core_type<tc>, window_params = [{transform_indices = @transform_0, window_bounds = array<i64: 1, 64, 32>}, {pipeline_mode = #tpu.pipeline_mode<synchronous>, transform_indices = @transform_1, window_bounds = array<i64: 32, 128>}, {pipeline_mode = #tpu.pipeline_mode<synchronous>, transform_indices = @transform_2, window_bounds = array<i64: 32, 128>}, {pipeline_mode = #tpu.pipeline_mode<synchronous>, transform_indices = @transform_3, window_bounds = array<i64: 1, 128>}, {pipeline_mode = #tpu.pipeline_mode<synchronous>, transform_indices = @transform_4, window_bounds = array<i64: 32, 128>}, {pipeline_mode = #tpu.pipeline_mode<synchronous>, transform_indices = @transform_5, window_bounds = array<i64: 32, 128>}, {pipeline_mode = #tpu.pipeline_mode<synchronous>, transform_indices = @transform_6, window_bounds = array<i64: 1, 128>}, {transform_indices = @transform_7, window_bounds = array<i64: 1, 64, 32>}, {transform_indices = @transform_8, window_bounds = array<i64: 2, 8, 32>}, {transform_indices = @transform_9, window_bounds = array<i64: 2, 8, 32>}]} {
    %c0 = arith.constant 0 : index
    %c0_0 = arith.constant 0 : index
    %c0_1 = arith.constant 0 : index
    %0 = vector.load %arg1[%c0, %c0_0, %c0_1] : memref<1x64x32xbf16, #tpu.memory_space<vmem>>, vector<1x64x32xbf16>
    %1 = vector.shape_cast %0 : vector<1x64x32xbf16> to vector<64x32xbf16>
    %c0_2 = arith.constant 0 : index
    %c0_3 = arith.constant 0 : index
    %2 = vector.load %arg2[%c0_2, %c0_3] : memref<32x128xbf16, #tpu.memory_space<vmem>>, vector<32x128xbf16>
    %c0_4 = arith.constant 0 : index
    %c0_5 = arith.constant 0 : index
    %3 = vector.load %arg3[%c0_4, %c0_5] : memref<32x128xbf16, #tpu.memory_space<vmem>>, vector<32x128xbf16>
    %c0_6 = arith.constant 0 : index
    %c0_7 = arith.constant 0 : index
    %4 = vector.load %arg4[%c0_6, %c0_7] : memref<1x128xf32, #tpu.memory_space<vmem>>, vector<1x128xf32>
    %5 = vector.shape_cast %4 : vector<1x128xf32> to vector<1x128xf32>
    %6 = vector.broadcast %5 : vector<1x128xf32> to vector<8x128xf32>
    %cst = arith.constant dense<0.000000e+00> : vector<64x128xf32>
    %7 = tpu.matmul %1, %2, %cst {dimension_numbers = #tpu.dot_dimension_numbers<[1], [0], [0], [1], [0, 0, 1, 1], [], []>} : vector<64x32xbf16>, vector<32x128xbf16>, vector<64x128xf32> -> vector<64x128xf32>
    %8 = arith.truncf %7 : vector<64x128xf32> to vector<64x128xbf16>
    %c0_8 = arith.constant 0 : index
    %c0_9 = arith.constant 0 : index
    %9 = vector.load %arg11[%c0_8, %c0_9] : memref<64x128xbf16, #tpu.memory_space<vmem>>, vector<64x128xbf16>
    tpu.vector_store %arg11[%c0_8, %c0_9], %8 {strides = array<i32>} : memref<64x128xbf16, #tpu.memory_space<vmem>>, vector<64x128xbf16>,
    %cst_10 = arith.constant 0.000000e+00 : f32
    %10 = vector.broadcast %cst_10 : f32 to vector<8x32xf32>
    %cst_11 = arith.constant 0.000000e+00 : f32
    %11 = vector.broadcast %cst_11 : f32 to vector<8x32xf32>
    %c0_i32 = arith.constant 0 : i32
    %c8_i32 = arith.constant 8 : i32
    %12 = arith.muli %c0_i32, %c8_i32 : i32
    %c0_i32_12 = arith.constant 0 : i32
    %13 = arith.addi %12, %c0_i32_12 : i32
    %c8_i32_13 = arith.constant 8 : i32
    %14 = arith.muli %13, %c8_i32_13 : i32
    %15 = tpu.assume_multiple %14, 8 : i32
    %16 = arith.index_cast %15 : i32 to index
    %c0_14 = arith.constant 0 : index
    %17 = vector.load %arg11[%16, %c0_14] : memref<64x128xbf16, #tpu.memory_space<vmem>>, vector<8x128xbf16>
    %18 = arith.extf %17 : vector<8x128xbf16> to vector<8x128xf32>
    %19 = arith.addf %18, %6 : vector<8x128xf32>
    %20 = arith.truncf %10 : vector<8x32xf32> to vector<8x32xbf16>
    %cst_15 = arith.constant dense<0.000000e+00> : vector<8x128xf32>
    %21 = tpu.matmul %20, %3, %cst_15 {dimension_numbers = #tpu.dot_dimension_numbers<[1], [0], [0], [1], [0, 0, 1, 1], [], []>} : vector<8x32xbf16>, vector<32x128xbf16>, vector<8x128xf32> -> vector<8x128xf32>
    %22 = arith.addf %19, %21 : vector<8x128xf32>
    %23 = vector.extract_strided_slice %22 {offsets = [0, 0], sizes = [8, 96], strides = [1, 1]} : vector<8x128xf32> to vector<8x96xf32>
    %24 = arith.negf %23 : vector<8x96xf32>
    %25 = math.exp %24 : vector<8x96xf32>
    %cst_16 = arith.constant 1.000000e+00 : f32
    %26 = vector.broadcast %cst_16 : f32 to vector<8x96xf32>
    %27 = arith.addf %26, %25 : vector<8x96xf32>
    %28 = arith.divf %26, %27 : vector<8x96xf32>
    %29 = vector.extract_strided_slice %22 {offsets = [0, 96], sizes = [8, 32], strides = [1, 1]} : vector<8x128xf32> to vector<8x32xf32>
    %30 = math.tanh %29 : vector<8x32xf32>
    %31 = vector.extract_strided_slice %28 {offsets = [0, 0], sizes = [8, 32], strides = [1, 1]} : vector<8x96xf32> to vector<8x32xf32>
    %32 = vector.extract_strided_slice %28 {offsets = [0, 32], sizes = [8, 32], strides = [1, 1]} : vector<8x96xf32> to vector<8x32xf32>
    %33 = vector.extract_strided_slice %28 {offsets = [0, 64], sizes = [8, 32], strides = [1, 1]} : vector<8x96xf32> to vector<8x32xf32>
    %34 = arith.mulf %32, %11 : vector<8x32xf32>
    %35 = arith.mulf %31, %30 : vector<8x32xf32>
    %36 = arith.addf %34, %35 : vector<8x32xf32>
    %37 = math.tanh %36 : vector<8x32xf32>
    %38 = arith.mulf %33, %37 : vector<8x32xf32>
    %39 = arith.truncf %38 : vector<8x32xf32> to vector<8x32xbf16>
    %40 = arith.index_cast %15 : i32 to index
    %c0_17 = arith.constant 0 : index
    %41 = vector.load %arg12[%40, %c0_17] : memref<64x32xbf16, #tpu.memory_space<vmem>>, vector<8x32xbf16>
    tpu.vector_store %arg12[%40, %c0_17], %39 {strides = array<i32>} : memref<64x32xbf16, #tpu.memory_space<vmem>>, vector<8x32xbf16>,
    %c8_i32_18 = arith.constant 8 : i32
    %42 = arith.muli %c0_i32, %c8_i32_18 : i32
    %c1_i32 = arith.constant 1 : i32
    %43 = arith.addi %42, %c1_i32 : i32
    %c8_i32_19 = arith.constant 8 : i32
    %44 = arith.muli %43, %c8_i32_19 : i32
    %45 = tpu.assume_multiple %44, 8 : i32
    %46 = arith.index_cast %45 : i32 to index
    %c0_20 = arith.constant 0 : index
    %47 = vector.load %arg11[%46, %c0_20] : memref<64x128xbf16, #tpu.memory_space<vmem>>, vector<8x128xbf16>
    %48 = arith.extf %47 : vector<8x128xbf16> to vector<8x128xf32>
    %49 = arith.addf %48, %6 : vector<8x128xf32>
    %50 = arith.truncf %38 : vector<8x32xf32> to vector<8x32xbf16>
    %cst_21 = arith.constant dense<0.000000e+00> : vector<8x128xf32>
    %51 = tpu.matmul %50, %3, %cst_21 {dimension_numbers = #tpu.dot_dimension_numbers<[1], [0], [0], [1], [0, 0, 1, 1], [], []>} : vector<8x32xbf16>, vector<32x128xbf16>, vector<8x128xf32> -> vector<8x128xf32>
    %52 = arith.addf %49, %51 : vector<8x128xf32>
    %53 = vector.extract_strided_slice %52 {offsets = [0, 0], sizes = [8, 96], strides = [1, 1]} : vector<8x128xf32> to vector<8x96xf32>
    %54 = arith.negf %53 : vector<8x96xf32>
    %55 = math.exp %54 : vector<8x96xf32>
    %cst_22 = arith.constant 1.000000e+00 : f32
    %56 = vector.broadcast %cst_22 : f32 to vector<8x96xf32>
    %57 = arith.addf %56, %55 : vector<8x96xf32>
    %58 = arith.divf %56, %57 : vector<8x96xf32>
    %59 = vector.extract_strided_slice %52 {offsets = [0, 96], sizes = [8, 32], strides = [1, 1]} : vector<8x128xf32> to vector<8x32xf32>
    %60 = math.tanh %59 : vector<8x32xf32>
    %61 = vector.extract_strided_slice %58 {offsets = [0, 0], sizes = [8, 32], strides = [1, 1]} : vector<8x96xf32> to vector<8x32xf32>
    %62 = vector.extract_strided_slice %58 {offsets = [0, 32], sizes = [8, 32], strides = [1, 1]} : vector<8x96xf32> to vector<8x32xf32>
    %63 = vector.extract_strided_slice %58 {offsets = [0, 64], sizes = [8, 32], strides = [1, 1]} : vector<8x96xf32> to vector<8x32xf32>
    %64 = arith.mulf %62, %36 : vector<8x32xf32>
    %65 = arith.mulf %61, %60 : vector<8x32xf32>
    %66 = arith.addf %64, %65 : vector<8x32xf32>
    %67 = math.tanh %66 : vector<8x32xf32>
    %68 = arith.mulf %63, %67 : vector<8x32xf32>
    %69 = arith.truncf %68 : vector<8x32xf32> to vector<8x32xbf16>
    %70 = arith.index_cast %45 : i32 to index
    %c0_23 = arith.constant 0 : index
    %71 = vector.load %arg12[%70, %c0_23] : memref<64x32xbf16, #tpu.memory_space<vmem>>, vector<8x32xbf16>
    tpu.vector_store %arg12[%70, %c0_23], %69 {strides = array<i32>} : memref<64x32xbf16, #tpu.memory_space<vmem>>, vector<8x32xbf16>,
    %c8_i32_24 = arith.constant 8 : i32
    %72 = arith.muli %c0_i32, %c8_i32_24 : i32
    %c2_i32 = arith.constant 2 : i32
    %73 = arith.addi %72, %c2_i32 : i32
    %c8_i32_25 = arith.constant 8 : i32
    %74 = arith.muli %73, %c8_i32_25 : i32
    %75 = tpu.assume_multiple %74, 8 : i32
    %76 = arith.index_cast %75 : i32 to index
    %c0_26 = arith.constant 0 : index
    %77 = vector.load %arg11[%76, %c0_26] : memref<64x128xbf16, #tpu.memory_space<vmem>>, vector<8x128xbf16>
    %78 = arith.extf %77 : vector<8x128xbf16> to vector<8x128xf32>
    %79 = arith.addf %78, %6 : vector<8x128xf32>
    %80 = arith.truncf %68 : vector<8x32xf32> to vector<8x32xbf16>
    %cst_27 = arith.constant dense<0.000000e+00> : vector<8x128xf32>
    %81 = tpu.matmul %80, %3, %cst_27 {dimension_numbers = #tpu.dot_dimension_numbers<[1], [0], [0], [1], [0, 0, 1, 1], [], []>} : vector<8x32xbf16>, vector<32x128xbf16>, vector<8x128xf32> -> vector<8x128xf32>
    %82 = arith.addf %79, %81 : vector<8x128xf32>
    %83 = vector.extract_strided_slice %82 {offsets = [0, 0], sizes = [8, 96], strides = [1, 1]} : vector<8x128xf32> to vector<8x96xf32>
    %84 = arith.negf %83 : vector<8x96xf32>
    %85 = math.exp %84 : vector<8x96xf32>
    %cst_28 = arith.constant 1.000000e+00 : f32
    %86 = vector.broadcast %cst_28 : f32 to vector<8x96xf32>
    %87 = arith.addf %86, %85 : vector<8x96xf32>
    %88 = arith.divf %86, %87 : vector<8x96xf32>
    %89 = vector.extract_strided_slice %82 {offsets = [0, 96], sizes = [8, 32], strides = [1, 1]} : vector<8x128xf32> to vector<8x32xf32>
    %90 = math.tanh %89 : vector<8x32xf32>
    %91 = vector.extract_strided_slice %88 {offsets = [0, 0], sizes = [8, 32], strides = [1, 1]} : vector<8x96xf32> to vector<8x32xf32>
    %92 = vector.extract_strided_slice %88 {offsets = [0, 32], sizes = [8, 32], strides = [1, 1]} : vector<8x96xf32> to vector<8x32xf32>
    %93 = vector.extract_strided_slice %88 {offsets = [0, 64], sizes = [8, 32], strides = [1, 1]} : vector<8x96xf32> to vector<8x32xf32>
    %94 = arith.mulf %92, %66 : vector<8x32xf32>
    %95 = arith.mulf %91, %90 : vector<8x32xf32>
    %96 = arith.addf %94, %95 : vector<8x32xf32>
    %97 = math.tanh %96 : vector<8x32xf32>
    %98 = arith.mulf %93, %97 : vector<8x32xf32>
    %99 = arith.truncf %98 : vector<8x32xf32> to vector<8x32xbf16>
    %100 = arith.index_cast %75 : i32 to index
    %c0_29 = arith.constant 0 : index
    %101 = vector.load %arg12[%100, %c0_29] : memref<64x32xbf16, #tpu.memory_space<vmem>>, vector<8x32xbf16>
    tpu.vector_store %arg12[%100, %c0_29], %99 {strides = array<i32>} : memref<64x32xbf16, #tpu.memory_space<vmem>>, vector<8x32xbf16>,
    %c8_i32_30 = arith.constant 8 : i32
    %102 = arith.muli %c0_i32, %c8_i32_30 : i32
    %c3_i32 = arith.constant 3 : i32
    %103 = arith.addi %102, %c3_i32 : i32
    %c8_i32_31 = arith.constant 8 : i32
    %104 = arith.muli %103, %c8_i32_31 : i32
    %105 = tpu.assume_multiple %104, 8 : i32
    %106 = arith.index_cast %105 : i32 to index
    %c0_32 = arith.constant 0 : index
    %107 = vector.load %arg11[%106, %c0_32] : memref<64x128xbf16, #tpu.memory_space<vmem>>, vector<8x128xbf16>
    %108 = arith.extf %107 : vector<8x128xbf16> to vector<8x128xf32>
    %109 = arith.addf %108, %6 : vector<8x128xf32>
    %110 = arith.truncf %98 : vector<8x32xf32> to vector<8x32xbf16>
    %cst_33 = arith.constant dense<0.000000e+00> : vector<8x128xf32>
    %111 = tpu.matmul %110, %3, %cst_33 {dimension_numbers = #tpu.dot_dimension_numbers<[1], [0], [0], [1], [0, 0, 1, 1], [], []>} : vector<8x32xbf16>, vector<32x128xbf16>, vector<8x128xf32> -> vector<8x128xf32>
    %112 = arith.addf %109, %111 : vector<8x128xf32>
    %113 = vector.extract_strided_slice %112 {offsets = [0, 0], sizes = [8, 96], strides = [1, 1]} : vector<8x128xf32> to vector<8x96xf32>
    %114 = arith.negf %113 : vector<8x96xf32>
    %115 = math.exp %114 : vector<8x96xf32>
    %cst_34 = arith.constant 1.000000e+00 : f32
    %116 = vector.broadcast %cst_34 : f32 to vector<8x96xf32>
    %117 = arith.addf %116, %115 : vector<8x96xf32>
    %118 = arith.divf %116, %117 : vector<8x96xf32>
    %119 = vector.extract_strided_slice %112 {offsets = [0, 96], sizes = [8, 32], strides = [1, 1]} : vector<8x128xf32> to vector<8x32xf32>
    %120 = math.tanh %119 : vector<8x32xf32>
    %121 = vector.extract_strided_slice %118 {offsets = [0, 0], sizes = [8, 32], strides = [1, 1]} : vector<8x96xf32> to vector<8x32xf32>
    %122 = vector.extract_strided_slice %118 {offsets = [0, 32], sizes = [8, 32], strides = [1, 1]} : vector<8x96xf32> to vector<8x32xf32>
    %123 = vector.extract_strided_slice %118 {offsets = [0, 64], sizes = [8, 32], strides = [1, 1]} : vector<8x96xf32> to vector<8x32xf32>
    %124 = arith.mulf %122, %96 : vector<8x32xf32>
    %125 = arith.mulf %121, %120 : vector<8x32xf32>
    %126 = arith.addf %124, %125 : vector<8x32xf32>
    %127 = math.tanh %126 : vector<8x32xf32>
    %128 = arith.mulf %123, %127 : vector<8x32xf32>
    %129 = arith.truncf %128 : vector<8x32xf32> to vector<8x32xbf16>
    %130 = arith.index_cast %105 : i32 to index
    %c0_35 = arith.constant 0 : index
    %131 = vector.load %arg12[%130, %c0_35] : memref<64x32xbf16, #tpu.memory_space<vmem>>, vector<8x32xbf16>
    tpu.vector_store %arg12[%130, %c0_35], %129 {strides = array<i32>} : memref<64x32xbf16, #tpu.memory_space<vmem>>, vector<8x32xbf16>,
    %c8_i32_36 = arith.constant 8 : i32
    %132 = arith.muli %c0_i32, %c8_i32_36 : i32
    %c4_i32 = arith.constant 4 : i32
    %133 = arith.addi %132, %c4_i32 : i32
    %c8_i32_37 = arith.constant 8 : i32
    %134 = arith.muli %133, %c8_i32_37 : i32
    %135 = tpu.assume_multiple %134, 8 : i32
    %136 = arith.index_cast %135 : i32 to index
    %c0_38 = arith.constant 0 : index
    %137 = vector.load %arg11[%136, %c0_38] : memref<64x128xbf16, #tpu.memory_space<vmem>>, vector<8x128xbf16>
    %138 = arith.extf %137 : vector<8x128xbf16> to vector<8x128xf32>
    %139 = arith.addf %138, %6 : vector<8x128xf32>
    %140 = arith.truncf %128 : vector<8x32xf32> to vector<8x32xbf16>
    %cst_39 = arith.constant dense<0.000000e+00> : vector<8x128xf32>
    %141 = tpu.matmul %140, %3, %cst_39 {dimension_numbers = #tpu.dot_dimension_numbers<[1], [0], [0], [1], [0, 0, 1, 1], [], []>} : vector<8x32xbf16>, vector<32x128xbf16>, vector<8x128xf32> -> vector<8x128xf32>
    %142 = arith.addf %139, %141 : vector<8x128xf32>
    %143 = vector.extract_strided_slice %142 {offsets = [0, 0], sizes = [8, 96], strides = [1, 1]} : vector<8x128xf32> to vector<8x96xf32>
    %144 = arith.negf %143 : vector<8x96xf32>
    %145 = math.exp %144 : vector<8x96xf32>
    %cst_40 = arith.constant 1.000000e+00 : f32
    %146 = vector.broadcast %cst_40 : f32 to vector<8x96xf32>
    %147 = arith.addf %146, %145 : vector<8x96xf32>
    %148 = arith.divf %146, %147 : vector<8x96xf32>
    %149 = vector.extract_strided_slice %142 {offsets = [0, 96], sizes = [8, 32], strides = [1, 1]} : vector<8x128xf32> to vector<8x32xf32>
    %150 = math.tanh %149 : vector<8x32xf32>
    %151 = vector.extract_strided_slice %148 {offsets = [0, 0], sizes = [8, 32], strides = [1, 1]} : vector<8x96xf32> to vector<8x32xf32>
    %152 = vector.extract_strided_slice %148 {offsets = [0, 32], sizes = [8, 32], strides = [1, 1]} : vector<8x96xf32> to vector<8x32xf32>
    %153 = vector.extract_strided_slice %148 {offsets = [0, 64], sizes = [8, 32], strides = [1, 1]} : vector<8x96xf32> to vector<8x32xf32>
    %154 = arith.mulf %152, %126 : vector<8x32xf32>
    %155 = arith.mulf %151, %150 : vector<8x32xf32>
    %156 = arith.addf %154, %155 : vector<8x32xf32>
    %157 = math.tanh %156 : vector<8x32xf32>
    %158 = arith.mulf %153, %157 : vector<8x32xf32>
    %159 = arith.truncf %158 : vector<8x32xf32> to vector<8x32xbf16>
    %160 = arith.index_cast %135 : i32 to index
    %c0_41 = arith.constant 0 : index
    %161 = vector.load %arg12[%160, %c0_41] : memref<64x32xbf16, #tpu.memory_space<vmem>>, vector<8x32xbf16>
    tpu.vector_store %arg12[%160, %c0_41], %159 {strides = array<i32>} : memref<64x32xbf16, #tpu.memory_space<vmem>>, vector<8x32xbf16>,
    %c8_i32_42 = arith.constant 8 : i32
    %162 = arith.muli %c0_i32, %c8_i32_42 : i32
    %c5_i32 = arith.constant 5 : i32
    %163 = arith.addi %162, %c5_i32 : i32
    %c8_i32_43 = arith.constant 8 : i32
    %164 = arith.muli %163, %c8_i32_43 : i32
    %165 = tpu.assume_multiple %164, 8 : i32
    %166 = arith.index_cast %165 : i32 to index
    %c0_44 = arith.constant 0 : index
    %167 = vector.load %arg11[%166, %c0_44] : memref<64x128xbf16, #tpu.memory_space<vmem>>, vector<8x128xbf16>
    %168 = arith.extf %167 : vector<8x128xbf16> to vector<8x128xf32>
    %169 = arith.addf %168, %6 : vector<8x128xf32>
    %170 = arith.truncf %158 : vector<8x32xf32> to vector<8x32xbf16>
    %cst_45 = arith.constant dense<0.000000e+00> : vector<8x128xf32>
    %171 = tpu.matmul %170, %3, %cst_45 {dimension_numbers = #tpu.dot_dimension_numbers<[1], [0], [0], [1], [0, 0, 1, 1], [], []>} : vector<8x32xbf16>, vector<32x128xbf16>, vector<8x128xf32> -> vector<8x128xf32>
    %172 = arith.addf %169, %171 : vector<8x128xf32>
    %173 = vector.extract_strided_slice %172 {offsets = [0, 0], sizes = [8, 96], strides = [1, 1]} : vector<8x128xf32> to vector<8x96xf32>
    %174 = arith.negf %173 : vector<8x96xf32>
    %175 = math.exp %174 : vector<8x96xf32>
    %cst_46 = arith.constant 1.000000e+00 : f32
    %176 = vector.broadcast %cst_46 : f32 to vector<8x96xf32>
    %177 = arith.addf %176, %175 : vector<8x96xf32>
    %178 = arith.divf %176, %177 : vector<8x96xf32>
    %179 = vector.extract_strided_slice %172 {offsets = [0, 96], sizes = [8, 32], strides = [1, 1]} : vector<8x128xf32> to vector<8x32xf32>
    %180 = math.tanh %179 : vector<8x32xf32>
    %181 = vector.extract_strided_slice %178 {offsets = [0, 0], sizes = [8, 32], strides = [1, 1]} : vector<8x96xf32> to vector<8x32xf32>
    %182 = vector.extract_strided_slice %178 {offsets = [0, 32], sizes = [8, 32], strides = [1, 1]} : vector<8x96xf32> to vector<8x32xf32>
    %183 = vector.extract_strided_slice %178 {offsets = [0, 64], sizes = [8, 32], strides = [1, 1]} : vector<8x96xf32> to vector<8x32xf32>
    %184 = arith.mulf %182, %156 : vector<8x32xf32>
    %185 = arith.mulf %181, %180 : vector<8x32xf32>
    %186 = arith.addf %184, %185 : vector<8x32xf32>
    %187 = math.tanh %186 : vector<8x32xf32>
    %188 = arith.mulf %183, %187 : vector<8x32xf32>
    %189 = arith.truncf %188 : vector<8x32xf32> to vector<8x32xbf16>
    %190 = arith.index_cast %165 : i32 to index
    %c0_47 = arith.constant 0 : index
    %191 = vector.load %arg12[%190, %c0_47] : memref<64x32xbf16, #tpu.memory_space<vmem>>, vector<8x32xbf16>
    tpu.vector_store %arg12[%190, %c0_47], %189 {strides = array<i32>} : memref<64x32xbf16, #tpu.memory_space<vmem>>, vector<8x32xbf16>,
    %c8_i32_48 = arith.constant 8 : i32
    %192 = arith.muli %c0_i32, %c8_i32_48 : i32
    %c6_i32 = arith.constant 6 : i32
    %193 = arith.addi %192, %c6_i32 : i32
    %c8_i32_49 = arith.constant 8 : i32
    %194 = arith.muli %193, %c8_i32_49 : i32
    %195 = tpu.assume_multiple %194, 8 : i32
    %196 = arith.index_cast %195 : i32 to index
    %c0_50 = arith.constant 0 : index
    %197 = vector.load %arg11[%196, %c0_50] : memref<64x128xbf16, #tpu.memory_space<vmem>>, vector<8x128xbf16>
    %198 = arith.extf %197 : vector<8x128xbf16> to vector<8x128xf32>
    %199 = arith.addf %198, %6 : vector<8x128xf32>
    %200 = arith.truncf %188 : vector<8x32xf32> to vector<8x32xbf16>
    %cst_51 = arith.constant dense<0.000000e+00> : vector<8x128xf32>
    %201 = tpu.matmul %200, %3, %cst_51 {dimension_numbers = #tpu.dot_dimension_numbers<[1], [0], [0], [1], [0, 0, 1, 1], [], []>} : vector<8x32xbf16>, vector<32x128xbf16>, vector<8x128xf32> -> vector<8x128xf32>
    %202 = arith.addf %199, %201 : vector<8x128xf32>
    %203 = vector.extract_strided_slice %202 {offsets = [0, 0], sizes = [8, 96], strides = [1, 1]} : vector<8x128xf32> to vector<8x96xf32>
    %204 = arith.negf %203 : vector<8x96xf32>
    %205 = math.exp %204 : vector<8x96xf32>
    %cst_52 = arith.constant 1.000000e+00 : f32
    %206 = vector.broadcast %cst_52 : f32 to vector<8x96xf32>
    %207 = arith.addf %206, %205 : vector<8x96xf32>
    %208 = arith.divf %206, %207 : vector<8x96xf32>
    %209 = vector.extract_strided_slice %202 {offsets = [0, 96], sizes = [8, 32], strides = [1, 1]} : vector<8x128xf32> to vector<8x32xf32>
    %210 = math.tanh %209 : vector<8x32xf32>
    %211 = vector.extract_strided_slice %208 {offsets = [0, 0], sizes = [8, 32], strides = [1, 1]} : vector<8x96xf32> to vector<8x32xf32>
    %212 = vector.extract_strided_slice %208 {offsets = [0, 32], sizes = [8, 32], strides = [1, 1]} : vector<8x96xf32> to vector<8x32xf32>
    %213 = vector.extract_strided_slice %208 {offsets = [0, 64], sizes = [8, 32], strides = [1, 1]} : vector<8x96xf32> to vector<8x32xf32>
    %214 = arith.mulf %212, %186 : vector<8x32xf32>
    %215 = arith.mulf %211, %210 : vector<8x32xf32>
    %216 = arith.addf %214, %215 : vector<8x32xf32>
    %217 = math.tanh %216 : vector<8x32xf32>
    %218 = arith.mulf %213, %217 : vector<8x32xf32>
    %219 = arith.truncf %218 : vector<8x32xf32> to vector<8x32xbf16>
    %220 = arith.index_cast %195 : i32 to index
    %c0_53 = arith.constant 0 : index
    %221 = vector.load %arg12[%220, %c0_53] : memref<64x32xbf16, #tpu.memory_space<vmem>>, vector<8x32xbf16>
    tpu.vector_store %arg12[%220, %c0_53], %219 {strides = array<i32>} : memref<64x32xbf16, #tpu.memory_space<vmem>>, vector<8x32xbf16>,
    %c8_i32_54 = arith.constant 8 : i32
    %222 = arith.muli %c0_i32, %c8_i32_54 : i32
    %c7_i32 = arith.constant 7 : i32
    %223 = arith.addi %222, %c7_i32 : i32
    %c8_i32_55 = arith.constant 8 : i32
    %224 = arith.muli %223, %c8_i32_55 : i32
    %225 = tpu.assume_multiple %224, 8 : i32
    %226 = arith.index_cast %225 : i32 to index
    %c0_56 = arith.constant 0 : index
    %227 = vector.load %arg11[%226, %c0_56] : memref<64x128xbf16, #tpu.memory_space<vmem>>, vector<8x128xbf16>
    %228 = arith.extf %227 : vector<8x128xbf16> to vector<8x128xf32>
    %229 = arith.addf %228, %6 : vector<8x128xf32>
    %230 = arith.truncf %218 : vector<8x32xf32> to vector<8x32xbf16>
    %cst_57 = arith.constant dense<0.000000e+00> : vector<8x128xf32>
    %231 = tpu.matmul %230, %3, %cst_57 {dimension_numbers = #tpu.dot_dimension_numbers<[1], [0], [0], [1], [0, 0, 1, 1], [], []>} : vector<8x32xbf16>, vector<32x128xbf16>, vector<8x128xf32> -> vector<8x128xf32>
    %232 = arith.addf %229, %231 : vector<8x128xf32>
    %233 = vector.extract_strided_slice %232 {offsets = [0, 0], sizes = [8, 96], strides = [1, 1]} : vector<8x128xf32> to vector<8x96xf32>
    %234 = arith.negf %233 : vector<8x96xf32>
    %235 = math.exp %234 : vector<8x96xf32>
    %cst_58 = arith.constant 1.000000e+00 : f32
    %236 = vector.broadcast %cst_58 : f32 to vector<8x96xf32>
    %237 = arith.addf %236, %235 : vector<8x96xf32>
    %238 = arith.divf %236, %237 : vector<8x96xf32>
    %239 = vector.extract_strided_slice %232 {offsets = [0, 96], sizes = [8, 32], strides = [1, 1]} : vector<8x128xf32> to vector<8x32xf32>
    %240 = math.tanh %239 : vector<8x32xf32>
    %241 = vector.extract_strided_slice %238 {offsets = [0, 0], sizes = [8, 32], strides = [1, 1]} : vector<8x96xf32> to vector<8x32xf32>
    %242 = vector.extract_strided_slice %238 {offsets = [0, 32], sizes = [8, 32], strides = [1, 1]} : vector<8x96xf32> to vector<8x32xf32>
    %243 = vector.extract_strided_slice %238 {offsets = [0, 64], sizes = [8, 32], strides = [1, 1]} : vector<8x96xf32> to vector<8x32xf32>
    %244 = arith.mulf %242, %216 : vector<8x32xf32>
    %245 = arith.mulf %241, %240 : vector<8x32xf32>
    %246 = arith.addf %244, %245 : vector<8x32xf32>
    %247 = math.tanh %246 : vector<8x32xf32>
    %248 = arith.mulf %243, %247 : vector<8x32xf32>
    %249 = arith.truncf %248 : vector<8x32xf32> to vector<8x32xbf16>
    %250 = arith.index_cast %225 : i32 to index
    %c0_59 = arith.constant 0 : index
    %251 = vector.load %arg12[%250, %c0_59] : memref<64x32xbf16, #tpu.memory_space<vmem>>, vector<8x32xbf16>
    tpu.vector_store %arg12[%250, %c0_59], %249 {strides = array<i32>} : memref<64x32xbf16, #tpu.memory_space<vmem>>, vector<8x32xbf16>,
    %c1_i32_60 = arith.constant 1 : i32
    %c0_61 = arith.constant 0 : index
    %c0_62 = arith.constant 0 : index
    %c0_63 = arith.constant 0 : index
    %252 = vector.load %arg9[%c0_61, %c0_62, %c0_63] : memref<2x8x32xf32, #tpu.memory_space<vmem>>, vector<1x8x32xf32>
    %253 = vector.shape_cast %252 : vector<1x8x32xf32> to vector<8x32xf32>
    %254 = vector.shape_cast %248 : vector<8x32xf32> to vector<1x8x32xf32>
    tpu.vector_store %arg9[%c0_61, %c0_62, %c0_63], %254 {strides = array<i32>} : memref<2x8x32xf32, #tpu.memory_space<vmem>>, vector<1x8x32xf32>,
    %c0_64 = arith.constant 0 : index
    %c0_65 = arith.constant 0 : index
    %c0_66 = arith.constant 0 : index
    %255 = vector.load %arg10[%c0_64, %c0_65, %c0_66] : memref<2x8x32xf32, #tpu.memory_space<vmem>>, vector<1x8x32xf32>
    %256 = vector.shape_cast %255 : vector<1x8x32xf32> to vector<8x32xf32>
    %257 = vector.shape_cast %246 : vector<8x32xf32> to vector<1x8x32xf32>
    tpu.vector_store %arg10[%c0_64, %c0_65, %c0_66], %257 {strides = array<i32>} : memref<2x8x32xf32, #tpu.memory_space<vmem>>, vector<1x8x32xf32>,
    %c0_67 = arith.constant 0 : index
    %c0_68 = arith.constant 0 : index
    %258 = vector.load %arg12[%c0_67, %c0_68] : memref<64x32xbf16, #tpu.memory_space<vmem>>, vector<64x32xbf16>
    %c0_69 = arith.constant 0 : index
    %c0_70 = arith.constant 0 : index
    %259 = vector.load %arg5[%c0_69, %c0_70] : memref<32x128xbf16, #tpu.memory_space<vmem>>, vector<32x128xbf16>
    %c0_71 = arith.constant 0 : index
    %c0_72 = arith.constant 0 : index
    %260 = vector.load %arg6[%c0_71, %c0_72] : memref<32x128xbf16, #tpu.memory_space<vmem>>, vector<32x128xbf16>
    %c0_73 = arith.constant 0 : index
    %c0_74 = arith.constant 0 : index
    %261 = vector.load %arg7[%c0_73, %c0_74] : memref<1x128xf32, #tpu.memory_space<vmem>>, vector<1x128xf32>
    %262 = vector.shape_cast %261 : vector<1x128xf32> to vector<1x128xf32>
    %263 = vector.broadcast %262 : vector<1x128xf32> to vector<8x128xf32>
    %cst_75 = arith.constant dense<0.000000e+00> : vector<64x128xf32>
    %264 = tpu.matmul %258, %259, %cst_75 {dimension_numbers = #tpu.dot_dimension_numbers<[1], [0], [0], [1], [0, 0, 1, 1], [], []>} : vector<64x32xbf16>, vector<32x128xbf16>, vector<64x128xf32> -> vector<64x128xf32>
    %265 = arith.truncf %264 : vector<64x128xf32> to vector<64x128xbf16>
    %c0_76 = arith.constant 0 : index
    %c0_77 = arith.constant 0 : index
    %266 = vector.load %arg11[%c0_76, %c0_77] : memref<64x128xbf16, #tpu.memory_space<vmem>>, vector<64x128xbf16>
    tpu.vector_store %arg11[%c0_76, %c0_77], %265 {strides = array<i32>} : memref<64x128xbf16, #tpu.memory_space<vmem>>, vector<64x128xbf16>,
    %cst_78 = arith.constant 0.000000e+00 : f32
    %267 = vector.broadcast %cst_78 : f32 to vector<8x32xf32>
    %cst_79 = arith.constant 0.000000e+00 : f32
    %268 = vector.broadcast %cst_79 : f32 to vector<8x32xf32>
    %c0_i32_80 = arith.constant 0 : i32
    %c8_i32_81 = arith.constant 8 : i32
    %269 = arith.muli %c0_i32_80, %c8_i32_81 : i32
    %c0_i32_82 = arith.constant 0 : i32
    %270 = arith.addi %269, %c0_i32_82 : i32
    %c8_i32_83 = arith.constant 8 : i32
    %271 = arith.muli %270, %c8_i32_83 : i32
    %272 = tpu.assume_multiple %271, 8 : i32
    %273 = arith.index_cast %272 : i32 to index
    %c0_84 = arith.constant 0 : index
    %274 = vector.load %arg11[%273, %c0_84] : memref<64x128xbf16, #tpu.memory_space<vmem>>, vector<8x128xbf16>
    %275 = arith.extf %274 : vector<8x128xbf16> to vector<8x128xf32>
    %276 = arith.addf %275, %263 : vector<8x128xf32>
    %277 = arith.truncf %267 : vector<8x32xf32> to vector<8x32xbf16>
    %cst_85 = arith.constant dense<0.000000e+00> : vector<8x128xf32>
    %278 = tpu.matmul %277, %260, %cst_85 {dimension_numbers = #tpu.dot_dimension_numbers<[1], [0], [0], [1], [0, 0, 1, 1], [], []>} : vector<8x32xbf16>, vector<32x128xbf16>, vector<8x128xf32> -> vector<8x128xf32>
    %279 = arith.addf %276, %278 : vector<8x128xf32>
    %280 = vector.extract_strided_slice %279 {offsets = [0, 0], sizes = [8, 96], strides = [1, 1]} : vector<8x128xf32> to vector<8x96xf32>
    %281 = arith.negf %280 : vector<8x96xf32>
    %282 = math.exp %281 : vector<8x96xf32>
    %cst_86 = arith.constant 1.000000e+00 : f32
    %283 = vector.broadcast %cst_86 : f32 to vector<8x96xf32>
    %284 = arith.addf %283, %282 : vector<8x96xf32>
    %285 = arith.divf %283, %284 : vector<8x96xf32>
    %286 = vector.extract_strided_slice %279 {offsets = [0, 96], sizes = [8, 32], strides = [1, 1]} : vector<8x128xf32> to vector<8x32xf32>
    %287 = math.tanh %286 : vector<8x32xf32>
    %288 = vector.extract_strided_slice %285 {offsets = [0, 0], sizes = [8, 32], strides = [1, 1]} : vector<8x96xf32> to vector<8x32xf32>
    %289 = vector.extract_strided_slice %285 {offsets = [0, 32], sizes = [8, 32], strides = [1, 1]} : vector<8x96xf32> to vector<8x32xf32>
    %290 = vector.extract_strided_slice %285 {offsets = [0, 64], sizes = [8, 32], strides = [1, 1]} : vector<8x96xf32> to vector<8x32xf32>
    %291 = arith.mulf %289, %268 : vector<8x32xf32>
    %292 = arith.mulf %288, %287 : vector<8x32xf32>
    %293 = arith.addf %291, %292 : vector<8x32xf32>
    %294 = math.tanh %293 : vector<8x32xf32>
    %295 = arith.mulf %290, %294 : vector<8x32xf32>
    %296 = arith.truncf %295 : vector<8x32xf32> to vector<8x32xbf16>
    %c0_87 = arith.constant 0 : index
    %297 = arith.index_cast %272 : i32 to index
    %c0_88 = arith.constant 0 : index
    %298 = vector.load %arg8[%c0_87, %297, %c0_88] : memref<1x64x32xbf16, #tpu.memory_space<vmem>>, vector<1x8x32xbf16>
    %299 = vector.shape_cast %298 : vector<1x8x32xbf16> to vector<8x32xbf16>
    %300 = vector.shape_cast %296 : vector<8x32xbf16> to vector<1x8x32xbf16>
    tpu.vector_store %arg8[%c0_87, %297, %c0_88], %300 {strides = array<i32>} : memref<1x64x32xbf16, #tpu.memory_space<vmem>>, vector<1x8x32xbf16>,
    %c8_i32_89 = arith.constant 8 : i32
    %301 = arith.muli %c0_i32_80, %c8_i32_89 : i32
    %c1_i32_90 = arith.constant 1 : i32
    %302 = arith.addi %301, %c1_i32_90 : i32
    %c8_i32_91 = arith.constant 8 : i32
    %303 = arith.muli %302, %c8_i32_91 : i32
    %304 = tpu.assume_multiple %303, 8 : i32
    %305 = arith.index_cast %304 : i32 to index
    %c0_92 = arith.constant 0 : index
    %306 = vector.load %arg11[%305, %c0_92] : memref<64x128xbf16, #tpu.memory_space<vmem>>, vector<8x128xbf16>
    %307 = arith.extf %306 : vector<8x128xbf16> to vector<8x128xf32>
    %308 = arith.addf %307, %263 : vector<8x128xf32>
    %309 = arith.truncf %295 : vector<8x32xf32> to vector<8x32xbf16>
    %cst_93 = arith.constant dense<0.000000e+00> : vector<8x128xf32>
    %310 = tpu.matmul %309, %260, %cst_93 {dimension_numbers = #tpu.dot_dimension_numbers<[1], [0], [0], [1], [0, 0, 1, 1], [], []>} : vector<8x32xbf16>, vector<32x128xbf16>, vector<8x128xf32> -> vector<8x128xf32>
    %311 = arith.addf %308, %310 : vector<8x128xf32>
    %312 = vector.extract_strided_slice %311 {offsets = [0, 0], sizes = [8, 96], strides = [1, 1]} : vector<8x128xf32> to vector<8x96xf32>
    %313 = arith.negf %312 : vector<8x96xf32>
    %314 = math.exp %313 : vector<8x96xf32>
    %cst_94 = arith.constant 1.000000e+00 : f32
    %315 = vector.broadcast %cst_94 : f32 to vector<8x96xf32>
    %316 = arith.addf %315, %314 : vector<8x96xf32>
    %317 = arith.divf %315, %316 : vector<8x96xf32>
    %318 = vector.extract_strided_slice %311 {offsets = [0, 96], sizes = [8, 32], strides = [1, 1]} : vector<8x128xf32> to vector<8x32xf32>
    %319 = math.tanh %318 : vector<8x32xf32>
    %320 = vector.extract_strided_slice %317 {offsets = [0, 0], sizes = [8, 32], strides = [1, 1]} : vector<8x96xf32> to vector<8x32xf32>
    %321 = vector.extract_strided_slice %317 {offsets = [0, 32], sizes = [8, 32], strides = [1, 1]} : vector<8x96xf32> to vector<8x32xf32>
    %322 = vector.extract_strided_slice %317 {offsets = [0, 64], sizes = [8, 32], strides = [1, 1]} : vector<8x96xf32> to vector<8x32xf32>
    %323 = arith.mulf %321, %293 : vector<8x32xf32>
    %324 = arith.mulf %320, %319 : vector<8x32xf32>
    %325 = arith.addf %323, %324 : vector<8x32xf32>
    %326 = math.tanh %325 : vector<8x32xf32>
    %327 = arith.mulf %322, %326 : vector<8x32xf32>
    %328 = arith.truncf %327 : vector<8x32xf32> to vector<8x32xbf16>
    %c0_95 = arith.constant 0 : index
    %329 = arith.index_cast %304 : i32 to index
    %c0_96 = arith.constant 0 : index
    %330 = vector.load %arg8[%c0_95, %329, %c0_96] : memref<1x64x32xbf16, #tpu.memory_space<vmem>>, vector<1x8x32xbf16>
    %331 = vector.shape_cast %330 : vector<1x8x32xbf16> to vector<8x32xbf16>
    %332 = vector.shape_cast %328 : vector<8x32xbf16> to vector<1x8x32xbf16>
    tpu.vector_store %arg8[%c0_95, %329, %c0_96], %332 {strides = array<i32>} : memref<1x64x32xbf16, #tpu.memory_space<vmem>>, vector<1x8x32xbf16>,
    %c8_i32_97 = arith.constant 8 : i32
    %333 = arith.muli %c0_i32_80, %c8_i32_97 : i32
    %c2_i32_98 = arith.constant 2 : i32
    %334 = arith.addi %333, %c2_i32_98 : i32
    %c8_i32_99 = arith.constant 8 : i32
    %335 = arith.muli %334, %c8_i32_99 : i32
    %336 = tpu.assume_multiple %335, 8 : i32
    %337 = arith.index_cast %336 : i32 to index
    %c0_100 = arith.constant 0 : index
    %338 = vector.load %arg11[%337, %c0_100] : memref<64x128xbf16, #tpu.memory_space<vmem>>, vector<8x128xbf16>
    %339 = arith.extf %338 : vector<8x128xbf16> to vector<8x128xf32>
    %340 = arith.addf %339, %263 : vector<8x128xf32>
    %341 = arith.truncf %327 : vector<8x32xf32> to vector<8x32xbf16>
    %cst_101 = arith.constant dense<0.000000e+00> : vector<8x128xf32>
    %342 = tpu.matmul %341, %260, %cst_101 {dimension_numbers = #tpu.dot_dimension_numbers<[1], [0], [0], [1], [0, 0, 1, 1], [], []>} : vector<8x32xbf16>, vector<32x128xbf16>, vector<8x128xf32> -> vector<8x128xf32>
    %343 = arith.addf %340, %342 : vector<8x128xf32>
    %344 = vector.extract_strided_slice %343 {offsets = [0, 0], sizes = [8, 96], strides = [1, 1]} : vector<8x128xf32> to vector<8x96xf32>
    %345 = arith.negf %344 : vector<8x96xf32>
    %346 = math.exp %345 : vector<8x96xf32>
    %cst_102 = arith.constant 1.000000e+00 : f32
    %347 = vector.broadcast %cst_102 : f32 to vector<8x96xf32>
    %348 = arith.addf %347, %346 : vector<8x96xf32>
    %349 = arith.divf %347, %348 : vector<8x96xf32>
    %350 = vector.extract_strided_slice %343 {offsets = [0, 96], sizes = [8, 32], strides = [1, 1]} : vector<8x128xf32> to vector<8x32xf32>
    %351 = math.tanh %350 : vector<8x32xf32>
    %352 = vector.extract_strided_slice %349 {offsets = [0, 0], sizes = [8, 32], strides = [1, 1]} : vector<8x96xf32> to vector<8x32xf32>
    %353 = vector.extract_strided_slice %349 {offsets = [0, 32], sizes = [8, 32], strides = [1, 1]} : vector<8x96xf32> to vector<8x32xf32>
    %354 = vector.extract_strided_slice %349 {offsets = [0, 64], sizes = [8, 32], strides = [1, 1]} : vector<8x96xf32> to vector<8x32xf32>
    %355 = arith.mulf %353, %325 : vector<8x32xf32>
    %356 = arith.mulf %352, %351 : vector<8x32xf32>
    %357 = arith.addf %355, %356 : vector<8x32xf32>
    %358 = math.tanh %357 : vector<8x32xf32>
    %359 = arith.mulf %354, %358 : vector<8x32xf32>
    %360 = arith.truncf %359 : vector<8x32xf32> to vector<8x32xbf16>
    %c0_103 = arith.constant 0 : index
    %361 = arith.index_cast %336 : i32 to index
    %c0_104 = arith.constant 0 : index
    %362 = vector.load %arg8[%c0_103, %361, %c0_104] : memref<1x64x32xbf16, #tpu.memory_space<vmem>>, vector<1x8x32xbf16>
    %363 = vector.shape_cast %362 : vector<1x8x32xbf16> to vector<8x32xbf16>
    %364 = vector.shape_cast %360 : vector<8x32xbf16> to vector<1x8x32xbf16>
    tpu.vector_store %arg8[%c0_103, %361, %c0_104], %364 {strides = array<i32>} : memref<1x64x32xbf16, #tpu.memory_space<vmem>>, vector<1x8x32xbf16>,
    %c8_i32_105 = arith.constant 8 : i32
    %365 = arith.muli %c0_i32_80, %c8_i32_105 : i32
    %c3_i32_106 = arith.constant 3 : i32
    %366 = arith.addi %365, %c3_i32_106 : i32
    %c8_i32_107 = arith.constant 8 : i32
    %367 = arith.muli %366, %c8_i32_107 : i32
    %368 = tpu.assume_multiple %367, 8 : i32
    %369 = arith.index_cast %368 : i32 to index
    %c0_108 = arith.constant 0 : index
    %370 = vector.load %arg11[%369, %c0_108] : memref<64x128xbf16, #tpu.memory_space<vmem>>, vector<8x128xbf16>
    %371 = arith.extf %370 : vector<8x128xbf16> to vector<8x128xf32>
    %372 = arith.addf %371, %263 : vector<8x128xf32>
    %373 = arith.truncf %359 : vector<8x32xf32> to vector<8x32xbf16>
    %cst_109 = arith.constant dense<0.000000e+00> : vector<8x128xf32>
    %374 = tpu.matmul %373, %260, %cst_109 {dimension_numbers = #tpu.dot_dimension_numbers<[1], [0], [0], [1], [0, 0, 1, 1], [], []>} : vector<8x32xbf16>, vector<32x128xbf16>, vector<8x128xf32> -> vector<8x128xf32>
    %375 = arith.addf %372, %374 : vector<8x128xf32>
    %376 = vector.extract_strided_slice %375 {offsets = [0, 0], sizes = [8, 96], strides = [1, 1]} : vector<8x128xf32> to vector<8x96xf32>
    %377 = arith.negf %376 : vector<8x96xf32>
    %378 = math.exp %377 : vector<8x96xf32>
    %cst_110 = arith.constant 1.000000e+00 : f32
    %379 = vector.broadcast %cst_110 : f32 to vector<8x96xf32>
    %380 = arith.addf %379, %378 : vector<8x96xf32>
    %381 = arith.divf %379, %380 : vector<8x96xf32>
    %382 = vector.extract_strided_slice %375 {offsets = [0, 96], sizes = [8, 32], strides = [1, 1]} : vector<8x128xf32> to vector<8x32xf32>
    %383 = math.tanh %382 : vector<8x32xf32>
    %384 = vector.extract_strided_slice %381 {offsets = [0, 0], sizes = [8, 32], strides = [1, 1]} : vector<8x96xf32> to vector<8x32xf32>
    %385 = vector.extract_strided_slice %381 {offsets = [0, 32], sizes = [8, 32], strides = [1, 1]} : vector<8x96xf32> to vector<8x32xf32>
    %386 = vector.extract_strided_slice %381 {offsets = [0, 64], sizes = [8, 32], strides = [1, 1]} : vector<8x96xf32> to vector<8x32xf32>
    %387 = arith.mulf %385, %357 : vector<8x32xf32>
    %388 = arith.mulf %384, %383 : vector<8x32xf32>
    %389 = arith.addf %387, %388 : vector<8x32xf32>
    %390 = math.tanh %389 : vector<8x32xf32>
    %391 = arith.mulf %386, %390 : vector<8x32xf32>
    %392 = arith.truncf %391 : vector<8x32xf32> to vector<8x32xbf16>
    %c0_111 = arith.constant 0 : index
    %393 = arith.index_cast %368 : i32 to index
    %c0_112 = arith.constant 0 : index
    %394 = vector.load %arg8[%c0_111, %393, %c0_112] : memref<1x64x32xbf16, #tpu.memory_space<vmem>>, vector<1x8x32xbf16>
    %395 = vector.shape_cast %394 : vector<1x8x32xbf16> to vector<8x32xbf16>
    %396 = vector.shape_cast %392 : vector<8x32xbf16> to vector<1x8x32xbf16>
    tpu.vector_store %arg8[%c0_111, %393, %c0_112], %396 {strides = array<i32>} : memref<1x64x32xbf16, #tpu.memory_space<vmem>>, vector<1x8x32xbf16>,
    %c8_i32_113 = arith.constant 8 : i32
    %397 = arith.muli %c0_i32_80, %c8_i32_113 : i32
    %c4_i32_114 = arith.constant 4 : i32
    %398 = arith.addi %397, %c4_i32_114 : i32
    %c8_i32_115 = arith.constant 8 : i32
    %399 = arith.muli %398, %c8_i32_115 : i32
    %400 = tpu.assume_multiple %399, 8 : i32
    %401 = arith.index_cast %400 : i32 to index
    %c0_116 = arith.constant 0 : index
    %402 = vector.load %arg11[%401, %c0_116] : memref<64x128xbf16, #tpu.memory_space<vmem>>, vector<8x128xbf16>
    %403 = arith.extf %402 : vector<8x128xbf16> to vector<8x128xf32>
    %404 = arith.addf %403, %263 : vector<8x128xf32>
    %405 = arith.truncf %391 : vector<8x32xf32> to vector<8x32xbf16>
    %cst_117 = arith.constant dense<0.000000e+00> : vector<8x128xf32>
    %406 = tpu.matmul %405, %260, %cst_117 {dimension_numbers = #tpu.dot_dimension_numbers<[1], [0], [0], [1], [0, 0, 1, 1], [], []>} : vector<8x32xbf16>, vector<32x128xbf16>, vector<8x128xf32> -> vector<8x128xf32>
    %407 = arith.addf %404, %406 : vector<8x128xf32>
    %408 = vector.extract_strided_slice %407 {offsets = [0, 0], sizes = [8, 96], strides = [1, 1]} : vector<8x128xf32> to vector<8x96xf32>
    %409 = arith.negf %408 : vector<8x96xf32>
    %410 = math.exp %409 : vector<8x96xf32>
    %cst_118 = arith.constant 1.000000e+00 : f32
    %411 = vector.broadcast %cst_118 : f32 to vector<8x96xf32>
    %412 = arith.addf %411, %410 : vector<8x96xf32>
    %413 = arith.divf %411, %412 : vector<8x96xf32>
    %414 = vector.extract_strided_slice %407 {offsets = [0, 96], sizes = [8, 32], strides = [1, 1]} : vector<8x128xf32> to vector<8x32xf32>
    %415 = math.tanh %414 : vector<8x32xf32>
    %416 = vector.extract_strided_slice %413 {offsets = [0, 0], sizes = [8, 32], strides = [1, 1]} : vector<8x96xf32> to vector<8x32xf32>
    %417 = vector.extract_strided_slice %413 {offsets = [0, 32], sizes = [8, 32], strides = [1, 1]} : vector<8x96xf32> to vector<8x32xf32>
    %418 = vector.extract_strided_slice %413 {offsets = [0, 64], sizes = [8, 32], strides = [1, 1]} : vector<8x96xf32> to vector<8x32xf32>
    %419 = arith.mulf %417, %389 : vector<8x32xf32>
    %420 = arith.mulf %416, %415 : vector<8x32xf32>
    %421 = arith.addf %419, %420 : vector<8x32xf32>
    %422 = math.tanh %421 : vector<8x32xf32>
    %423 = arith.mulf %418, %422 : vector<8x32xf32>
    %424 = arith.truncf %423 : vector<8x32xf32> to vector<8x32xbf16>
    %c0_119 = arith.constant 0 : index
    %425 = arith.index_cast %400 : i32 to index
    %c0_120 = arith.constant 0 : index
    %426 = vector.load %arg8[%c0_119, %425, %c0_120] : memref<1x64x32xbf16, #tpu.memory_space<vmem>>, vector<1x8x32xbf16>
    %427 = vector.shape_cast %426 : vector<1x8x32xbf16> to vector<8x32xbf16>
    %428 = vector.shape_cast %424 : vector<8x32xbf16> to vector<1x8x32xbf16>
    tpu.vector_store %arg8[%c0_119, %425, %c0_120], %428 {strides = array<i32>} : memref<1x64x32xbf16, #tpu.memory_space<vmem>>, vector<1x8x32xbf16>,
    %c8_i32_121 = arith.constant 8 : i32
    %429 = arith.muli %c0_i32_80, %c8_i32_121 : i32
    %c5_i32_122 = arith.constant 5 : i32
    %430 = arith.addi %429, %c5_i32_122 : i32
    %c8_i32_123 = arith.constant 8 : i32
    %431 = arith.muli %430, %c8_i32_123 : i32
    %432 = tpu.assume_multiple %431, 8 : i32
    %433 = arith.index_cast %432 : i32 to index
    %c0_124 = arith.constant 0 : index
    %434 = vector.load %arg11[%433, %c0_124] : memref<64x128xbf16, #tpu.memory_space<vmem>>, vector<8x128xbf16>
    %435 = arith.extf %434 : vector<8x128xbf16> to vector<8x128xf32>
    %436 = arith.addf %435, %263 : vector<8x128xf32>
    %437 = arith.truncf %423 : vector<8x32xf32> to vector<8x32xbf16>
    %cst_125 = arith.constant dense<0.000000e+00> : vector<8x128xf32>
    %438 = tpu.matmul %437, %260, %cst_125 {dimension_numbers = #tpu.dot_dimension_numbers<[1], [0], [0], [1], [0, 0, 1, 1], [], []>} : vector<8x32xbf16>, vector<32x128xbf16>, vector<8x128xf32> -> vector<8x128xf32>
    %439 = arith.addf %436, %438 : vector<8x128xf32>
    %440 = vector.extract_strided_slice %439 {offsets = [0, 0], sizes = [8, 96], strides = [1, 1]} : vector<8x128xf32> to vector<8x96xf32>
    %441 = arith.negf %440 : vector<8x96xf32>
    %442 = math.exp %441 : vector<8x96xf32>
    %cst_126 = arith.constant 1.000000e+00 : f32
    %443 = vector.broadcast %cst_126 : f32 to vector<8x96xf32>
    %444 = arith.addf %443, %442 : vector<8x96xf32>
    %445 = arith.divf %443, %444 : vector<8x96xf32>
    %446 = vector.extract_strided_slice %439 {offsets = [0, 96], sizes = [8, 32], strides = [1, 1]} : vector<8x128xf32> to vector<8x32xf32>
    %447 = math.tanh %446 : vector<8x32xf32>
    %448 = vector.extract_strided_slice %445 {offsets = [0, 0], sizes = [8, 32], strides = [1, 1]} : vector<8x96xf32> to vector<8x32xf32>
    %449 = vector.extract_strided_slice %445 {offsets = [0, 32], sizes = [8, 32], strides = [1, 1]} : vector<8x96xf32> to vector<8x32xf32>
    %450 = vector.extract_strided_slice %445 {offsets = [0, 64], sizes = [8, 32], strides = [1, 1]} : vector<8x96xf32> to vector<8x32xf32>
    %451 = arith.mulf %449, %421 : vector<8x32xf32>
    %452 = arith.mulf %448, %447 : vector<8x32xf32>
    %453 = arith.addf %451, %452 : vector<8x32xf32>
    %454 = math.tanh %453 : vector<8x32xf32>
    %455 = arith.mulf %450, %454 : vector<8x32xf32>
    %456 = arith.truncf %455 : vector<8x32xf32> to vector<8x32xbf16>
    %c0_127 = arith.constant 0 : index
    %457 = arith.index_cast %432 : i32 to index
    %c0_128 = arith.constant 0 : index
    %458 = vector.load %arg8[%c0_127, %457, %c0_128] : memref<1x64x32xbf16, #tpu.memory_space<vmem>>, vector<1x8x32xbf16>
    %459 = vector.shape_cast %458 : vector<1x8x32xbf16> to vector<8x32xbf16>
    %460 = vector.shape_cast %456 : vector<8x32xbf16> to vector<1x8x32xbf16>
    tpu.vector_store %arg8[%c0_127, %457, %c0_128], %460 {strides = array<i32>} : memref<1x64x32xbf16, #tpu.memory_space<vmem>>, vector<1x8x32xbf16>,
    %c8_i32_129 = arith.constant 8 : i32
    %461 = arith.muli %c0_i32_80, %c8_i32_129 : i32
    %c6_i32_130 = arith.constant 6 : i32
    %462 = arith.addi %461, %c6_i32_130 : i32
    %c8_i32_131 = arith.constant 8 : i32
    %463 = arith.muli %462, %c8_i32_131 : i32
    %464 = tpu.assume_multiple %463, 8 : i32
    %465 = arith.index_cast %464 : i32 to index
    %c0_132 = arith.constant 0 : index
    %466 = vector.load %arg11[%465, %c0_132] : memref<64x128xbf16, #tpu.memory_space<vmem>>, vector<8x128xbf16>
    %467 = arith.extf %466 : vector<8x128xbf16> to vector<8x128xf32>
    %468 = arith.addf %467, %263 : vector<8x128xf32>
    %469 = arith.truncf %455 : vector<8x32xf32> to vector<8x32xbf16>
    %cst_133 = arith.constant dense<0.000000e+00> : vector<8x128xf32>
    %470 = tpu.matmul %469, %260, %cst_133 {dimension_numbers = #tpu.dot_dimension_numbers<[1], [0], [0], [1], [0, 0, 1, 1], [], []>} : vector<8x32xbf16>, vector<32x128xbf16>, vector<8x128xf32> -> vector<8x128xf32>
    %471 = arith.addf %468, %470 : vector<8x128xf32>
    %472 = vector.extract_strided_slice %471 {offsets = [0, 0], sizes = [8, 96], strides = [1, 1]} : vector<8x128xf32> to vector<8x96xf32>
    %473 = arith.negf %472 : vector<8x96xf32>
    %474 = math.exp %473 : vector<8x96xf32>
    %cst_134 = arith.constant 1.000000e+00 : f32
    %475 = vector.broadcast %cst_134 : f32 to vector<8x96xf32>
    %476 = arith.addf %475, %474 : vector<8x96xf32>
    %477 = arith.divf %475, %476 : vector<8x96xf32>
    %478 = vector.extract_strided_slice %471 {offsets = [0, 96], sizes = [8, 32], strides = [1, 1]} : vector<8x128xf32> to vector<8x32xf32>
    %479 = math.tanh %478 : vector<8x32xf32>
    %480 = vector.extract_strided_slice %477 {offsets = [0, 0], sizes = [8, 32], strides = [1, 1]} : vector<8x96xf32> to vector<8x32xf32>
    %481 = vector.extract_strided_slice %477 {offsets = [0, 32], sizes = [8, 32], strides = [1, 1]} : vector<8x96xf32> to vector<8x32xf32>
    %482 = vector.extract_strided_slice %477 {offsets = [0, 64], sizes = [8, 32], strides = [1, 1]} : vector<8x96xf32> to vector<8x32xf32>
    %483 = arith.mulf %481, %453 : vector<8x32xf32>
    %484 = arith.mulf %480, %479 : vector<8x32xf32>
    %485 = arith.addf %483, %484 : vector<8x32xf32>
    %486 = math.tanh %485 : vector<8x32xf32>
    %487 = arith.mulf %482, %486 : vector<8x32xf32>
    %488 = arith.truncf %487 : vector<8x32xf32> to vector<8x32xbf16>
    %c0_135 = arith.constant 0 : index
    %489 = arith.index_cast %464 : i32 to index
    %c0_136 = arith.constant 0 : index
    %490 = vector.load %arg8[%c0_135, %489, %c0_136] : memref<1x64x32xbf16, #tpu.memory_space<vmem>>, vector<1x8x32xbf16>
    %491 = vector.shape_cast %490 : vector<1x8x32xbf16> to vector<8x32xbf16>
    %492 = vector.shape_cast %488 : vector<8x32xbf16> to vector<1x8x32xbf16>
    tpu.vector_store %arg8[%c0_135, %489, %c0_136], %492 {strides = array<i32>} : memref<1x64x32xbf16, #tpu.memory_space<vmem>>, vector<1x8x32xbf16>,
    %c8_i32_137 = arith.constant 8 : i32
    %493 = arith.muli %c0_i32_80, %c8_i32_137 : i32
    %c7_i32_138 = arith.constant 7 : i32
    %494 = arith.addi %493, %c7_i32_138 : i32
    %c8_i32_139 = arith.constant 8 : i32
    %495 = arith.muli %494, %c8_i32_139 : i32
    %496 = tpu.assume_multiple %495, 8 : i32
    %497 = arith.index_cast %496 : i32 to index
    %c0_140 = arith.constant 0 : index
    %498 = vector.load %arg11[%497, %c0_140] : memref<64x128xbf16, #tpu.memory_space<vmem>>, vector<8x128xbf16>
    %499 = arith.extf %498 : vector<8x128xbf16> to vector<8x128xf32>
    %500 = arith.addf %499, %263 : vector<8x128xf32>
    %501 = arith.truncf %487 : vector<8x32xf32> to vector<8x32xbf16>
    %cst_141 = arith.constant dense<0.000000e+00> : vector<8x128xf32>
    %502 = tpu.matmul %501, %260, %cst_141 {dimension_numbers = #tpu.dot_dimension_numbers<[1], [0], [0], [1], [0, 0, 1, 1], [], []>} : vector<8x32xbf16>, vector<32x128xbf16>, vector<8x128xf32> -> vector<8x128xf32>
    %503 = arith.addf %500, %502 : vector<8x128xf32>
    %504 = vector.extract_strided_slice %503 {offsets = [0, 0], sizes = [8, 96], strides = [1, 1]} : vector<8x128xf32> to vector<8x96xf32>
    %505 = arith.negf %504 : vector<8x96xf32>
    %506 = math.exp %505 : vector<8x96xf32>
    %cst_142 = arith.constant 1.000000e+00 : f32
    %507 = vector.broadcast %cst_142 : f32 to vector<8x96xf32>
    %508 = arith.addf %507, %506 : vector<8x96xf32>
    %509 = arith.divf %507, %508 : vector<8x96xf32>
    %510 = vector.extract_strided_slice %503 {offsets = [0, 96], sizes = [8, 32], strides = [1, 1]} : vector<8x128xf32> to vector<8x32xf32>
    %511 = math.tanh %510 : vector<8x32xf32>
    %512 = vector.extract_strided_slice %509 {offsets = [0, 0], sizes = [8, 32], strides = [1, 1]} : vector<8x96xf32> to vector<8x32xf32>
    %513 = vector.extract_strided_slice %509 {offsets = [0, 32], sizes = [8, 32], strides = [1, 1]} : vector<8x96xf32> to vector<8x32xf32>
    %514 = vector.extract_strided_slice %509 {offsets = [0, 64], sizes = [8, 32], strides = [1, 1]} : vector<8x96xf32> to vector<8x32xf32>
    %515 = arith.mulf %513, %485 : vector<8x32xf32>
    %516 = arith.mulf %512, %511 : vector<8x32xf32>
    %517 = arith.addf %515, %516 : vector<8x32xf32>
    %518 = math.tanh %517 : vector<8x32xf32>
    %519 = arith.mulf %514, %518 : vector<8x32xf32>
    %520 = arith.truncf %519 : vector<8x32xf32> to vector<8x32xbf16>
    %c0_143 = arith.constant 0 : index
    %521 = arith.index_cast %496 : i32 to index
    %c0_144 = arith.constant 0 : index
    %522 = vector.load %arg8[%c0_143, %521, %c0_144] : memref<1x64x32xbf16, #tpu.memory_space<vmem>>, vector<1x8x32xbf16>
    %523 = vector.shape_cast %522 : vector<1x8x32xbf16> to vector<8x32xbf16>
    %524 = vector.shape_cast %520 : vector<8x32xbf16> to vector<1x8x32xbf16>
    tpu.vector_store %arg8[%c0_143, %521, %c0_144], %524 {strides = array<i32>} : memref<1x64x32xbf16, #tpu.memory_space<vmem>>, vector<1x8x32xbf16>,
    %c1_i32_145 = arith.constant 1 : i32
    %c1 = arith.constant 1 : index
    %c0_146 = arith.constant 0 : index
    %c0_147 = arith.constant 0 : index
    %525 = vector.load %arg9[%c1, %c0_146, %c0_147] : memref<2x8x32xf32, #tpu.memory_space<vmem>>, vector<1x8x32xf32>
    %526 = vector.shape_cast %525 : vector<1x8x32xf32> to vector<8x32xf32>
    %527 = vector.shape_cast %519 : vector<8x32xf32> to vector<1x8x32xf32>
    tpu.vector_store %arg9[%c1, %c0_146, %c0_147], %527 {strides = array<i32>} : memref<2x8x32xf32, #tpu.memory_space<vmem>>, vector<1x8x32xf32>,
    %c1_148 = arith.constant 1 : index
    %c0_149 = arith.constant 0 : index
    %c0_150 = arith.constant 0 : index
    %528 = vector.load %arg10[%c1_148, %c0_149, %c0_150] : memref<2x8x32xf32, #tpu.memory_space<vmem>>, vector<1x8x32xf32>
    %529 = vector.shape_cast %528 : vector<1x8x32xf32> to vector<8x32xf32>
    %530 = vector.shape_cast %517 : vector<8x32xf32> to vector<1x8x32xf32>
    tpu.vector_store %arg10[%c1_148, %c0_149, %c0_150], %530 {strides = array<i32>} : memref<2x8x32xf32, #tpu.memory_space<vmem>>, vector<1x8x32xf32>,
    return
  }
  func.func @transform_0(%arg0: i32) -> (i32, i32, i32) {
    %c0_i32 = arith.constant 0 : i32
    %c0_i32_0 = arith.constant 0 : i32
    %c0_i32_1 = arith.constant 0 : i32
    return %arg0, %c0_i32, %c0_i32_0 : i32, i32, i32
  }
  func.func @transform_1(%arg0: i32) -> (i32, i32) {
    %c0_i32 = arith.constant 0 : i32
    %c0_i32_0 = arith.constant 0 : i32
    %c0_i32_1 = arith.constant 0 : i32
    return %c0_i32, %c0_i32_0 : i32, i32
  }
  func.func @transform_2(%arg0: i32) -> (i32, i32) {
    %c0_i32 = arith.constant 0 : i32
    %c0_i32_0 = arith.constant 0 : i32
    %c0_i32_1 = arith.constant 0 : i32
    return %c0_i32, %c0_i32_0 : i32, i32
  }
  func.func @transform_3(%arg0: i32) -> (i32, i32) {
    %c0_i32 = arith.constant 0 : i32
    %c0_i32_0 = arith.constant 0 : i32
    %c0_i32_1 = arith.constant 0 : i32
    return %c0_i32, %c0_i32_0 : i32, i32
  }
  func.func @transform_4(%arg0: i32) -> (i32, i32) {
    %c0_i32 = arith.constant 0 : i32
    %c0_i32_0 = arith.constant 0 : i32
    %c0_i32_1 = arith.constant 0 : i32
    return %c0_i32, %c0_i32_0 : i32, i32
  }
  func.func @transform_5(%arg0: i32) -> (i32, i32) {
    %c0_i32 = arith.constant 0 : i32
    %c0_i32_0 = arith.constant 0 : i32
    %c0_i32_1 = arith.constant 0 : i32
    return %c0_i32, %c0_i32_0 : i32, i32
  }
  func.func @transform_6(%arg0: i32) -> (i32, i32) {
    %c0_i32 = arith.constant 0 : i32
    %c0_i32_0 = arith.constant 0 : i32
    %c0_i32_1 = arith.constant 0 : i32
    return %c0_i32, %c0_i32_0 : i32, i32
  }
  func.func @transform_7(%arg0: i32) -> (i32, i32, i32) {
    %c0_i32 = arith.constant 0 : i32
    %c0_i32_0 = arith.constant 0 : i32
    %c0_i32_1 = arith.constant 0 : i32
    return %arg0, %c0_i32, %c0_i32_0 : i32, i32, i32
  }
  func.func @transform_8(%arg0: i32) -> (i32, i32, i32) {
    %c0_i32 = arith.constant 0 : i32
    %c0_i32_0 = arith.constant 0 : i32
    %c0_i32_1 = arith.constant 0 : i32
    return %c0_i32, %arg0, %c0_i32_0 : i32, i32, i32
  }
  func.func @transform_9(%arg0: i32) -> (i32, i32, i32) {
    %c0_i32 = arith.constant 0 : i32
    %c0_i32_0 = arith.constant 0 : i32
    %c0_i32_1 = arith.constant 0 : i32
    return %c0_i32, %arg0, %c0_i32_0 : i32, i32, i32
  }
}

</mosaic_0001>

<llo_original>
// kernel: encoder_forward.3
$region0: #{encoder_forward.3}
  #allocation0 [shape = 'u32[]', space=smem, size = 0x4, offset = 0x4, fixed_abs, tag = 'smem constant byte address 0x4 - core index']
  #allocation1 [shape = 'u32[144,128]{1,0:T(1,128)}', space=vmem, size = 0x12000, scoped, tag = 'internal scratch']
  %s0 = inlined_call_operand.vmem [shape: bf16[16,8,32], index: 0, kind: input, shape index: {}, may-alias: {0,1}]
  %s1 = inlined_call_operand.vmem [shape: bf16[16,8,32], index: 1, kind: input, shape index: {}, may-alias: {0,1}]
  %s2 = inlined_call_operand.vmem [shape: f32[16,8,32], index: 2, kind: output, shape index: {}]
  %s3 = sld [smem:[#allocation0]]
  $region41: #{encoder_forward.3} parent=0
    _
  %s5 = ssub.s32 1, %s3
  %s6 = scalar_select 0, %s5, %s3
  loop: start=0, step=1, limit=18
  $region2: #{encoder_forward.3} parent=0 // loop_pre_header
    _
  $region3: #{encoder_forward.3} parent=0 // loop_header
    %s8 = sphi 0, %s12
    %p9 = scmp.ge.s32.totalorder %s8, 18
    %s15 = sphi 0, %s27
    %s16 = sphi 0, %s23
    %s17 = sphi 0, %s15
    %s18 = sphi 0, %s16
    %s19 = sphi 0, %s17
    %s20 = sphi 0, %s18
    %s32 = sphi 0, %s34
    %s35 = sphi 0, %s32
    %s36 = sphi 0, %s35
    %s52 = sphi 0, %s36
    %s58 = sphi 0, %s60
    %s61 = sphi 0, %s58
    %s62 = sphi 0, %s61
    %s78 = sphi 0, %s62
    %s86 = sphi 0, %s88
    %s89 = sphi 0, %s86
    %s90 = sphi 0, %s89
    %s106 = sphi 0, %s90
  $region4: #{encoder_forward.3} parent=0 // loop_header_branch
    %11 = sbr.rel (%p9) target = $region8
  $region5: #{encoder_forward.3} parent=0 // loop_body
    %s13 = ssub.s32 %s8, 1
    %s14 = ssub.s32 %s8, 2
    %s21 = sadd.s32 1, %s16
    %p22 = scmp.ge.s32.totalorder %s21, 1
    %s23 = scalar_select %p22, 0, %s21
    %s24 = sadd.s32 1, %s15
    %s25 = scalar_select %p22, %s24, %s15
    %p26 = scmp.ge.s32.totalorder %s25, 16
    %s27 = scalar_select %p26, 0, %s25
    %s28 = ssub.s32 %s15, %s27
    %s29 = ssub.s32 %s16, %s23
    %s30 = sor.u32 %s28, %s29
    %p31 = scmp.eq.s32.totalorder %s30, 0
    %s33 = sadd.s32 %s32, 1
    %s34 = scalar_select %p31, %s32, %s33
    %p37 = pneg %p31
    %p38 = scmp.eq.s32.totalorder %s8, 15
    %p39 = por %p37, %p38
    %p40 = scmp.ne.s32.totalorder %s32, %s35
    %p41 = scmp.eq.s32.totalorder %s8, 0
    %p42 = por %p40, %p41
    %p43 = scmp.ne.s32.totalorder %s32, %s35
    %p44 = scmp.eq.s32.totalorder %s13, 15
    %p45 = por %p43, %p44
    %p46 = scmp.ne.s32.totalorder %s35, %s36
    %p47 = scmp.eq.s32.totalorder %s13, 0
    %p48 = por %p46, %p47
    %p49 = scmp.ne.s32.totalorder %s35, %s36
    %p50 = scmp.eq.s32.totalorder %s14, 15
    %p51 = por %p49, %p50
    %p53 = scmp.ne.s32.totalorder %s36, %s52
    %p54 = scmp.eq.s32.totalorder %s14, 0
    %p55 = por %p53, %p54
    %s56 = ssub.s32 %s15, %s27
    %p57 = scmp.eq.s32.totalorder %s56, 0
    %s59 = sadd.s32 %s58, 1
    %s60 = scalar_select %p57, %s58, %s59
    %p63 = pneg %p57
    %p64 = scmp.eq.s32.totalorder %s8, 15
    %p65 = por %p63, %p64
    %p66 = scmp.ne.s32.totalorder %s58, %s61
    %p67 = scmp.eq.s32.totalorder %s8, 0
    %p68 = por %p66, %p67
    %p69 = scmp.ne.s32.totalorder %s58, %s61
    %p70 = scmp.eq.s32.totalorder %s13, 15
    %p71 = por %p69, %p70
    %p72 = scmp.ne.s32.totalorder %s61, %s62
    %p73 = scmp.eq.s32.totalorder %s13, 0
    %p74 = por %p72, %p73
    %p75 = scmp.ne.s32.totalorder %s61, %s62
    %p76 = scmp.eq.s32.totalorder %s14, 15
    %p77 = por %p75, %p76
    %p79 = scmp.ne.s32.totalorder %s62, %s78
    %p80 = scmp.eq.s32.totalorder %s14, 0
    %p81 = por %p79, %p80
    %s82 = ssub.s32 %s15, %s27
    %s83 = ssub.s32 %s16, %s23
    %s84 = sor.u32 %s82, %s83
    %p85 = scmp.eq.s32.totalorder %s84, 0
    %s87 = sadd.s32 %s86, 1
    %s88 = scalar_select %p85, %s86, %s87
    %p91 = pneg %p85
    %p92 = scmp.eq.s32.totalorder %s8, 15
    %p93 = por %p91, %p92
    %p94 = scmp.ne.s32.totalorder %s86, %s89
    %p95 = scmp.eq.s32.totalorder %s8, 0
    %p96 = por %p94, %p95
    %p97 = scmp.ne.s32.totalorder %s86, %s89
    %p98 = scmp.eq.s32.totalorder %s13, 15
    %p99 = por %p97, %p98
    %p100 = scmp.ne.s32.totalorder %s89, %s90
    %p101 = scmp.eq.s32.totalorder %s13, 0
    %p102 = por %p100, %p101
    %p103 = scmp.ne.s32.totalorder %s89, %s90
    %p104 = scmp.eq.s32.totalorder %s14, 15
    %p105 = por %p103, %p104
    %p107 = scmp.ne.s32.totalorder %s90, %s106
    %p108 = scmp.eq.s32.totalorder %s14, 0
    %p109 = por %p107, %p108
    %p110 = scmp.le.s32.totalorder 1, %s8
    %p111 = scmp.lt.s32.totalorder %s8, 17
    %p112 = pnand %p110, %p111
    %p113 = pneg %p112
    // Predicated region
    $region9: #{encoder_forward.3} parent=5 // pred_check
      _
    $region10: #{encoder_forward.3} parent=5 // pred_check_branch
      %115 = sbr.rel (%p112) target = $region12
    $region11: #{encoder_forward.3} parent=5 // pred_region
      %s116 = ssub.s32 %s8, 1
    $region12: #{encoder_forward.3} parent=5 // pred_fallthru
      _
    %p117 = scmp.lt.s32.totalorder %s8, 16
    // Predicated region
    $region13: #{encoder_forward.3} parent=5 // pred_check
      %p118 = pneg %p117
    $region14: #{encoder_forward.3} parent=5 // pred_check_branch
      %120 = sbr.rel (%p118) target = $region16
    $region15: #{encoder_forward.3} parent=5 // pred_region
      // Predicated region
      $region17: #{encoder_forward.3} parent=15 // pred_check
        %p121 = pneg %p42
      $region18: #{encoder_forward.3} parent=15 // pred_check_branch
        %123 = sbr.rel (%p121) target = $region20
      $region19: #{encoder_forward.3} parent=15 // pred_region
        %p124 = scmp.lt.s32.totalorder %s15, 15
        %s125 = scalar_select %p124, %s15, 15
        %p126 = scmp.lt.s32.totalorder %s16, 0
        %s127 = scalar_select %p126, %s16, 0
        %s128 = sadd.s32 %s127, %s125
        %s129 = smul.addr %s128, 4
        %s130 = scalar_lea.vmem %s0, %s129
      $region20: #{encoder_forward.3} parent=15 // pred_fallthru
        _
      // Predicated region
      $region21: #{encoder_forward.3} parent=15 // pred_check
        %p131 = pneg %p68
      $region22: #{encoder_forward.3} parent=15 // pred_check_branch
        %133 = sbr.rel (%p131) target = $region24
      $region23: #{encoder_forward.3} parent=15 // pred_region
        %p134 = scmp.lt.s32.totalorder %s15, 15
        %s135 = scalar_select %p134, %s15, 15
        %s136 = smul.addr %s135, 4
        %s137 = scalar_lea.vmem %s1, %s136
      $region24: #{encoder_forward.3} parent=15 // pred_fallthru
        _
    $region16: #{encoder_forward.3} parent=5 // pred_fallthru
      _
    %p138 = scmp.le.s32.totalorder 1, %s8
    %p139 = scmp.lt.s32.totalorder %s8, 17
    %p140 = pnand %p138, %p139
    %p141 = pneg %p140
    // Predicated region
    $region25: #{encoder_forward.3} parent=5 // pred_check
      _
    $region26: #{encoder_forward.3} parent=5 // pred_check_branch
      %143 = sbr.rel (%p140) target = $region28
    $region27: #{encoder_forward.3} parent=5 // pred_region
      %s144 = ssub.s32 %s8, 1
      %p145 = scmp.lt.s32.totalorder %s17, 15
      %s146 = scalar_select %p145, %s17, 15
      %p147 = scmp.lt.s32.totalorder %s18, 0
      %s148 = scalar_select %p147, %s18, 0
      %s149 = sadd.s32 %s148, %s146
      %s150 = smul.addr %s149, 4
      %s151 = scalar_lea.vmem %s0, %s150
      %p152 = pneg %p48
      %p153 = pneg %p45
      %p154 = scmp.lt.s32.totalorder %s17, 15
      %s155 = scalar_select %p154, %s17, 15
      %s156 = smul.addr %s155, 4
      %s157 = scalar_lea.vmem %s1, %s156
      %p158 = pneg %p74
      %p159 = pneg %p71
      %p160 = pneg %p102
      %p161 = pneg %p99
      %p162 = scmp.lt.s32.totalorder %s17, 15
      %s163 = scalar_select %p162, %s17, 15
      %p164 = scmp.lt.s32.totalorder %s18, 0
      %s165 = scalar_select %p164, %s18, 0
      %s166 = sadd.s32 %s165, %s163
      %s167 = smul.addr %s166, 8
      %s168 = scalar_lea.vmem %s2, %s167
      %p169 = scmp.lt.s32.totalorder %s17, 15
      %s170 = scalar_select %p169, %s17, 15
      %p171 = scmp.lt.s32.totalorder %s18, 0
      %s172 = scalar_select %p171, %s18, 0
      %s173 = sadd.s32 %s172, %s170
      %s174 = smul.addr %s173, 4
      %s175 = scalar_lea.vmem %s0, %s174
      %p176 = scmp.lt.s32.totalorder %s17, 15
      %s177 = scalar_select %p176, %s17, 15
      %s178 = smul.addr %s177, 4
      %s179 = scalar_lea.vmem %s1, %s178
      %p180 = scmp.lt.s32.totalorder %s17, 15
      %s181 = scalar_select %p180, %s17, 15
      %p182 = scmp.lt.s32.totalorder %s18, 0
      %s183 = scalar_select %p182, %s18, 0
      %s184 = sadd.s32 %s183, %s181
      %s185 = smul.addr %s184, 8
      %s186 = scalar_lea.vmem %s2, %s185
      %v188 = vld [vmem:[%s175] sm:$0xf]
      %v189 = vld [vmem:[%s179] sm:$0xf]
      %vm190 = vcmask 261120
      %v192 = vsel %vm190, %v188, 0
      %v195 = vsel %vm190, %v189, 0
      %197 = vmatprep.subr.bf16.mxu0 0
      %198 = vmatpush1.bf16.xpose.msra.mxu0 0
      %199 = vmatprep.subr.bf16.mxu0 0
      %200 = vmatpush1.bf16.xpose.msra.mxu0 0
      %201 = vmatprep.subr.bf16.mxu0 0
      %202 = vmatpush1.bf16.xpose.msra.mxu0 0
      %203 = vmatprep.subr.bf16.mxu0 0
      %204 = vmatpush1.bf16.xpose.msra.mxu0 0
      %205 = vmatprep.subr.bf16.mxu0 0
      %206 = vmatpush1.bf16.xpose.msra.mxu0 0
      %207 = vmatprep.subr.bf16.mxu0 0
      %208 = vmatpush1.bf16.xpose.msra.mxu0 0
      %209 = vmatprep.subr.bf16.mxu0 0
      %210 = vmatpush1.bf16.xpose.msra.mxu0 0
      %211 = vmatprep.subr.bf16.mxu0 0
      %212 = vmatpush1.bf16.xpose.msra.mxu0 %v195
      %213 = vmatprep.subr.bf16.mxu0 0
      %214 = vmatpush2.bf16.xpose.msra.mxu0 0
      %215 = vmatprep.subr.bf16.mxu0 0
      %216 = vmatpush2.bf16.xpose.msra.mxu0 0
      %217 = vmatprep.subr.bf16.mxu0 0
      %218 = vmatpush2.bf16.xpose.msra.mxu0 0
      %219 = vmatprep.subr.bf16.mxu0 0
      %220 = vmatpush2.bf16.xpose.msra.mxu0 0
      %221 = vmatprep.subr.bf16.mxu0 0
      %222 = vmatpush2.bf16.xpose.msra.mxu0 0
      %223 = vmatprep.subr.bf16.mxu0 0
      %224 = vmatpush2.bf16.xpose.msra.mxu0 0
      %225 = vmatprep.subr.bf16.mxu0 0
      %226 = vmatpush2.bf16.xpose.msra.mxu0 0
      %227 = vmatprep.subr.bf16.mxu0 0
      %228 = vmatpush2.bf16.xpose.msra.mxu0 0
      %229 = vmatprep.mubr.bf16.mxu0 0
      %230 = vmatmul.mubr.bf16.gmra.mxu0 %v192
      %v231 = vpop.f32.mrf.mxu0
      %v232 = vadd.f32 0.0, %v231
      %v233 = vpop.f32.mrf.mxu0
      %v234 = vpop.f32.mrf.mxu0
      %v235 = vpop.f32.mrf.mxu0
      %236 = vdwg.mxu0
      %vm237 = vcmask 64512
      %v238 = vsel %vm237, %v232, -inf
      %239 = vmax.xlane.f32.xlu0 %v238
      %v240 = vpop.xlane.xlu0 %239
      %v241 = vsub.f32 %v232, %v240
      %v242 = vmul.f32 %v241, 1.442695
      %v243 = vpow.pop %v242
      %v244 = vsel %vm237, %v243, 0.0
      %245 = vadd.xlane.f32.xlu0 %v244
      %v246 = vpop.xlane.xlu0 %245
      %v247 = vrcp.pop %v246
      %v248 = vmul.f32 %v243, %v247
      %v249 = vpack.c.bf16 %v248, %v248
      %v251 = vsel %vm237, %v249, 0
      %vm253 = vcmask 1043456
      %v254 = vsel %vm253, %v189, 0
      %256 = vmatprep.subr.bf16.mxu0 0
      %257 = vmatpush1.bf16.msra.mxu0 0
      %258 = vmatprep.subr.bf16.mxu0 0
      %259 = vmatpush1.bf16.msra.mxu0 0
      %260 = vmatprep.subr.bf16.mxu0 0
      %261 = vmatpush1.bf16.msra.mxu0 0
      %262 = vmatprep.subr.bf16.mxu0 0
      %263 = vmatpush1.bf16.msra.mxu0 0
      %264 = vmatprep.subr.bf16.mxu0 0
      %265 = vmatpush1.bf16.msra.mxu0 0
      %266 = vmatprep.subr.bf16.mxu0 0
      %267 = vmatpush1.bf16.msra.mxu0 0
      %268 = vmatprep.subr.bf16.mxu0 0
      %269 = vmatpush1.bf16.msra.mxu0 0
      %270 = vmatprep.subr.bf16.mxu0 0
      %271 = vmatpush1.bf16.msra.mxu0 %v254
      %272 = vmatprep.subr.bf16.mxu0 0
      %273 = vmatpush2.bf16.msra.mxu0 0
      %274 = vmatprep.subr.bf16.mxu0 0
      %275 = vmatpush2.bf16.msra.mxu0 0
      %276 = vmatprep.subr.bf16.mxu0 0
      %277 = vmatpush2.bf16.msra.mxu0 0
      %278 = vmatprep.subr.bf16.mxu0 0
      %279 = vmatpush2.bf16.msra.mxu0 0
      %280 = vmatprep.subr.bf16.mxu0 0
      %281 = vmatpush2.bf16.msra.mxu0 0
      %282 = vmatprep.subr.bf16.mxu0 0
      %283 = vmatpush2.bf16.msra.mxu0 0
      %284 = vmatprep.subr.bf16.mxu0 0
      %285 = vmatpush2.bf16.msra.mxu0 0
      %286 = vmatprep.subr.bf16.mxu0 0
      %287 = vmatpush2.bf16.msra.mxu0 0
      %288 = vmatprep.mubr.bf16.mxu0 0
      %289 = vmatmul.mubr.bf16.gmra.mxu0 %v251
      %v290 = vpop.f32.mrf.mxu0
      %v291 = vadd.f32 0.0, %v290
      %v292 = vpop.f32.mrf.mxu0
      %v293 = vpop.f32.mrf.mxu0
      %v294 = vpop.f32.mrf.mxu0
      %295 = vdwg.mxu0
      %296 = vst.msk [vmem:[%s186] sm:$0xff] %vm190, %v291
      %p297 = scmp.lt.s32.totalorder %s17, 15
      %s298 = scalar_select %p297, %s17, 15
      %p299 = scmp.lt.s32.totalorder %s18, 0
      %s300 = scalar_select %p299, %s18, 0
      %s301 = sadd.s32 %s300, %s298
      %s302 = smul.addr %s301, 8
      %s303 = scalar_lea.vmem %s2, %s302
      // Predicated region
      $region29: #{encoder_forward.3} parent=27 // pred_check
        %p304 = pneg %p99
      $region30: #{encoder_forward.3} parent=27 // pred_check_branch
        %306 = sbr.rel (%p304) target = $region32
      $region31: #{encoder_forward.3} parent=27 // pred_region
        _
      $region32: #{encoder_forward.3} parent=27 // pred_fallthru
        _
    $region28: #{encoder_forward.3} parent=5 // pred_fallthru
      _
    %p307 = scmp.le.s32.totalorder 2, %s8
    // Predicated region
    $region33: #{encoder_forward.3} parent=5 // pred_check
      %p308 = pneg %p307
    $region34: #{encoder_forward.3} parent=5 // pred_check_branch
      %310 = sbr.rel (%p308) target = $region36
    $region35: #{encoder_forward.3} parent=5 // pred_region
      %s311 = ssub.s32 %s8, 2
      // Predicated region
      $region37: #{encoder_forward.3} parent=35 // pred_check
        %p312 = pneg %p105
      $region38: #{encoder_forward.3} parent=35 // pred_check_branch
        %314 = sbr.rel (%p312) target = $region40
      $region39: #{encoder_forward.3} parent=35 // pred_region
        %p315 = scmp.lt.s32.totalorder %s19, 15
        %s316 = scalar_select %p315, %s19, 15
        %p317 = scmp.lt.s32.totalorder %s20, 0
        %s318 = scalar_select %p317, %s20, 0
        %s319 = sadd.s32 %s318, %s316
        %s320 = smul.addr %s319, 8
        %s321 = scalar_lea.vmem %s2, %s320
      $region40: #{encoder_forward.3} parent=35 // pred_fallthru
        _
    $region36: #{encoder_forward.3} parent=5 // pred_fallthru
      _
  $region6: #{encoder_forward.3} parent=0 // loop_footer
    %s12 = sadd.s32 1, %s8
  $region7: #{encoder_forward.3} parent=0 // loop_footer_branch
    %7 = sbr.rel target = $region3
  $region8: #{encoder_forward.3} parent=0 // loop_exit
    _

// kernel: encoder_forward.2
$region0: #{encoder_forward.2}
  #allocation0 [shape = 'u32[]', space=smem, size = 0x4, offset = 0x4, fixed_abs, tag = 'smem constant byte address 0x4 - core index']
  #allocation1 [shape = 'u32[144,128]{1,0:T(1,128)}', space=vmem, size = 0x12000, scoped, tag = 'internal scratch']
  #allocation2 [shape = 'bf16[64,128]{1,0:T(8,128)(2,1)}', space=vmem, size = 0x4000, scoped, tag = 'scratch operand']
  #allocation3 [shape = 'bf16[64,32]{1,0:T(8,128)(2,1)}', space=vmem, size = 0x4000, scoped, tag = 'scratch operand']
  %s0 = inlined_call_operand.vmem [shape: bf16[2,64,32], index: 0, kind: input, shape index: {}]
  %s1 = inlined_call_operand.vmem [shape: bf16[32,128], index: 1, kind: input, shape index: {}]
  %s2 = inlined_call_operand.vmem [shape: bf16[32,128], index: 2, kind: input, shape index: {}]
  %s3 = inlined_call_operand.vmem [shape: f32[1,128], index: 3, kind: input, shape index: {}]
  %s4 = inlined_call_operand.vmem [shape: bf16[32,128], index: 4, kind: input, shape index: {}]
  %s5 = inlined_call_operand.vmem [shape: bf16[32,128], index: 5, kind: input, shape index: {}]
  %s6 = inlined_call_operand.vmem [shape: f32[1,128], index: 6, kind: input, shape index: {}]
  %s7 = inlined_call_operand.vmem [shape: bf16[2,64,32], index: 7, kind: output, shape index: {0}]
  %s8 = inlined_call_operand.hbm [shape: f32[2,16,32], index: 8, kind: output, shape index: {1}]
  %s9 = inlined_call_operand.hbm [shape: f32[2,16,32], index: 9, kind: output, shape index: {2}]
  %10 = xla_tuple %s7, %s8, %s9
  %s11 = sld [smem:[#allocation0]]
  $region77: #{encoder_forward.2} parent=0
    _
  %s13 = ssub.s32 1, %s11
  %s14 = scalar_select 0, %s13, %s11
  $region1: #{encoder_forward.2} parent=0
    #allocation4 [shape = 'u8[16384]{0}', space=vmem, size = 0x4000, scoped, tag = 'output window, operand 1']
    #allocation5 [shape = 's32[2]{0}', space=sflag, size = 0x8, scoped, tag = 'scoped memory for encoder_forward.2']
    #allocation6 [shape = 'u8[16384]{0}', space=vmem, size = 0x4000, scoped, tag = 'output window, operand 2']
    #allocation7 [shape = 's32[2]{0}', space=sflag, size = 0x8, scoped, tag = 'scoped memory for encoder_forward.2']
    %15 = vsyncpa [#allocation5], 0
    %s16 = scalar_lea.sflag [#allocation5], 1
    %17 = vsyncpa %s16, 0
    %18 = vsyncpa [#allocation7], 0
    %s19 = scalar_lea.sflag [#allocation7], 1
    %20 = vsyncpa %s19, 0
    loop: start=0, step=1, limit=4
    $region2: #{encoder_forward.2} parent=1 // loop_pre_header
      _
    $region3: #{encoder_forward.2} parent=1 // loop_header
      %s22 = sphi 0, %s26
      %p23 = scmp.ge.s32.totalorder %s22, 4
      %s32 = sphi 0, %s34
      %s35 = sphi 0, %s32
      %s36 = sphi 0, %s35
      %s52 = sphi 0, %s36
      %s56 = sphi 0, %s56
      %s58 = sphi 0, %s56
      %s59 = sphi 0, %s58
      %s73 = sphi 0, %s59
      %s77 = sphi 0, %s77
      %s79 = sphi 0, %s77
      %s80 = sphi 0, %s79
      %s94 = sphi 0, %s80
      %s98 = sphi 0, %s98
      %s100 = sphi 0, %s98
      %s101 = sphi 0, %s100
      %s115 = sphi 0, %s101
      %s119 = sphi 0, %s119
      %s121 = sphi 0, %s119
      %s122 = sphi 0, %s121
      %s136 = sphi 0, %s122
      %s140 = sphi 0, %s140
      %s142 = sphi 0, %s140
      %s143 = sphi 0, %s142
      %s157 = sphi 0, %s143
      %s161 = sphi 0, %s161
      %s163 = sphi 0, %s161
      %s164 = sphi 0, %s163
      %s178 = sphi 0, %s164
      %s184 = sphi 0, %s186
      %s187 = sphi 0, %s184
      %s188 = sphi 0, %s187
      %s204 = sphi 0, %s188
      %s210 = sphi 0, %s212
      %s213 = sphi 0, %s210
      %s214 = sphi 0, %s213
      %s230 = sphi 0, %s214
      %s236 = sphi 0, %s238
      %s239 = sphi 0, %s236
      %s240 = sphi 0, %s239
      %s256 = sphi 0, %s240
    $region4: #{encoder_forward.2} parent=1 // loop_header_branch
      %25 = sbr.rel (%p23) target = $region8
    $region5: #{encoder_forward.2} parent=1 // loop_body
      %s27 = ssub.s32 %s22, 1
      %s28 = ssub.s32 %s22, 2
      %s29 = sadd.s32 %s22, 1
      %s30 = ssub.s32 %s22, %s29
      %p31 = scmp.eq.s32.totalorder %s30, 0
      %s33 = sadd.s32 %s32, 1
      %s34 = scalar_select %p31, %s32, %s33
      %p37 = pneg %p31
      %p38 = scmp.eq.s32.totalorder %s22, 1
      %p39 = por %p37, %p38
      %p40 = scmp.ne.s32.totalorder %s32, %s35
      %p41 = scmp.eq.s32.totalorder %s22, 0
      %p42 = por %p40, %p41
      %p43 = scmp.ne.s32.totalorder %s32, %s35
      %p44 = scmp.eq.s32.totalorder %s27, 1
      %p45 = por %p43, %p44
      %p46 = scmp.ne.s32.totalorder %s35, %s36
      %p47 = scmp.eq.s32.totalorder %s27, 0
      %p48 = por %p46, %p47
      %p49 = scmp.ne.s32.totalorder %s35, %s36
      %p50 = scmp.eq.s32.totalorder %s28, 1
      %p51 = por %p49, %p50
      %p53 = scmp.ne.s32.totalorder %s36, %s52
      %p54 = scmp.eq.s32.totalorder %s28, 0
      %p55 = por %p53, %p54
      %s57 = sadd.s32 %s56, 1
      %p60 = scmp.eq.s32.totalorder %s22, 1
      %p61 = scmp.ne.s32.totalorder %s56, %s58
      %p62 = scmp.eq.s32.totalorder %s22, 0
      %p63 = por %p61, %p62
      %p64 = scmp.ne.s32.totalorder %s56, %s58
      %p65 = scmp.eq.s32.totalorder %s27, 1
      %p66 = por %p64, %p65
      %p67 = scmp.ne.s32.totalorder %s58, %s59
      %p68 = scmp.eq.s32.totalorder %s27, 0
      %p69 = por %p67, %p68
      %p70 = scmp.ne.s32.totalorder %s58, %s59
      %p71 = scmp.eq.s32.totalorder %s28, 1
      %p72 = por %p70, %p71
      %p74 = scmp.ne.s32.totalorder %s59, %s73
      %p75 = scmp.eq.s32.totalorder %s28, 0
      %p76 = por %p74, %p75
      %s78 = sadd.s32 %s77, 1
      %p81 = scmp.eq.s32.totalorder %s22, 1
      %p82 = scmp.ne.s32.totalorder %s77, %s79
      %p83 = scmp.eq.s32.totalorder %s22, 0
      %p84 = por %p82, %p83
      %p85 = scmp.ne.s32.totalorder %s77, %s79
      %p86 = scmp.eq.s32.totalorder %s27, 1
      %p87 = por %p85, %p86
      %p88 = scmp.ne.s32.totalorder %s79, %s80
      %p89 = scmp.eq.s32.totalorder %s27, 0
      %p90 = por %p88, %p89
      %p91 = scmp.ne.s32.totalorder %s79, %s80
      %p92 = scmp.eq.s32.totalorder %s28, 1
      %p93 = por %p91, %p92
      %p95 = scmp.ne.s32.totalorder %s80, %s94
      %p96 = scmp.eq.s32.totalorder %s28, 0
      %p97 = por %p95, %p96
      %s99 = sadd.s32 %s98, 1
      %p102 = scmp.eq.s32.totalorder %s22, 1
      %p103 = scmp.ne.s32.totalorder %s98, %s100
      %p104 = scmp.eq.s32.totalorder %s22, 0
      %p105 = por %p103, %p104
      %p106 = scmp.ne.s32.totalorder %s98, %s100
      %p107 = scmp.eq.s32.totalorder %s27, 1
      %p108 = por %p106, %p107
      %p109 = scmp.ne.s32.totalorder %s100, %s101
      %p110 = scmp.eq.s32.totalorder %s27, 0
      %p111 = por %p109, %p110
      %p112 = scmp.ne.s32.totalorder %s100, %s101
      %p113 = scmp.eq.s32.totalorder %s28, 1
      %p114 = por %p112, %p113
      %p116 = scmp.ne.s32.totalorder %s101, %s115
      %p117 = scmp.eq.s32.totalorder %s28, 0
      %p118 = por %p116, %p117
      %s120 = sadd.s32 %s119, 1
      %p123 = scmp.eq.s32.totalorder %s22, 1
      %p124 = scmp.ne.s32.totalorder %s119, %s121
      %p125 = scmp.eq.s32.totalorder %s22, 0
      %p126 = por %p124, %p125
      %p127 = scmp.ne.s32.totalorder %s119, %s121
      %p128 = scmp.eq.s32.totalorder %s27, 1
      %p129 = por %p127, %p128
      %p130 = scmp.ne.s32.totalorder %s121, %s122
      %p131 = scmp.eq.s32.totalorder %s27, 0
      %p132 = por %p130, %p131
      %p133 = scmp.ne.s32.totalorder %s121, %s122
      %p134 = scmp.eq.s32.totalorder %s28, 1
      %p135 = por %p133, %p134
      %p137 = scmp.ne.s32.totalorder %s122, %s136
      %p138 = scmp.eq.s32.totalorder %s28, 0
      %p139 = por %p137, %p138
      %s141 = sadd.s32 %s140, 1
      %p144 = scmp.eq.s32.totalorder %s22, 1
      %p145 = scmp.ne.s32.totalorder %s140, %s142
      %p146 = scmp.eq.s32.totalorder %s22, 0
      %p147 = por %p145, %p146
      %p148 = scmp.ne.s32.totalorder %s140, %s142
      %p149 = scmp.eq.s32.totalorder %s27, 1
      %p150 = por %p148, %p149
      %p151 = scmp.ne.s32.totalorder %s142, %s143
      %p152 = scmp.eq.s32.totalorder %s27, 0
      %p153 = por %p151, %p152
      %p154 = scmp.ne.s32.totalorder %s142, %s143
      %p155 = scmp.eq.s32.totalorder %s28, 1
      %p156 = por %p154, %p155
      %p158 = scmp.ne.s32.totalorder %s143, %s157
      %p159 = scmp.eq.s32.totalorder %s28, 0
      %p160 = por %p158, %p159
      %s162 = sadd.s32 %s161, 1
      %p165 = scmp.eq.s32.totalorder %s22, 1
      %p166 = scmp.ne.s32.totalorder %s161, %s163
      %p167 = scmp.eq.s32.totalorder %s22, 0
      %p168 = por %p166, %p167
      %p169 = scmp.ne.s32.totalorder %s161, %s163
      %p170 = scmp.eq.s32.totalorder %s27, 1
      %p171 = por %p169, %p170
      %p172 = scmp.ne.s32.totalorder %s163, %s164
      %p173 = scmp.eq.s32.totalorder %s27, 0
      %p174 = por %p172, %p173
      %p175 = scmp.ne.s32.totalorder %s163, %s164
      %p176 = scmp.eq.s32.totalorder %s28, 1
      %p177 = por %p175, %p176
      %p179 = scmp.ne.s32.totalorder %s164, %s178
      %p180 = scmp.eq.s32.totalorder %s28, 0
      %p181 = por %p179, %p180
      %s182 = ssub.s32 %s22, %s29
      %p183 = scmp.eq.s32.totalorder %s182, 0
      %s185 = sadd.s32 %s184, 1
      %s186 = scalar_select %p183, %s184, %s185
      %p189 = pneg %p183
      %p190 = scmp.eq.s32.totalorder %s22, 1
      %p191 = por %p189, %p190
      %p192 = scmp.ne.s32.totalorder %s184, %s187
      %p193 = scmp.eq.s32.totalorder %s22, 0
      %p194 = por %p192, %p193
      %p195 = scmp.ne.s32.totalorder %s184, %s187
      %p196 = scmp.eq.s32.totalorder %s27, 1
      %p197 = por %p195, %p196
      %p198 = scmp.ne.s32.totalorder %s187, %s188
      %p199 = scmp.eq.s32.totalorder %s27, 0
      %p200 = por %p198, %p199
      %p201 = scmp.ne.s32.totalorder %s187, %s188
      %p202 = scmp.eq.s32.totalorder %s28, 1
      %p203 = por %p201, %p202
      %p205 = scmp.ne.s32.totalorder %s188, %s204
      %p206 = scmp.eq.s32.totalorder %s28, 0
      %p207 = por %p205, %p206
      %s208 = ssub.s32 %s22, %s29
      %p209 = scmp.eq.s32.totalorder %s208, 0
      %s211 = sadd.s32 %s210, 1
      %s212 = scalar_select %p209, %s210, %s211
      %p215 = pneg %p209
      %p216 = scmp.eq.s32.totalorder %s22, 1
      %p217 = por %p215, %p216
      %p218 = scmp.ne.s32.totalorder %s210, %s213
      %p219 = scmp.eq.s32.totalorder %s22, 0
      %p220 = por %p218, %p219
      %p221 = scmp.ne.s32.totalorder %s210, %s213
      %p222 = scmp.eq.s32.totalorder %s27, 1
      %p223 = por %p221, %p222
      %p224 = scmp.ne.s32.totalorder %s213, %s214
      %p225 = scmp.eq.s32.totalorder %s27, 0
      %p226 = por %p224, %p225
      %p227 = scmp.ne.s32.totalorder %s213, %s214
      %p228 = scmp.eq.s32.totalorder %s28, 1
      %p229 = por %p227, %p228
      %p231 = scmp.ne.s32.totalorder %s214, %s230
      %p232 = scmp.eq.s32.totalorder %s28, 0
      %p233 = por %p231, %p232
      %s234 = ssub.s32 %s22, %s29
      %p235 = scmp.eq.s32.totalorder %s234, 0
      %s237 = sadd.s32 %s236, 1
      %s238 = scalar_select %p235, %s236, %s237
      %p241 = pneg %p235
      %p242 = scmp.eq.s32.totalorder %s22, 1
      %p243 = por %p241, %p242
      %p244 = scmp.ne.s32.totalorder %s236, %s239
      %p245 = scmp.eq.s32.totalorder %s22, 0
      %p246 = por %p244, %p245
      %p247 = scmp.ne.s32.totalorder %s236, %s239
      %p248 = scmp.eq.s32.totalorder %s27, 1
      %p249 = por %p247, %p248
      %p250 = scmp.ne.s32.totalorder %s239, %s240
      %p251 = scmp.eq.s32.totalorder %s27, 0
      %p252 = por %p250, %p251
      %p253 = scmp.ne.s32.totalorder %s239, %s240
      %p254 = scmp.eq.s32.totalorder %s28, 1
      %p255 = por %p253, %p254
      %p257 = scmp.ne.s32.totalorder %s240, %s256
      %p258 = scmp.eq.s32.totalorder %s28, 0
      %p259 = por %p257, %p258
      %p260 = scmp.le.s32.totalorder 1, %s22
      %p261 = scmp.lt.s32.totalorder %s22, 3
      %p262 = pnand %p260, %p261
      %p263 = pneg %p262
      // Predicated region
      $region9: #{encoder_forward.2} parent=5 // pred_check
        _
      $region10: #{encoder_forward.2} parent=5 // pred_check_branch
        %265 = sbr.rel (%p262) target = $region12
      $region11: #{encoder_forward.2} parent=5 // pred_region
        %s266 = ssub.s32 %s22, 1
        // Predicated region
        $region13: #{encoder_forward.2} parent=11 // pred_check
          %p267 = pneg %p69
        $region14: #{encoder_forward.2} parent=11 // pred_check_branch
          %269 = sbr.rel (%p267) target = $region16
        $region15: #{encoder_forward.2} parent=11 // pred_region
          _
        $region16: #{encoder_forward.2} parent=11 // pred_fallthru
          _
        // Predicated region
        $region17: #{encoder_forward.2} parent=11 // pred_check
          %p270 = pneg %p90
        $region18: #{encoder_forward.2} parent=11 // pred_check_branch
          %272 = sbr.rel (%p270) target = $region20
        $region19: #{encoder_forward.2} parent=11 // pred_region
          _
        $region20: #{encoder_forward.2} parent=11 // pred_fallthru
          _
        // Predicated region
        $region21: #{encoder_forward.2} parent=11 // pred_check
          %p273 = pneg %p111
        $region22: #{encoder_forward.2} parent=11 // pred_check_branch
          %275 = sbr.rel (%p273) target = $region24
        $region23: #{encoder_forward.2} parent=11 // pred_region
          _
        $region24: #{encoder_forward.2} parent=11 // pred_fallthru
          _
        // Predicated region
        $region25: #{encoder_forward.2} parent=11 // pred_check
          %p276 = pneg %p132
        $region26: #{encoder_forward.2} parent=11 // pred_check_branch
          %278 = sbr.rel (%p276) target = $region28
        $region27: #{encoder_forward.2} parent=11 // pred_region
          _
        $region28: #{encoder_forward.2} parent=11 // pred_fallthru
          _
        // Predicated region
        $region29: #{encoder_forward.2} parent=11 // pred_check
          %p279 = pneg %p153
        $region30: #{encoder_forward.2} parent=11 // pred_check_branch
          %281 = sbr.rel (%p279) target = $region32
        $region31: #{encoder_forward.2} parent=11 // pred_region
          _
        $region32: #{encoder_forward.2} parent=11 // pred_fallthru
          _
        // Predicated region
        $region33: #{encoder_forward.2} parent=11 // pred_check
          %p282 = pneg %p174
        $region34: #{encoder_forward.2} parent=11 // pred_check_branch
          %284 = sbr.rel (%p282) target = $region36
        $region35: #{encoder_forward.2} parent=11 // pred_region
          _
        $region36: #{encoder_forward.2} parent=11 // pred_fallthru
          _
      $region12: #{encoder_forward.2} parent=5 // pred_fallthru
        _
      %p285 = scmp.lt.s32.totalorder %s22, 2
      // Predicated region
      $region37: #{encoder_forward.2} parent=5 // pred_check
        %p286 = pneg %p285
      $region38: #{encoder_forward.2} parent=5 // pred_check_branch
        %288 = sbr.rel (%p286) target = $region40
      $region39: #{encoder_forward.2} parent=5 // pred_region
        // Predicated region
        $region41: #{encoder_forward.2} parent=39 // pred_check
          %p289 = pneg %p42
        $region42: #{encoder_forward.2} parent=39 // pred_check_branch
          %291 = sbr.rel (%p289) target = $region44
        $region43: #{encoder_forward.2} parent=39 // pred_region
          %p292 = scmp.lt.s32.totalorder %s22, 1
          %s293 = scalar_select %p292, %s22, 1
          %s294 = smul.addr %s293, 8
          %s295 = smul.addr %s294, 4
          %s296 = scalar_lea.vmem %s0, %s295
        $region44: #{encoder_forward.2} parent=39 // pred_fallthru
          _
      $region40: #{encoder_forward.2} parent=5 // pred_fallthru
        _
      %p297 = scmp.le.s32.totalorder 1, %s22
      %p298 = scmp.lt.s32.totalorder %s22, 3
      %p299 = pnand %p297, %p298
      %p300 = pneg %p299
      // Predicated region
      $region45: #{encoder_forward.2} parent=5 // pred_check
        _
      $region46: #{encoder_forward.2} parent=5 // pred_check_branch
        %302 = sbr.rel (%p299) target = $region48
      $region47: #{encoder_forward.2} parent=5 // pred_region
        %s303 = ssub.s32 %s22, 1
        %p304 = scmp.lt.s32.totalorder %s27, 1
        %s305 = scalar_select %p304, %s27, 1
        %s306 = smul.addr %s305, 8
        %s307 = smul.addr %s306, 4
        %s308 = scalar_lea.vmem %s0, %s307
        %p309 = pneg %p48
        %p310 = pneg %p45
        %p311 = pneg %p69
        %p312 = pneg %p66
        %p313 = pneg %p90
        %p314 = pneg %p87
        %p315 = pneg %p111
        %p316 = pneg %p108
        %p317 = pneg %p132
        %p318 = pneg %p129
        %p319 = pneg %p153
        %p320 = pneg %p150
        %p321 = pneg %p174
        %p322 = pneg %p171
        %p323 = pneg %p200
        %p324 = pneg %p197
        %p325 = scmp.lt.s32.totalorder %s27, 1
        %s326 = scalar_select %p325, %s27, 1
        %s327 = smul.addr %s326, 8
        %s328 = smul.addr %s327, 4
        %s329 = scalar_lea.vmem %s7, %s328
        %p330 = pneg %p226
        %p331 = pneg %p223
        %s332 = sand.u32 %s213, 1
        %s333 = scalar_lea.sflag [#allocation5], %s332
        %s334 = sand.u32 %s213, 1
        %s335 = smul.addr %s334, 16
        %s336 = scalar_lea.vmem [#allocation4], %s335
        %p337 = pneg %p252
        %p338 = pneg %p249
        %s339 = sand.u32 %s239, 1
        %s340 = scalar_lea.sflag [#allocation7], %s339
        %s341 = sand.u32 %s239, 1
        %s342 = smul.addr %s341, 16
        %s343 = scalar_lea.vmem [#allocation6], %s342
        %p344 = scmp.lt.s32.totalorder %s27, 1
        %s345 = scalar_select %p344, %s27, 1
        %s346 = smul.addr %s345, 8
        %s347 = smul.addr %s346, 4
        %s348 = scalar_lea.vmem %s0, %s347
        %p349 = scmp.lt.s32.totalorder %s27, 1
        %s350 = scalar_select %p349, %s27, 1
        %s351 = smul.addr %s350, 8
        %s352 = smul.addr %s351, 4
        %s353 = scalar_lea.vmem %s7, %s352
        %v355 = vld [vmem:[%s348] sm:$0xf]
        %v356 = vld [vmem:[%s348 + $0x4] sm:$0xf]
        %v357 = vld [vmem:[%s348 + $0x8] sm:$0xf]
        %v358 = vld [vmem:[%s348 + $0xc] sm:$0xf]
        %v359 = vld [vmem:[%s348 + $0x10] sm:$0xf]
        %v360 = vld [vmem:[%s348 + $0x14] sm:$0xf]
        %v361 = vld [vmem:[%s348 + $0x18] sm:$0xf]
        %v362 = vld [vmem:[%s348 + $0x1c] sm:$0xf]
        %v363 = vld [vmem:[%s1] sm:$0xf]
        %v364 = vld [vmem:[%s1 + $0x4] sm:$0xf]
        %v365 = vld [vmem:[%s1 + $0x8] sm:$0xf]
        %v366 = vld [vmem:[%s1 + $0xc] sm:$0xf]
        %v367 = vld [vmem:[%s2] sm:$0xf]
        %v368 = vld [vmem:[%s2 + $0x4] sm:$0xf]
        %v369 = vld [vmem:[%s2 + $0x8] sm:$0xf]
        %v370 = vld [vmem:[%s2 + $0xc] sm:$0xf]
        %v371 = vld [vmem:[%s3] sm:$0x1]
        %v373 = vlaneseq
        %v374 = vshrl.u32 %v373, 7
        %v375 = vsub.s32 0, %v374
        %v376 = vrot.slane %v371, %v375
        %v386 = vunpack.c.l.b16 %v355
        %v387 = vunpack.c.l.b16 %v356
        %v388 = vunpack.c.l.b16 %v357
        %v389 = vunpack.c.l.b16 %v358
        %v390 = vunpack.c.l.b16 %v359
        %v391 = vunpack.c.l.b16 %v360
        %v392 = vunpack.c.l.b16 %v361
        %v393 = vunpack.c.l.b16 %v362
        %v394 = vpack.c.b16 %v387, %v386
        %v395 = vpack.c.b16 %v389, %v388
        %v396 = vpack.c.b16 %v391, %v390
        %v397 = vpack.c.b16 %v393, %v392
        %v402 = vunpack.c.l.b16 %v363
        %v403 = vunpack.c.l.b16 %v364
        %v404 = vunpack.c.l.b16 %v365
        %v405 = vunpack.c.l.b16 %v366
        %v406 = vpack.c.b16 %v403, %v402
        %v407 = vpack.c.b16 %v405, %v404
        %vm410 = vcmask 261120
        %v412 = vsel %vm410, %v394, 0
        %v415 = vsel %vm410, %v395, 0
        %v418 = vsel %vm410, %v396, 0
        %v421 = vsel %vm410, %v397, 0
        %423 = vmatprep.subr.bf16.mxu0 0
        %424 = vmatpush1.bf16.msra.mxu0 0
        %425 = vmatprep.subr.bf16.mxu0 0
        %426 = vmatpush1.bf16.msra.mxu0 0
        %427 = vmatprep.subr.bf16.mxu0 0
        %428 = vmatpush1.bf16.msra.mxu0 0
        %429 = vmatprep.subr.bf16.mxu0 0
        %430 = vmatpush1.bf16.msra.mxu0 0
        %431 = vmatprep.subr.bf16.mxu0 0
        %432 = vmatpush1.bf16.msra.mxu0 0
        %433 = vmatprep.subr.bf16.mxu0 0
        %434 = vmatpush1.bf16.msra.mxu0 0
        %435 = vmatprep.subr.bf16.mxu0 0
        %436 = vmatpush1.bf16.msra.mxu0 %v407
        %437 = vmatprep.subr.bf16.mxu0 0
        %438 = vmatpush1.bf16.msra.mxu0 %v406
        %439 = vmatprep.subr.bf16.mxu0 0
        %440 = vmatpush2.bf16.msra.mxu0 0
        %441 = vmatprep.subr.bf16.mxu0 0
        %442 = vmatpush2.bf16.msra.mxu0 0
        %443 = vmatprep.subr.bf16.mxu0 0
        %444 = vmatpush2.bf16.msra.mxu0 0
        %445 = vmatprep.subr.bf16.mxu0 0
        %446 = vmatpush2.bf16.msra.mxu0 0
        %447 = vmatprep.subr.bf16.mxu0 0
        %448 = vmatpush2.bf16.msra.mxu0 0
        %449 = vmatprep.subr.bf16.mxu0 0
        %450 = vmatpush2.bf16.msra.mxu0 0
        %451 = vmatprep.subr.bf16.mxu0 0
        %452 = vmatpush2.bf16.msra.mxu0 0
        %453 = vmatprep.subr.bf16.mxu0 0
        %454 = vmatpush2.bf16.msra.mxu0 0
        %455 = vmatprep.mubr.bf16.mxu0 0
        %456 = vmatmul.mubr.bf16.gmra.mxu0 %v412
        %v457 = vpop.f32.mrf.mxu0
        %v458 = vadd.f32 0.0, %v457
        %v459 = vpop.f32.mrf.mxu0
        %v460 = vpop.f32.mrf.mxu0
        %v461 = vadd.f32 0.0, %v460
        %v462 = vpop.f32.mrf.mxu0
        %463 = vmatprep.mubr.bf16.mxu0 0
        %464 = vmatmul.mubr.bf16.gmra.mxu0 %v415
        %v465 = vpop.f32.mrf.mxu0
        %v466 = vadd.f32 0.0, %v465
        %v467 = vpop.f32.mrf.mxu0
        %v468 = vpop.f32.mrf.mxu0
        %v469 = vadd.f32 0.0, %v468
        %v470 = vpop.f32.mrf.mxu0
        %471 = vmatprep.mubr.bf16.mxu0 0
        %472 = vmatmul.mubr.bf16.gmra.mxu0 %v418
        %v473 = vpop.f32.mrf.mxu0
        %v474 = vadd.f32 0.0, %v473
        %v475 = vpop.f32.mrf.mxu0
        %v476 = vpop.f32.mrf.mxu0
        %v477 = vadd.f32 0.0, %v476
        %v478 = vpop.f32.mrf.mxu0
        %479 = vmatprep.mubr.bf16.mxu0 0
        %480 = vmatmul.mubr.bf16.gmra.mxu0 %v421
        %v481 = vpop.f32.mrf.mxu0
        %v482 = vadd.f32 0.0, %v481
        %v483 = vpop.f32.mrf.mxu0
        %v484 = vpop.f32.mrf.mxu0
        %v485 = vadd.f32 0.0, %v484
        %v486 = vpop.f32.mrf.mxu0
        %487 = vdwg.mxu0
        %v488 = vpack.c.bf16 %v461, %v458
        %v489 = vpack.c.bf16 %v469, %v466
        %v490 = vpack.c.bf16 %v477, %v474
        %v491 = vpack.c.bf16 %v485, %v482
        %v496 = vunpack.c.l.b16 %v488
        %v497 = vunpack.c.h.b16 %v488
        %v498 = vunpack.c.l.b16 %v489
        %v499 = vunpack.c.h.b16 %v489
        %v500 = vunpack.c.l.b16 %v490
        %v501 = vunpack.c.h.b16 %v490
        %v502 = vunpack.c.l.b16 %v491
        %v503 = vunpack.c.h.b16 %v491
        %v504 = vpack.c.b16 %v496, %v496
        %v505 = vpack.c.b16 %v497, %v497
        %v506 = vpack.c.b16 %v498, %v498
        %v507 = vpack.c.b16 %v499, %v499
        %v508 = vpack.c.b16 %v500, %v500
        %v509 = vpack.c.b16 %v501, %v501
        %v510 = vpack.c.b16 %v502, %v502
        %v511 = vpack.c.b16 %v503, %v503
        %520 = vst [vmem:[#allocation2] sm:$0xf] %v504
        %521 = vst [vmem:[#allocation2 + $0x4] sm:$0xf] %v505
        %522 = vst [vmem:[#allocation2 + $0x8] sm:$0xf] %v506
        %523 = vst [vmem:[#allocation2 + $0xc] sm:$0xf] %v507
        %524 = vst [vmem:[#allocation2 + $0x10] sm:$0xf] %v508
        %525 = vst [vmem:[#allocation2 + $0x14] sm:$0xf] %v509
        %526 = vst [vmem:[#allocation2 + $0x18] sm:$0xf] %v510
        %527 = vst [vmem:[#allocation2 + $0x1c] sm:$0xf] %v511
        %v528 = vld [vmem:[#allocation2] sm:$0xf]
        %v529 = vunpack.c.l.bf16 %v528
        %v530 = vadd.f32 %v529, %v376
        %v535 = vunpack.c.l.b16 %v367
        %v536 = vunpack.c.l.b16 %v368
        %v537 = vunpack.c.l.b16 %v369
        %v538 = vunpack.c.l.b16 %v370
        %v539 = vpack.c.b16 %v536, %v535
        %v540 = vpack.c.b16 %v538, %v537
        %v544 = vsel %vm410, 0, 0
        %546 = vmatprep.subr.bf16.mxu0 0
        %547 = vmatpush1.bf16.msra.mxu0 0
        %548 = vmatprep.subr.bf16.mxu0 0
        %549 = vmatpush1.bf16.msra.mxu0 0
        %550 = vmatprep.subr.bf16.mxu0 0
        %551 = vmatpush1.bf16.msra.mxu0 0
        %552 = vmatprep.subr.bf16.mxu0 0
        %553 = vmatpush1.bf16.msra.mxu0 0
        %554 = vmatprep.subr.bf16.mxu0 0
        %555 = vmatpush1.bf16.msra.mxu0 0
        %556 = vmatprep.subr.bf16.mxu0 0
        %557 = vmatpush1.bf16.msra.mxu0 0
        %558 = vmatprep.subr.bf16.mxu0 0
        %559 = vmatpush1.bf16.msra.mxu0 %v540
        %560 = vmatprep.subr.bf16.mxu0 0
        %561 = vmatpush1.bf16.msra.mxu0 %v539
        %562 = vmatprep.subr.bf16.mxu0 0
        %563 = vmatpush2.bf16.msra.mxu0 0
        %564 = vmatprep.subr.bf16.mxu0 0
        %565 = vmatpush2.bf16.msra.mxu0 0
        %566 = vmatprep.subr.bf16.mxu0 0
        %567 = vmatpush2.bf16.msra.mxu0 0
        %568 = vmatprep.subr.bf16.mxu0 0
        %569 = vmatpush2.bf16.msra.mxu0 0
        %570 = vmatprep.subr.bf16.mxu0 0
        %571 = vmatpush2.bf16.msra.mxu0 0
        %572 = vmatprep.subr.bf16.mxu0 0
        %573 = vmatpush2.bf16.msra.mxu0 0
        %574 = vmatprep.subr.bf16.mxu0 0
        %575 = vmatpush2.bf16.msra.mxu0 0
        %576 = vmatprep.subr.bf16.mxu0 0
        %577 = vmatpush2.bf16.msra.mxu0 0
        %578 = vmatprep.mubr.bf16.mxu0 0
        %579 = vmatmul.mubr.bf16.gmra.mxu0 %v544
        %v580 = vpop.f32.mrf.mxu0
        %v581 = vadd.f32 0.0, %v580
        %v582 = vpop.f32.mrf.mxu0
        %v583 = vpop.f32.mrf.mxu0
        %v584 = vpop.f32.mrf.mxu0
        %585 = vdwg.mxu0
        %v586 = vadd.f32 %v530, %v581
        %v587 = vxor.u32 %v586, 2147483648
        %v588 = vmul.f32 %v587, 1.442695
        %v589 = vpow.pop %v588
        %v590 = vadd.f32 %v589, 1.0
        %v591 = vrcp.pop %v590
        %v592 = vmul.f32 1.0, %v591
        %v593 = vtanh.pop %v586
        %v594 = vmul.f32 %v592, 0.0
        %596 = vrot.lane.b32.xlu0 %v593, 32
        %v597 = vpop.permute.xlu0 %596
        %v599 = vmul.f32 %v592, %v597
        %601 = vrot.lane.b32.xlu0 %v599, 32
        %v602 = vpop.permute.xlu0 %601
        %v604 = vadd.f32 %v594, %v602
        %v605 = vtanh.pop %v604
        %607 = vrot.lane.b32.xlu0 %v605, 32
        %v608 = vpop.permute.xlu0 %607
        %v610 = vmul.f32 %v592, %v608
        %v611 = vpack.c.bf16 %v610, %v610
        %v613 = vunpack.c.l.b16 %v611
        %v614 = vpack.c.b16 %v613, %v613
        %615 = vrot.lane.b32.xlu0 %v614, 64
        %v616 = vpop.permute.xlu0 %615
        %vm618 = vcmask 257024
        %619 = vst.msk [vmem:[#allocation3] sm:$0xf] %vm618, %v616
        %s620 = scalar_lea.vmem [#allocation2], 4
        %v621 = vld [vmem:[%s620] sm:$0xf]
        %v622 = vunpack.c.l.bf16 %v621
        %v623 = vadd.f32 %v622, %v376
        %624 = vrot.lane.b32.xlu0 %v611, 64
        %v625 = vpop.permute.xlu0 %624
        %v627 = vsel %vm410, %v625, 0
        %629 = vmatprep.subr.bf16.mxu0 0
        %630 = vmatpush1.bf16.msra.mxu0 0
        %631 = vmatprep.subr.bf16.mxu0 0
        %632 = vmatpush1.bf16.msra.mxu0 0
        %633 = vmatprep.subr.bf16.mxu0 0
        %634 = vmatpush1.bf16.msra.mxu0 0
        %635 = vmatprep.subr.bf16.mxu0 0
        %636 = vmatpush1.bf16.msra.mxu0 0
        %637 = vmatprep.subr.bf16.mxu0 0
        %638 = vmatpush1.bf16.msra.mxu0 0
        %639 = vmatprep.subr.bf16.mxu0 0
        %640 = vmatpush1.bf16.msra.mxu0 0
        %641 = vmatprep.subr.bf16.mxu0 0
        %642 = vmatpush1.bf16.msra.mxu0 %v540
        %643 = vmatprep.subr.bf16.mxu0 0
        %644 = vmatpush1.bf16.msra.mxu0 %v539
        %645 = vmatprep.subr.bf16.mxu0 0
        %646 = vmatpush2.bf16.msra.mxu0 0
        %647 = vmatprep.subr.bf16.mxu0 0
        %648 = vmatpush2.bf16.msra.mxu0 0
        %649 = vmatprep.subr.bf16.mxu0 0
        %650 = vmatpush2.bf16.msra.mxu0 0
        %651 = vmatprep.subr.bf16.mxu0 0
        %652 = vmatpush2.bf16.msra.mxu0 0
        %653 = vmatprep.subr.bf16.mxu0 0
        %654 = vmatpush2.bf16.msra.mxu0 0
        %655 = vmatprep.subr.bf16.mxu0 0
        %656 = vmatpush2.bf16.msra.mxu0 0
        %657 = vmatprep.subr.bf16.mxu0 0
        %658 = vmatpush2.bf16.msra.mxu0 0
        %659 = vmatprep.subr.bf16.mxu0 0
        %660 = vmatpush2.bf16.msra.mxu0 0
        %661 = vmatprep.mubr.bf16.mxu0 0
        %662 = vmatmul.mubr.bf16.gmra.mxu0 %v627
        %v663 = vpop.f32.mrf.mxu0
        %v664 = vadd.f32 0.0, %v663
        %v665 = vpop.f32.mrf.mxu0
        %v666 = vpop.f32.mrf.mxu0
        %v667 = vpop.f32.mrf.mxu0
        %668 = vdwg.mxu0
        %v669 = vadd.f32 %v623, %v664
        %v670 = vxor.u32 %v669, 2147483648
        %v671 = vmul.f32 %v670, 1.442695
        %v672 = vpow.pop %v671
        %v673 = vadd.f32 %v672, 1.0
        %v674 = vrcp.pop %v673
        %v675 = vmul.f32 1.0, %v674
        %v676 = vtanh.pop %v669
        %v677 = vmul.f32 %v675, %v604
        %679 = vrot.lane.b32.xlu0 %v676, 32
        %v680 = vpop.permute.xlu0 %679
        %v682 = vmul.f32 %v675, %v680
        %684 = vrot.lane.b32.xlu0 %v682, 32
        %v685 = vpop.permute.xlu0 %684
        %v687 = vadd.f32 %v677, %v685
        %v688 = vtanh.pop %v687
        %690 = vrot.lane.b32.xlu0 %v688, 32
        %v691 = vpop.permute.xlu0 %690
        %v693 = vmul.f32 %v675, %v691
        %v694 = vpack.c.bf16 %v693, %v693
        %v696 = vunpack.c.l.b16 %v694
        %v697 = vpack.c.b16 %v696, %v696
        %698 = vrot.lane.b32.xlu0 %v697, 64
        %v699 = vpop.permute.xlu0 %698
        %s701 = scalar_lea.vmem [#allocation3], 4
        %702 = vst.msk [vmem:[%s701] sm:$0xf] %vm618, %v699
        %s703 = scalar_lea.vmem [#allocation2], 8
        %v704 = vld [vmem:[%s703] sm:$0xf]
        %v705 = vunpack.c.l.bf16 %v704
        %v706 = vadd.f32 %v705, %v376
        %707 = vrot.lane.b32.xlu0 %v694, 64
        %v708 = vpop.permute.xlu0 %707
        %v710 = vsel %vm410, %v708, 0
        %712 = vmatprep.subr.bf16.mxu0 0
        %713 = vmatpush1.bf16.msra.mxu0 0
        %714 = vmatprep.subr.bf16.mxu0 0
        %715 = vmatpush1.bf16.msra.mxu0 0
        %716 = vmatprep.subr.bf16.mxu0 0
        %717 = vmatpush1.bf16.msra.mxu0 0
        %718 = vmatprep.subr.bf16.mxu0 0
        %719 = vmatpush1.bf16.msra.mxu0 0
        %720 = vmatprep.subr.bf16.mxu0 0
        %721 = vmatpush1.bf16.msra.mxu0 0
        %722 = vmatprep.subr.bf16.mxu0 0
        %723 = vmatpush1.bf16.msra.mxu0 0
        %724 = vmatprep.subr.bf16.mxu0 0
        %725 = vmatpush1.bf16.msra.mxu0 %v540
        %726 = vmatprep.subr.bf16.mxu0 0
        %727 = vmatpush1.bf16.msra.mxu0 %v539
        %728 = vmatprep.subr.bf16.mxu0 0
        %729 = vmatpush2.bf16.msra.mxu0 0
        %730 = vmatprep.subr.bf16.mxu0 0
        %731 = vmatpush2.bf16.msra.mxu0 0
        %732 = vmatprep.subr.bf16.mxu0 0
        %733 = vmatpush2.bf16.msra.mxu0 0
        %734 = vmatprep.subr.bf16.mxu0 0
        %735 = vmatpush2.bf16.msra.mxu0 0
        %736 = vmatprep.subr.bf16.mxu0 0
        %737 = vmatpush2.bf16.msra.mxu0 0
        %738 = vmatprep.subr.bf16.mxu0 0
        %739 = vmatpush2.bf16.msra.mxu0 0
        %740 = vmatprep.subr.bf16.mxu0 0
        %741 = vmatpush2.bf16.msra.mxu0 0
        %742 = vmatprep.subr.bf16.mxu0 0
        %743 = vmatpush2.bf16.msra.mxu0 0
        %744 = vmatprep.mubr.bf16.mxu0 0
        %745 = vmatmul.mubr.bf16.gmra.mxu0 %v710
        %v746 = vpop.f32.mrf.mxu0
        %v747 = vadd.f32 0.0, %v746
        %v748 = vpop.f32.mrf.mxu0
        %v749 = vpop.f32.mrf.mxu0
        %v750 = vpop.f32.mrf.mxu0
        %751 = vdwg.mxu0
        %v752 = vadd.f32 %v706, %v747
        %v753 = vxor.u32 %v752, 2147483648
        %v754 = vmul.f32 %v753, 1.442695
        %v755 = vpow.pop %v754
        %v756 = vadd.f32 %v755, 1.0
        %v757 = vrcp.pop %v756
        %v758 = vmul.f32 1.0, %v757
        %v759 = vtanh.pop %v752
        %v760 = vmul.f32 %v758, %v687
        %762 = vrot.lane.b32.xlu0 %v759, 32
        %v763 = vpop.permute.xlu0 %762
        %v765 = vmul.f32 %v758, %v763
        %767 = vrot.lane.b32.xlu0 %v765, 32
        %v768 = vpop.permute.xlu0 %767
        %v770 = vadd.f32 %v760, %v768
        %v771 = vtanh.pop %v770
        %773 = vrot.lane.b32.xlu0 %v771, 32
        %v774 = vpop.permute.xlu0 %773
        %v776 = vmul.f32 %v758, %v774
        %v777 = vpack.c.bf16 %v776, %v776
        %v779 = vunpack.c.l.b16 %v777
        %v780 = vpack.c.b16 %v779, %v779
        %781 = vrot.lane.b32.xlu0 %v780, 64
        %v782 = vpop.permute.xlu0 %781
        %s784 = scalar_lea.vmem [#allocation3], 8
        %785 = vst.msk [vmem:[%s784] sm:$0xf] %vm618, %v782
        %s786 = scalar_lea.vmem [#allocation2], 12
        %v787 = vld [vmem:[%s786] sm:$0xf]
        %v788 = vunpack.c.l.bf16 %v787
        %v789 = vadd.f32 %v788, %v376
        %790 = vrot.lane.b32.xlu0 %v777, 64
        %v791 = vpop.permute.xlu0 %790
        %v793 = vsel %vm410, %v791, 0
        %795 = vmatprep.subr.bf16.mxu0 0
        %796 = vmatpush1.bf16.msra.mxu0 0
        %797 = vmatprep.subr.bf16.mxu0 0
        %798 = vmatpush1.bf16.msra.mxu0 0
        %799 = vmatprep.subr.bf16.mxu0 0
        %800 = vmatpush1.bf16.msra.mxu0 0
        %801 = vmatprep.subr.bf16.mxu0 0
        %802 = vmatpush1.bf16.msra.mxu0 0
        %803 = vmatprep.subr.bf16.mxu0 0
        %804 = vmatpush1.bf16.msra.mxu0 0
        %805 = vmatprep.subr.bf16.mxu0 0
        %806 = vmatpush1.bf16.msra.mxu0 0
        %807 = vmatprep.subr.bf16.mxu0 0
        %808 = vmatpush1.bf16.msra.mxu0 %v540
        %809 = vmatprep.subr.bf16.mxu0 0
        %810 = vmatpush1.bf16.msra.mxu0 %v539
        %811 = vmatprep.subr.bf16.mxu0 0
        %812 = vmatpush2.bf16.msra.mxu0 0
        %813 = vmatprep.subr.bf16.mxu0 0
        %814 = vmatpush2.bf16.msra.mxu0 0
        %815 = vmatprep.subr.bf16.mxu0 0
        %816 = vmatpush2.bf16.msra.mxu0 0
        %817 = vmatprep.subr.bf16.mxu0 0
        %818 = vmatpush2.bf16.msra.mxu0 0
        %819 = vmatprep.subr.bf16.mxu0 0
        %820 = vmatpush2.bf16.msra.mxu0 0
        %821 = vmatprep.subr.bf16.mxu0 0
        %822 = vmatpush2.bf16.msra.mxu0 0
        %823 = vmatprep.subr.bf16.mxu0 0
        %824 = vmatpush2.bf16.msra.mxu0 0
        %825 = vmatprep.subr.bf16.mxu0 0
        %826 = vmatpush2.bf16.msra.mxu0 0
        %827 = vmatprep.mubr.bf16.mxu0 0
        %828 = vmatmul.mubr.bf16.gmra.mxu0 %v793
        %v829 = vpop.f32.mrf.mxu0
        %v830 = vadd.f32 0.0, %v829
        %v831 = vpop.f32.mrf.mxu0
        %v832 = vpop.f32.mrf.mxu0
        %v833 = vpop.f32.mrf.mxu0
        %834 = vdwg.mxu0
        %v835 = vadd.f32 %v789, %v830
        %v836 = vxor.u32 %v835, 2147483648
        %v837 = vmul.f32 %v836, 1.442695
        %v838 = vpow.pop %v837
        %v839 = vadd.f32 %v838, 1.0
        %v840 = vrcp.pop %v839
        %v841 = vmul.f32 1.0, %v840
        %v842 = vtanh.pop %v835
        %v843 = vmul.f32 %v841, %v770
        %845 = vrot.lane.b32.xlu0 %v842, 32
        %v846 = vpop.permute.xlu0 %845
        %v848 = vmul.f32 %v841, %v846
        %850 = vrot.lane.b32.xlu0 %v848, 32
        %v851 = vpop.permute.xlu0 %850
        %v853 = vadd.f32 %v843, %v851
        %v854 = vtanh.pop %v853
        %856 = vrot.lane.b32.xlu0 %v854, 32
        %v857 = vpop.permute.xlu0 %856
        %v859 = vmul.f32 %v841, %v857
        %v860 = vpack.c.bf16 %v859, %v859
        %v862 = vunpack.c.l.b16 %v860
        %v863 = vpack.c.b16 %v862, %v862
        %864 = vrot.lane.b32.xlu0 %v863, 64
        %v865 = vpop.permute.xlu0 %864
        %s867 = scalar_lea.vmem [#allocation3], 12
        %868 = vst.msk [vmem:[%s867] sm:$0xf] %vm618, %v865
        %s869 = scalar_lea.vmem [#allocation2], 16
        %v870 = vld [vmem:[%s869] sm:$0xf]
        %v871 = vunpack.c.l.bf16 %v870
        %v872 = vadd.f32 %v871, %v376
        %873 = vrot.lane.b32.xlu0 %v860, 64
        %v874 = vpop.permute.xlu0 %873
        %v876 = vsel %vm410, %v874, 0
        %878 = vmatprep.subr.bf16.mxu0 0
        %879 = vmatpush1.bf16.msra.mxu0 0
        %880 = vmatprep.subr.bf16.mxu0 0
        %881 = vmatpush1.bf16.msra.mxu0 0
        %882 = vmatprep.subr.bf16.mxu0 0
        %883 = vmatpush1.bf16.msra.mxu0 0
        %884 = vmatprep.subr.bf16.mxu0 0
        %885 = vmatpush1.bf16.msra.mxu0 0
        %886 = vmatprep.subr.bf16.mxu0 0
        %887 = vmatpush1.bf16.msra.mxu0 0
        %888 = vmatprep.subr.bf16.mxu0 0
        %889 = vmatpush1.bf16.msra.mxu0 0
        %890 = vmatprep.subr.bf16.mxu0 0
        %891 = vmatpush1.bf16.msra.mxu0 %v540
        %892 = vmatprep.subr.bf16.mxu0 0
        %893 = vmatpush1.bf16.msra.mxu0 %v539
        %894 = vmatprep.subr.bf16.mxu0 0
        %895 = vmatpush2.bf16.msra.mxu0 0
        %896 = vmatprep.subr.bf16.mxu0 0
        %897 = vmatpush2.bf16.msra.mxu0 0
        %898 = vmatprep.subr.bf16.mxu0 0
        %899 = vmatpush2.bf16.msra.mxu0 0
        %900 = vmatprep.subr.bf16.mxu0 0
        %901 = vmatpush2.bf16.msra.mxu0 0
        %902 = vmatprep.subr.bf16.mxu0 0
        %903 = vmatpush2.bf16.msra.mxu0 0
        %904 = vmatprep.subr.bf16.mxu0 0
        %905 = vmatpush2.bf16.msra.mxu0 0
        %906 = vmatprep.subr.bf16.mxu0 0
        %907 = vmatpush2.bf16.msra.mxu0 0
        %908 = vmatprep.subr.bf16.mxu0 0
        %909 = vmatpush2.bf16.msra.mxu0 0
        %910 = vmatprep.mubr.bf16.mxu0 0
        %911 = vmatmul.mubr.bf16.gmra.mxu0 %v876
        %v912 = vpop.f32.mrf.mxu0
        %v913 = vadd.f32 0.0, %v912
        %v914 = vpop.f32.mrf.mxu0
        %v915 = vpop.f32.mrf.mxu0
        %v916 = vpop.f32.mrf.mxu0
        %917 = vdwg.mxu0
        %v918 = vadd.f32 %v872, %v913
        %v919 = vxor.u32 %v918, 2147483648
        %v920 = vmul.f32 %v919, 1.442695
        %v921 = vpow.pop %v920
        %v922 = vadd.f32 %v921, 1.0
        %v923 = vrcp.pop %v922
        %v924 = vmul.f32 1.0, %v923
        %v925 = vtanh.pop %v918
        %v926 = vmul.f32 %v924, %v853
        %928 = vrot.lane.b32.xlu0 %v925, 32
        %v929 = vpop.permute.xlu0 %928
        %v931 = vmul.f32 %v924, %v929
        %933 = vrot.lane.b32.xlu0 %v931, 32
        %v934 = vpop.permute.xlu0 %933
        %v936 = vadd.f32 %v926, %v934
        %v937 = vtanh.pop %v936
        %939 = vrot.lane.b32.xlu0 %v937, 32
        %v940 = vpop.permute.xlu0 %939
        %v942 = vmul.f32 %v924, %v940
        %v943 = vpack.c.bf16 %v942, %v942
        %v945 = vunpack.c.l.b16 %v943
        %v946 = vpack.c.b16 %v945, %v945
        %947 = vrot.lane.b32.xlu0 %v946, 64
        %v948 = vpop.permute.xlu0 %947
        %s950 = scalar_lea.vmem [#allocation3], 16
        %951 = vst.msk [vmem:[%s950] sm:$0xf] %vm618, %v948
        %s952 = scalar_lea.vmem [#allocation2], 20
        %v953 = vld [vmem:[%s952] sm:$0xf]
        %v954 = vunpack.c.l.bf16 %v953
        %v955 = vadd.f32 %v954, %v376
        %956 = vrot.lane.b32.xlu0 %v943, 64
        %v957 = vpop.permute.xlu0 %956
        %v959 = vsel %vm410, %v957, 0
        %961 = vmatprep.subr.bf16.mxu0 0
        %962 = vmatpush1.bf16.msra.mxu0 0
        %963 = vmatprep.subr.bf16.mxu0 0
        %964 = vmatpush1.bf16.msra.mxu0 0
        %965 = vmatprep.subr.bf16.mxu0 0
        %966 = vmatpush1.bf16.msra.mxu0 0
        %967 = vmatprep.subr.bf16.mxu0 0
        %968 = vmatpush1.bf16.msra.mxu0 0
        %969 = vmatprep.subr.bf16.mxu0 0
        %970 = vmatpush1.bf16.msra.mxu0 0
        %971 = vmatprep.subr.bf16.mxu0 0
        %972 = vmatpush1.bf16.msra.mxu0 0
        %973 = vmatprep.subr.bf16.mxu0 0
        %974 = vmatpush1.bf16.msra.mxu0 %v540
        %975 = vmatprep.subr.bf16.mxu0 0
        %976 = vmatpush1.bf16.msra.mxu0 %v539
        %977 = vmatprep.subr.bf16.mxu0 0
        %978 = vmatpush2.bf16.msra.mxu0 0
        %979 = vmatprep.subr.bf16.mxu0 0
        %980 = vmatpush2.bf16.msra.mxu0 0
        %981 = vmatprep.subr.bf16.mxu0 0
        %982 = vmatpush2.bf16.msra.mxu0 0
        %983 = vmatprep.subr.bf16.mxu0 0
        %984 = vmatpush2.bf16.msra.mxu0 0
        %985 = vmatprep.subr.bf16.mxu0 0
        %986 = vmatpush2.bf16.msra.mxu0 0
        %987 = vmatprep.subr.bf16.mxu0 0
        %988 = vmatpush2.bf16.msra.mxu0 0
        %989 = vmatprep.subr.bf16.mxu0 0
        %990 = vmatpush2.bf16.msra.mxu0 0
        %991 = vmatprep.subr.bf16.mxu0 0
        %992 = vmatpush2.bf16.msra.mxu0 0
        %993 = vmatprep.mubr.bf16.mxu0 0
        %994 = vmatmul.mubr.bf16.gmra.mxu0 %v959
        %v995 = vpop.f32.mrf.mxu0
        %v996 = vadd.f32 0.0, %v995
        %v997 = vpop.f32.mrf.mxu0
        %v998 = vpop.f32.mrf.mxu0
        %v999 = vpop.f32.mrf.mxu0
        %1000 = vdwg.mxu0
        %v1001 = vadd.f32 %v955, %v996
        %v1002 = vxor.u32 %v1001, 2147483648
        %v1003 = vmul.f32 %v1002, 1.442695
        %v1004 = vpow.pop %v1003
        %v1005 = vadd.f32 %v1004, 1.0
        %v1006 = vrcp.pop %v1005
        %v1007 = vmul.f32 1.0, %v1006
        %v1008 = vtanh.pop %v1001
        %v1009 = vmul.f32 %v1007, %v936
        %1011 = vrot.lane.b32.xlu0 %v1008, 32
        %v1012 = vpop.permute.xlu0 %1011
        %v1014 = vmul.f32 %v1007, %v1012
        %1016 = vrot.lane.b32.xlu0 %v1014, 32
        %v1017 = vpop.permute.xlu0 %1016
        %v1019 = vadd.f32 %v1009, %v1017
        %v1020 = vtanh.pop %v1019
        %1022 = vrot.lane.b32.xlu0 %v1020, 32
        %v1023 = vpop.permute.xlu0 %1022
        %v1025 = vmul.f32 %v1007, %v1023
        %v1026 = vpack.c.bf16 %v1025, %v1025
        %v1028 = vunpack.c.l.b16 %v1026
        %v1029 = vpack.c.b16 %v1028, %v1028
        %1030 = vrot.lane.b32.xlu0 %v1029, 64
        %v1031 = vpop.permute.xlu0 %1030
        %s1033 = scalar_lea.vmem [#allocation3], 20
        %1034 = vst.msk [vmem:[%s1033] sm:$0xf] %vm618, %v1031
        %s1035 = scalar_lea.vmem [#allocation2], 24
        %v1036 = vld [vmem:[%s1035] sm:$0xf]
        %v1037 = vunpack.c.l.bf16 %v1036
        %v1038 = vadd.f32 %v1037, %v376
        %1039 = vrot.lane.b32.xlu0 %v1026, 64
        %v1040 = vpop.permute.xlu0 %1039
        %v1042 = vsel %vm410, %v1040, 0
        %1044 = vmatprep.subr.bf16.mxu0 0
        %1045 = vmatpush1.bf16.msra.mxu0 0
        %1046 = vmatprep.subr.bf16.mxu0 0
        %1047 = vmatpush1.bf16.msra.mxu0 0
        %1048 = vmatprep.subr.bf16.mxu0 0
        %1049 = vmatpush1.bf16.msra.mxu0 0
        %1050 = vmatprep.subr.bf16.mxu0 0
        %1051 = vmatpush1.bf16.msra.mxu0 0
        %1052 = vmatprep.subr.bf16.mxu0 0
        %1053 = vmatpush1.bf16.msra.mxu0 0
        %1054 = vmatprep.subr.bf16.mxu0 0
        %1055 = vmatpush1.bf16.msra.mxu0 0
        %1056 = vmatprep.subr.bf16.mxu0 0
        %1057 = vmatpush1.bf16.msra.mxu0 %v540
        %1058 = vmatprep.subr.bf16.mxu0 0
        %1059 = vmatpush1.bf16.msra.mxu0 %v539
        %1060 = vmatprep.subr.bf16.mxu0 0
        %1061 = vmatpush2.bf16.msra.mxu0 0
        %1062 = vmatprep.subr.bf16.mxu0 0
        %1063 = vmatpush2.bf16.msra.mxu0 0
        %1064 = vmatprep.subr.bf16.mxu0 0
        %1065 = vmatpush2.bf16.msra.mxu0 0
        %1066 = vmatprep.subr.bf16.mxu0 0
        %1067 = vmatpush2.bf16.msra.mxu0 0
        %1068 = vmatprep.subr.bf16.mxu0 0
        %1069 = vmatpush2.bf16.msra.mxu0 0
        %1070 = vmatprep.subr.bf16.mxu0 0
        %1071 = vmatpush2.bf16.msra.mxu0 0
        %1072 = vmatprep.subr.bf16.mxu0 0
        %1073 = vmatpush2.bf16.msra.mxu0 0
        %1074 = vmatprep.subr.bf16.mxu0 0
        %1075 = vmatpush2.bf16.msra.mxu0 0
        %1076 = vmatprep.mubr.bf16.mxu0 0
        %1077 = vmatmul.mubr.bf16.gmra.mxu0 %v1042
        %v1078 = vpop.f32.mrf.mxu0
        %v1079 = vadd.f32 0.0, %v1078
        %v1080 = vpop.f32.mrf.mxu0
        %v1081 = vpop.f32.mrf.mxu0
        %v1082 = vpop.f32.mrf.mxu0
        %1083 = vdwg.mxu0
        %v1084 = vadd.f32 %v1038, %v1079
        %v1085 = vxor.u32 %v1084, 2147483648
        %v1086 = vmul.f32 %v1085, 1.442695
        %v1087 = vpow.pop %v1086
        %v1088 = vadd.f32 %v1087, 1.0
        %v1089 = vrcp.pop %v1088
        %v1090 = vmul.f32 1.0, %v1089
        %v1091 = vtanh.pop %v1084
        %v1092 = vmul.f32 %v1090, %v1019
        %1094 = vrot.lane.b32.xlu0 %v1091, 32
        %v1095 = vpop.permute.xlu0 %1094
        %v1097 = vmul.f32 %v1090, %v1095
        %1099 = vrot.lane.b32.xlu0 %v1097, 32
        %v1100 = vpop.permute.xlu0 %1099
        %v1102 = vadd.f32 %v1092, %v1100
        %v1103 = vtanh.pop %v1102
        %1105 = vrot.lane.b32.xlu0 %v1103, 32
        %v1106 = vpop.permute.xlu0 %1105
        %v1108 = vmul.f32 %v1090, %v1106
        %v1109 = vpack.c.bf16 %v1108, %v1108
        %v1111 = vunpack.c.l.b16 %v1109
        %v1112 = vpack.c.b16 %v1111, %v1111
        %1113 = vrot.lane.b32.xlu0 %v1112, 64
        %v1114 = vpop.permute.xlu0 %1113
        %s1116 = scalar_lea.vmem [#allocation3], 24
        %1117 = vst.msk [vmem:[%s1116] sm:$0xf] %vm618, %v1114
        %s1118 = scalar_lea.vmem [#allocation2], 28
        %v1119 = vld [vmem:[%s1118] sm:$0xf]
        %v1120 = vunpack.c.l.bf16 %v1119
        %v1121 = vadd.f32 %v1120, %v376
        %1122 = vrot.lane.b32.xlu0 %v1109, 64
        %v1123 = vpop.permute.xlu0 %1122
        %v1125 = vsel %vm410, %v1123, 0
        %1127 = vmatprep.subr.bf16.mxu0 0
        %1128 = vmatpush1.bf16.msra.mxu0 0
        %1129 = vmatprep.subr.bf16.mxu0 0
        %1130 = vmatpush1.bf16.msra.mxu0 0
        %1131 = vmatprep.subr.bf16.mxu0 0
        %1132 = vmatpush1.bf16.msra.mxu0 0
        %1133 = vmatprep.subr.bf16.mxu0 0
        %1134 = vmatpush1.bf16.msra.mxu0 0
        %1135 = vmatprep.subr.bf16.mxu0 0
        %1136 = vmatpush1.bf16.msra.mxu0 0
        %1137 = vmatprep.subr.bf16.mxu0 0
        %1138 = vmatpush1.bf16.msra.mxu0 0
        %1139 = vmatprep.subr.bf16.mxu0 0
        %1140 = vmatpush1.bf16.msra.mxu0 %v540
        %1141 = vmatprep.subr.bf16.mxu0 0
        %1142 = vmatpush1.bf16.msra.mxu0 %v539
        %1143 = vmatprep.subr.bf16.mxu0 0
        %1144 = vmatpush2.bf16.msra.mxu0 0
        %1145 = vmatprep.subr.bf16.mxu0 0
        %1146 = vmatpush2.bf16.msra.mxu0 0
        %1147 = vmatprep.subr.bf16.mxu0 0
        %1148 = vmatpush2.bf16.msra.mxu0 0
        %1149 = vmatprep.subr.bf16.mxu0 0
        %1150 = vmatpush2.bf16.msra.mxu0 0
        %1151 = vmatprep.subr.bf16.mxu0 0
        %1152 = vmatpush2.bf16.msra.mxu0 0
        %1153 = vmatprep.subr.bf16.mxu0 0
        %1154 = vmatpush2.bf16.msra.mxu0 0
        %1155 = vmatprep.subr.bf16.mxu0 0
        %1156 = vmatpush2.bf16.msra.mxu0 0
        %1157 = vmatprep.subr.bf16.mxu0 0
        %1158 = vmatpush2.bf16.msra.mxu0 0
        %1159 = vmatprep.mubr.bf16.mxu0 0
        %1160 = vmatmul.mubr.bf16.gmra.mxu0 %v1125
        %v1161 = vpop.f32.mrf.mxu0
        %v1162 = vadd.f32 0.0, %v1161
        %v1163 = vpop.f32.mrf.mxu0
        %v1164 = vpop.f32.mrf.mxu0
        %v1165 = vpop.f32.mrf.mxu0
        %1166 = vdwg.mxu0
        %v1167 = vadd.f32 %v1121, %v1162
        %v1168 = vxor.u32 %v1167, 2147483648
        %v1169 = vmul.f32 %v1168, 1.442695
        %v1170 = vpow.pop %v1169
        %v1171 = vadd.f32 %v1170, 1.0
        %v1172 = vrcp.pop %v1171
        %v1173 = vmul.f32 1.0, %v1172
        %v1174 = vtanh.pop %v1167
        %v1175 = vmul.f32 %v1173, %v1102
        %1177 = vrot.lane.b32.xlu0 %v1174, 32
        %v1178 = vpop.permute.xlu0 %1177
        %v1180 = vmul.f32 %v1173, %v1178
        %1182 = vrot.lane.b32.xlu0 %v1180, 32
        %v1183 = vpop.permute.xlu0 %1182
        %v1185 = vadd.f32 %v1175, %v1183
        %v1186 = vtanh.pop %v1185
        %1188 = vrot.lane.b32.xlu0 %v1186, 32
        %v1189 = vpop.permute.xlu0 %1188
        %v1191 = vmul.f32 %v1173, %v1189
        %v1192 = vpack.c.bf16 %v1191, %v1191
        %v1194 = vunpack.c.l.b16 %v1192
        %v1195 = vpack.c.b16 %v1194, %v1194
        %1196 = vrot.lane.b32.xlu0 %v1195, 64
        %v1197 = vpop.permute.xlu0 %1196
        %s1199 = scalar_lea.vmem [#allocation3], 28
        %1200 = vst.msk [vmem:[%s1199] sm:$0xf] %vm618, %v1197
        %1202 = vrot.lane.b32.xlu0 %v1191, 64
        %v1203 = vpop.permute.xlu0 %1202
        %1205 = vst.msk [vmem:[%s336] sm:$0xff] %vm410, %v1203
        %1207 = vrot.lane.b32.xlu0 %v1185, 96
        %v1208 = vpop.permute.xlu0 %1207
        %1210 = vst.msk [vmem:[%s343] sm:$0xff] %vm410, %v1208
        %v1211 = vld [vmem:[#allocation3] sm:$0xf]
        %v1212 = vld [vmem:[#allocation3 + $0x4] sm:$0xf]
        %v1213 = vld [vmem:[#allocation3 + $0x8] sm:$0xf]
        %v1214 = vld [vmem:[#allocation3 + $0xc] sm:$0xf]
        %v1215 = vld [vmem:[#allocation3 + $0x10] sm:$0xf]
        %v1216 = vld [vmem:[#allocation3 + $0x14] sm:$0xf]
        %v1217 = vld [vmem:[#allocation3 + $0x18] sm:$0xf]
        %v1218 = vld [vmem:[#allocation3 + $0x1c] sm:$0xf]
        %v1219 = vld [vmem:[%s4] sm:$0xf]
        %v1220 = vld [vmem:[%s4 + $0x4] sm:$0xf]
        %v1221 = vld [vmem:[%s4 + $0x8] sm:$0xf]
        %v1222 = vld [vmem:[%s4 + $0xc] sm:$0xf]
        %v1223 = vld [vmem:[%s5] sm:$0xf]
        %v1224 = vld [vmem:[%s5 + $0x4] sm:$0xf]
        %v1225 = vld [vmem:[%s5 + $0x8] sm:$0xf]
        %v1226 = vld [vmem:[%s5 + $0xc] sm:$0xf]
        %v1227 = vld [vmem:[%s6] sm:$0x1]
        %v1229 = vlaneseq
        %v1230 = vshrl.u32 %v1229, 7
        %v1231 = vsub.s32 0, %v1230
        %v1232 = vrot.slane %v1227, %v1231
        %v1242 = vunpack.c.l.b16 %v1211
        %v1243 = vunpack.c.l.b16 %v1212
        %v1244 = vunpack.c.l.b16 %v1213
        %v1245 = vunpack.c.l.b16 %v1214
        %v1246 = vunpack.c.l.b16 %v1215
        %v1247 = vunpack.c.l.b16 %v1216
        %v1248 = vunpack.c.l.b16 %v1217
        %v1249 = vunpack.c.l.b16 %v1218
        %v1250 = vpack.c.b16 %v1243, %v1242
        %v1251 = vpack.c.b16 %v1245, %v1244
        %v1252 = vpack.c.b16 %v1247, %v1246
        %v1253 = vpack.c.b16 %v1249, %v1248
        %v1258 = vunpack.c.l.b16 %v1219
        %v1259 = vunpack.c.l.b16 %v1220
        %v1260 = vunpack.c.l.b16 %v1221
        %v1261 = vunpack.c.l.b16 %v1222
        %v1262 = vpack.c.b16 %v1259, %v1258
        %v1263 = vpack.c.b16 %v1261, %v1260
        %v1267 = vsel %vm410, %v1250, 0
        %v1270 = vsel %vm410, %v1251, 0
        %v1273 = vsel %vm410, %v1252, 0
        %v1276 = vsel %vm410, %v1253, 0
        %1278 = vmatprep.subr.bf16.mxu0 0
        %1279 = vmatpush1.bf16.msra.mxu0 0
        %1280 = vmatprep.subr.bf16.mxu0 0
        %1281 = vmatpush1.bf16.msra.mxu0 0
        %1282 = vmatprep.subr.bf16.mxu0 0
        %1283 = vmatpush1.bf16.msra.mxu0 0
        %1284 = vmatprep.subr.bf16.mxu0 0
        %1285 = vmatpush1.bf16.msra.mxu0 0
        %1286 = vmatprep.subr.bf16.mxu0 0
        %1287 = vmatpush1.bf16.msra.mxu0 0
        %1288 = vmatprep.subr.bf16.mxu0 0
        %1289 = vmatpush1.bf16.msra.mxu0 0
        %1290 = vmatprep.subr.bf16.mxu0 0
        %1291 = vmatpush1.bf16.msra.mxu0 %v1263
        %1292 = vmatprep.subr.bf16.mxu0 0
        %1293 = vmatpush1.bf16.msra.mxu0 %v1262
        %1294 = vmatprep.subr.bf16.mxu0 0
        %1295 = vmatpush2.bf16.msra.mxu0 0
        %1296 = vmatprep.subr.bf16.mxu0 0
        %1297 = vmatpush2.bf16.msra.mxu0 0
        %1298 = vmatprep.subr.bf16.mxu0 0
        %1299 = vmatpush2.bf16.msra.mxu0 0
        %1300 = vmatprep.subr.bf16.mxu0 0
        %1301 = vmatpush2.bf16.msra.mxu0 0
        %1302 = vmatprep.subr.bf16.mxu0 0
        %1303 = vmatpush2.bf16.msra.mxu0 0
        %1304 = vmatprep.subr.bf16.mxu0 0
        %1305 = vmatpush2.bf16.msra.mxu0 0
        %1306 = vmatprep.subr.bf16.mxu0 0
        %1307 = vmatpush2.bf16.msra.mxu0 0
        %1308 = vmatprep.subr.bf16.mxu0 0
        %1309 = vmatpush2.bf16.msra.mxu0 0
        %1310 = vmatprep.mubr.bf16.mxu0 0
        %1311 = vmatmul.mubr.bf16.gmra.mxu0 %v1267
        %v1312 = vpop.f32.mrf.mxu0
        %v1313 = vadd.f32 0.0, %v1312
        %v1314 = vpop.f32.mrf.mxu0
        %v1315 = vpop.f32.mrf.mxu0
        %v1316 = vadd.f32 0.0, %v1315
        %v1317 = vpop.f32.mrf.mxu0
        %1318 = vmatprep.mubr.bf16.mxu0 0
        %1319 = vmatmul.mubr.bf16.gmra.mxu0 %v1270
        %v1320 = vpop.f32.mrf.mxu0
        %v1321 = vadd.f32 0.0, %v1320
        %v1322 = vpop.f32.mrf.mxu0
        %v1323 = vpop.f32.mrf.mxu0
        %v1324 = vadd.f32 0.0, %v1323
        %v1325 = vpop.f32.mrf.mxu0
        %1326 = vmatprep.mubr.bf16.mxu0 0
        %1327 = vmatmul.mubr.bf16.gmra.mxu0 %v1273
        %v1328 = vpop.f32.mrf.mxu0
        %v1329 = vadd.f32 0.0, %v1328
        %v1330 = vpop.f32.mrf.mxu0
        %v1331 = vpop.f32.mrf.mxu0
        %v1332 = vadd.f32 0.0, %v1331
        %v1333 = vpop.f32.mrf.mxu0
        %1334 = vmatprep.mubr.bf16.mxu0 0
        %1335 = vmatmul.mubr.bf16.gmra.mxu0 %v1276
        %v1336 = vpop.f32.mrf.mxu0
        %v1337 = vadd.f32 0.0, %v1336
        %v1338 = vpop.f32.mrf.mxu0
        %v1339 = vpop.f32.mrf.mxu0
        %v1340 = vadd.f32 0.0, %v1339
        %v1341 = vpop.f32.mrf.mxu0
        %1342 = vdwg.mxu0
        %v1343 = vpack.c.bf16 %v1316, %v1313
        %v1344 = vpack.c.bf16 %v1324, %v1321
        %v1345 = vpack.c.bf16 %v1332, %v1329
        %v1346 = vpack.c.bf16 %v1340, %v1337
        %v1351 = vunpack.c.l.b16 %v1343
        %v1352 = vunpack.c.h.b16 %v1343
        %v1353 = vunpack.c.l.b16 %v1344
        %v1354 = vunpack.c.h.b16 %v1344
        %v1355 = vunpack.c.l.b16 %v1345
        %v1356 = vunpack.c.h.b16 %v1345
        %v1357 = vunpack.c.l.b16 %v1346
        %v1358 = vunpack.c.h.b16 %v1346
        %v1359 = vpack.c.b16 %v1351, %v1351
        %v1360 = vpack.c.b16 %v1352, %v1352
        %v1361 = vpack.c.b16 %v1353, %v1353
        %v1362 = vpack.c.b16 %v1354, %v1354
        %v1363 = vpack.c.b16 %v1355, %v1355
        %v1364 = vpack.c.b16 %v1356, %v1356
        %v1365 = vpack.c.b16 %v1357, %v1357
        %v1366 = vpack.c.b16 %v1358, %v1358
        %1375 = vst [vmem:[#allocation2] sm:$0xf] %v1359
        %1376 = vst [vmem:[#allocation2 + $0x4] sm:$0xf] %v1360
        %1377 = vst [vmem:[#allocation2 + $0x8] sm:$0xf] %v1361
        %1378 = vst [vmem:[#allocation2 + $0xc] sm:$0xf] %v1362
        %1379 = vst [vmem:[#allocation2 + $0x10] sm:$0xf] %v1363
        %1380 = vst [vmem:[#allocation2 + $0x14] sm:$0xf] %v1364
        %1381 = vst [vmem:[#allocation2 + $0x18] sm:$0xf] %v1365
        %1382 = vst [vmem:[#allocation2 + $0x1c] sm:$0xf] %v1366
        %v1383 = vld [vmem:[#allocation2] sm:$0xf]
        %v1384 = vunpack.c.l.bf16 %v1383
        %v1385 = vadd.f32 %v1384, %v1232
        %v1390 = vunpack.c.l.b16 %v1223
        %v1391 = vunpack.c.l.b16 %v1224
        %v1392 = vunpack.c.l.b16 %v1225
        %v1393 = vunpack.c.l.b16 %v1226
        %v1394 = vpack.c.b16 %v1391, %v1390
        %v1395 = vpack.c.b16 %v1393, %v1392
        %1398 = vmatprep.subr.bf16.mxu0 0
        %1399 = vmatpush1.bf16.msra.mxu0 0
        %1400 = vmatprep.subr.bf16.mxu0 0
        %1401 = vmatpush1.bf16.msra.mxu0 0
        %1402 = vmatprep.subr.bf16.mxu0 0
        %1403 = vmatpush1.bf16.msra.mxu0 0
        %1404 = vmatprep.subr.bf16.mxu0 0
        %1405 = vmatpush1.bf16.msra.mxu0 0
        %1406 = vmatprep.subr.bf16.mxu0 0
        %1407 = vmatpush1.bf16.msra.mxu0 0
        %1408 = vmatprep.subr.bf16.mxu0 0
        %1409 = vmatpush1.bf16.msra.mxu0 0
        %1410 = vmatprep.subr.bf16.mxu0 0
        %1411 = vmatpush1.bf16.msra.mxu0 %v1395
        %1412 = vmatprep.subr.bf16.mxu0 0
        %1413 = vmatpush1.bf16.msra.mxu0 %v1394
        %1414 = vmatprep.subr.bf16.mxu0 0
        %1415 = vmatpush2.bf16.msra.mxu0 0
        %1416 = vmatprep.subr.bf16.mxu0 0
        %1417 = vmatpush2.bf16.msra.mxu0 0
        %1418 = vmatprep.subr.bf16.mxu0 0
        %1419 = vmatpush2.bf16.msra.mxu0 0
        %1420 = vmatprep.subr.bf16.mxu0 0
        %1421 = vmatpush2.bf16.msra.mxu0 0
        %1422 = vmatprep.subr.bf16.mxu0 0
        %1423 = vmatpush2.bf16.msra.mxu0 0
        %1424 = vmatprep.subr.bf16.mxu0 0
        %1425 = vmatpush2.bf16.msra.mxu0 0
        %1426 = vmatprep.subr.bf16.mxu0 0
        %1427 = vmatpush2.bf16.msra.mxu0 0
        %1428 = vmatprep.subr.bf16.mxu0 0
        %1429 = vmatpush2.bf16.msra.mxu0 0
        %1430 = vmatprep.mubr.bf16.mxu0 0
        %1431 = vmatmul.mubr.bf16.gmra.mxu0 %v544
        %v1432 = vpop.f32.mrf.mxu0
        %v1433 = vadd.f32 0.0, %v1432
        %v1434 = vpop.f32.mrf.mxu0
        %v1435 = vpop.f32.mrf.mxu0
        %v1436 = vpop.f32.mrf.mxu0
        %1437 = vdwg.mxu0
        %v1438 = vadd.f32 %v1385, %v1433
        %v1439 = vxor.u32 %v1438, 2147483648
        %v1440 = vmul.f32 %v1439, 1.442695
        %v1441 = vpow.pop %v1440
        %v1442 = vadd.f32 %v1441, 1.0
        %v1443 = vrcp.pop %v1442
        %v1444 = vmul.f32 1.0, %v1443
        %v1445 = vtanh.pop %v1438
        %v1446 = vmul.f32 %v1444, 0.0
        %1448 = vrot.lane.b32.xlu0 %v1445, 32
        %v1449 = vpop.permute.xlu0 %1448
        %v1451 = vmul.f32 %v1444, %v1449
        %1453 = vrot.lane.b32.xlu0 %v1451, 32
        %v1454 = vpop.permute.xlu0 %1453
        %v1456 = vadd.f32 %v1446, %v1454
        %v1457 = vtanh.pop %v1456
        %1459 = vrot.lane.b32.xlu0 %v1457, 32
        %v1460 = vpop.permute.xlu0 %1459
        %v1462 = vmul.f32 %v1444, %v1460
        %v1463 = vpack.c.bf16 %v1462, %v1462
        %v1465 = vunpack.c.l.b16 %v1463
        %v1466 = vpack.c.b16 %v1465, %v1465
        %1467 = vrot.lane.b32.xlu0 %v1466, 64
        %v1468 = vpop.permute.xlu0 %1467
        %1470 = vst.msk [vmem:[%s353] sm:$0xf] %vm618, %v1468
        %v1471 = vld [vmem:[%s620] sm:$0xf]
        %v1472 = vunpack.c.l.bf16 %v1471
        %v1473 = vadd.f32 %v1472, %v1232
        %1474 = vrot.lane.b32.xlu0 %v1463, 64
        %v1475 = vpop.permute.xlu0 %1474
        %v1477 = vsel %vm410, %v1475, 0
        %1479 = vmatprep.subr.bf16.mxu0 0
        %1480 = vmatpush1.bf16.msra.mxu0 0
        %1481 = vmatprep.subr.bf16.mxu0 0
        %1482 = vmatpush1.bf16.msra.mxu0 0
        %1483 = vmatprep.subr.bf16.mxu0 0
        %1484 = vmatpush1.bf16.msra.mxu0 0
        %1485 = vmatprep.subr.bf16.mxu0 0
        %1486 = vmatpush1.bf16.msra.mxu0 0
        %1487 = vmatprep.subr.bf16.mxu0 0
        %1488 = vmatpush1.bf16.msra.mxu0 0
        %1489 = vmatprep.subr.bf16.mxu0 0
        %1490 = vmatpush1.bf16.msra.mxu0 0
        %1491 = vmatprep.subr.bf16.mxu0 0
        %1492 = vmatpush1.bf16.msra.mxu0 %v1395
        %1493 = vmatprep.subr.bf16.mxu0 0
        %1494 = vmatpush1.bf16.msra.mxu0 %v1394
        %1495 = vmatprep.subr.bf16.mxu0 0
        %1496 = vmatpush2.bf16.msra.mxu0 0
        %1497 = vmatprep.subr.bf16.mxu0 0
        %1498 = vmatpush2.bf16.msra.mxu0 0
        %1499 = vmatprep.subr.bf16.mxu0 0
        %1500 = vmatpush2.bf16.msra.mxu0 0
        %1501 = vmatprep.subr.bf16.mxu0 0
        %1502 = vmatpush2.bf16.msra.mxu0 0
        %1503 = vmatprep.subr.bf16.mxu0 0
        %1504 = vmatpush2.bf16.msra.mxu0 0
        %1505 = vmatprep.subr.bf16.mxu0 0
        %1506 = vmatpush2.bf16.msra.mxu0 0
        %1507 = vmatprep.subr.bf16.mxu0 0
        %1508 = vmatpush2.bf16.msra.mxu0 0
        %1509 = vmatprep.subr.bf16.mxu0 0
        %1510 = vmatpush2.bf16.msra.mxu0 0
        %1511 = vmatprep.mubr.bf16.mxu0 0
        %1512 = vmatmul.mubr.bf16.gmra.mxu0 %v1477
        %v1513 = vpop.f32.mrf.mxu0
        %v1514 = vadd.f32 0.0, %v1513
        %v1515 = vpop.f32.mrf.mxu0
        %v1516 = vpop.f32.mrf.mxu0
        %v1517 = vpop.f32.mrf.mxu0
        %1518 = vdwg.mxu0
        %v1519 = vadd.f32 %v1473, %v1514
        %v1520 = vxor.u32 %v1519, 2147483648
        %v1521 = vmul.f32 %v1520, 1.442695
        %v1522 = vpow.pop %v1521
        %v1523 = vadd.f32 %v1522, 1.0
        %v1524 = vrcp.pop %v1523
        %v1525 = vmul.f32 1.0, %v1524
        %v1526 = vtanh.pop %v1519
        %v1527 = vmul.f32 %v1525, %v1456
        %1529 = vrot.lane.b32.xlu0 %v1526, 32
        %v1530 = vpop.permute.xlu0 %1529
        %v1532 = vmul.f32 %v1525, %v1530
        %1534 = vrot.lane.b32.xlu0 %v1532, 32
        %v1535 = vpop.permute.xlu0 %1534
        %v1537 = vadd.f32 %v1527, %v1535
        %v1538 = vtanh.pop %v1537
        %1540 = vrot.lane.b32.xlu0 %v1538, 32
        %v1541 = vpop.permute.xlu0 %1540
        %v1543 = vmul.f32 %v1525, %v1541
        %v1544 = vpack.c.bf16 %v1543, %v1543
        %v1546 = vunpack.c.l.b16 %v1544
        %v1547 = vpack.c.b16 %v1546, %v1546
        %1548 = vrot.lane.b32.xlu0 %v1547, 64
        %v1549 = vpop.permute.xlu0 %1548
        %s1551 = scalar_lea.vmem %s353, 4
        %1552 = vst.msk [vmem:[%s1551] sm:$0xf] %vm618, %v1549
        %v1553 = vld [vmem:[%s703] sm:$0xf]
        %v1554 = vunpack.c.l.bf16 %v1553
        %v1555 = vadd.f32 %v1554, %v1232
        %1556 = vrot.lane.b32.xlu0 %v1544, 64
        %v1557 = vpop.permute.xlu0 %1556
        %v1559 = vsel %vm410, %v1557, 0
        %1561 = vmatprep.subr.bf16.mxu0 0
        %1562 = vmatpush1.bf16.msra.mxu0 0
        %1563 = vmatprep.subr.bf16.mxu0 0
        %1564 = vmatpush1.bf16.msra.mxu0 0
        %1565 = vmatprep.subr.bf16.mxu0 0
        %1566 = vmatpush1.bf16.msra.mxu0 0
        %1567 = vmatprep.subr.bf16.mxu0 0
        %1568 = vmatpush1.bf16.msra.mxu0 0
        %1569 = vmatprep.subr.bf16.mxu0 0
        %1570 = vmatpush1.bf16.msra.mxu0 0
        %1571 = vmatprep.subr.bf16.mxu0 0
        %1572 = vmatpush1.bf16.msra.mxu0 0
        %1573 = vmatprep.subr.bf16.mxu0 0
        %1574 = vmatpush1.bf16.msra.mxu0 %v1395
        %1575 = vmatprep.subr.bf16.mxu0 0
        %1576 = vmatpush1.bf16.msra.mxu0 %v1394
        %1577 = vmatprep.subr.bf16.mxu0 0
        %1578 = vmatpush2.bf16.msra.mxu0 0
        %1579 = vmatprep.subr.bf16.mxu0 0
        %1580 = vmatpush2.bf16.msra.mxu0 0
        %1581 = vmatprep.subr.bf16.mxu0 0
        %1582 = vmatpush2.bf16.msra.mxu0 0
        %1583 = vmatprep.subr.bf16.mxu0 0
        %1584 = vmatpush2.bf16.msra.mxu0 0
        %1585 = vmatprep.subr.bf16.mxu0 0
        %1586 = vmatpush2.bf16.msra.mxu0 0
        %1587 = vmatprep.subr.bf16.mxu0 0
        %1588 = vmatpush2.bf16.msra.mxu0 0
        %1589 = vmatprep.subr.bf16.mxu0 0
        %1590 = vmatpush2.bf16.msra.mxu0 0
        %1591 = vmatprep.subr.bf16.mxu0 0
        %1592 = vmatpush2.bf16.msra.mxu0 0
        %1593 = vmatprep.mubr.bf16.mxu0 0
        %1594 = vmatmul.mubr.bf16.gmra.mxu0 %v1559
        %v1595 = vpop.f32.mrf.mxu0
        %v1596 = vadd.f32 0.0, %v1595
        %v1597 = vpop.f32.mrf.mxu0
        %v1598 = vpop.f32.mrf.mxu0
        %v1599 = vpop.f32.mrf.mxu0
        %1600 = vdwg.mxu0
        %v1601 = vadd.f32 %v1555, %v1596
        %v1602 = vxor.u32 %v1601, 2147483648
        %v1603 = vmul.f32 %v1602, 1.442695
        %v1604 = vpow.pop %v1603
        %v1605 = vadd.f32 %v1604, 1.0
        %v1606 = vrcp.pop %v1605
        %v1607 = vmul.f32 1.0, %v1606
        %v1608 = vtanh.pop %v1601
        %v1609 = vmul.f32 %v1607, %v1537
        %1611 = vrot.lane.b32.xlu0 %v1608, 32
        %v1612 = vpop.permute.xlu0 %1611
        %v1614 = vmul.f32 %v1607, %v1612
        %1616 = vrot.lane.b32.xlu0 %v1614, 32
        %v1617 = vpop.permute.xlu0 %1616
        %v1619 = vadd.f32 %v1609, %v1617
        %v1620 = vtanh.pop %v1619
        %1622 = vrot.lane.b32.xlu0 %v1620, 32
        %v1623 = vpop.permute.xlu0 %1622
        %v1625 = vmul.f32 %v1607, %v1623
        %v1626 = vpack.c.bf16 %v1625, %v1625
        %v1628 = vunpack.c.l.b16 %v1626
        %v1629 = vpack.c.b16 %v1628, %v1628
        %1630 = vrot.lane.b32.xlu0 %v1629, 64
        %v1631 = vpop.permute.xlu0 %1630
        %s1633 = scalar_lea.vmem %s353, 8
        %1634 = vst.msk [vmem:[%s1633] sm:$0xf] %vm618, %v1631
        %v1635 = vld [vmem:[%s786] sm:$0xf]
        %v1636 = vunpack.c.l.bf16 %v1635
        %v1637 = vadd.f32 %v1636, %v1232
        %1638 = vrot.lane.b32.xlu0 %v1626, 64
        %v1639 = vpop.permute.xlu0 %1638
        %v1641 = vsel %vm410, %v1639, 0
        %1643 = vmatprep.subr.bf16.mxu0 0
        %1644 = vmatpush1.bf16.msra.mxu0 0
        %1645 = vmatprep.subr.bf16.mxu0 0
        %1646 = vmatpush1.bf16.msra.mxu0 0
        %1647 = vmatprep.subr.bf16.mxu0 0
        %1648 = vmatpush1.bf16.msra.mxu0 0
        %1649 = vmatprep.subr.bf16.mxu0 0
        %1650 = vmatpush1.bf16.msra.mxu0 0
        %1651 = vmatprep.subr.bf16.mxu0 0
        %1652 = vmatpush1.bf16.msra.mxu0 0
        %1653 = vmatprep.subr.bf16.mxu0 0
        %1654 = vmatpush1.bf16.msra.mxu0 0
        %1655 = vmatprep.subr.bf16.mxu0 0
        %1656 = vmatpush1.bf16.msra.mxu0 %v1395
        %1657 = vmatprep.subr.bf16.mxu0 0
        %1658 = vmatpush1.bf16.msra.mxu0 %v1394
        %1659 = vmatprep.subr.bf16.mxu0 0
        %1660 = vmatpush2.bf16.msra.mxu0 0
        %1661 = vmatprep.subr.bf16.mxu0 0
        %1662 = vmatpush2.bf16.msra.mxu0 0
        %1663 = vmatprep.subr.bf16.mxu0 0
        %1664 = vmatpush2.bf16.msra.mxu0 0
        %1665 = vmatprep.subr.bf16.mxu0 0
        %1666 = vmatpush2.bf16.msra.mxu0 0
        %1667 = vmatprep.subr.bf16.mxu0 0
        %1668 = vmatpush2.bf16.msra.mxu0 0
        %1669 = vmatprep.subr.bf16.mxu0 0
        %1670 = vmatpush2.bf16.msra.mxu0 0
        %1671 = vmatprep.subr.bf16.mxu0 0
        %1672 = vmatpush2.bf16.msra.mxu0 0
        %1673 = vmatprep.subr.bf16.mxu0 0
        %1674 = vmatpush2.bf16.msra.mxu0 0
        %1675 = vmatprep.mubr.bf16.mxu0 0
        %1676 = vmatmul.mubr.bf16.gmra.mxu0 %v1641
        %v1677 = vpop.f32.mrf.mxu0
        %v1678 = vadd.f32 0.0, %v1677
        %v1679 = vpop.f32.mrf.mxu0
        %v1680 = vpop.f32.mrf.mxu0
        %v1681 = vpop.f32.mrf.mxu0
        %1682 = vdwg.mxu0
        %v1683 = vadd.f32 %v1637, %v1678
        %v1684 = vxor.u32 %v1683, 2147483648
        %v1685 = vmul.f32 %v1684, 1.442695
        %v1686 = vpow.pop %v1685
        %v1687 = vadd.f32 %v1686, 1.0
        %v1688 = vrcp.pop %v1687
        %v1689 = vmul.f32 1.0, %v1688
        %v1690 = vtanh.pop %v1683
        %v1691 = vmul.f32 %v1689, %v1619
        %1693 = vrot.lane.b32.xlu0 %v1690, 32
        %v1694 = vpop.permute.xlu0 %1693
        %v1696 = vmul.f32 %v1689, %v1694
        %1698 = vrot.lane.b32.xlu0 %v1696, 32
        %v1699 = vpop.permute.xlu0 %1698
        %v1701 = vadd.f32 %v1691, %v1699
        %v1702 = vtanh.pop %v1701
        %1704 = vrot.lane.b32.xlu0 %v1702, 32
        %v1705 = vpop.permute.xlu0 %1704
        %v1707 = vmul.f32 %v1689, %v1705
        %v1708 = vpack.c.bf16 %v1707, %v1707
        %v1710 = vunpack.c.l.b16 %v1708
        %v1711 = vpack.c.b16 %v1710, %v1710
        %1712 = vrot.lane.b32.xlu0 %v1711, 64
        %v1713 = vpop.permute.xlu0 %1712
        %s1715 = scalar_lea.vmem %s353, 12
        %1716 = vst.msk [vmem:[%s1715] sm:$0xf] %vm618, %v1713
        %v1717 = vld [vmem:[%s869] sm:$0xf]
        %v1718 = vunpack.c.l.bf16 %v1717
        %v1719 = vadd.f32 %v1718, %v1232
        %1720 = vrot.lane.b32.xlu0 %v1708, 64
        %v1721 = vpop.permute.xlu0 %1720
        %v1723 = vsel %vm410, %v1721, 0
        %1725 = vmatprep.subr.bf16.mxu0 0
        %1726 = vmatpush1.bf16.msra.mxu0 0
        %1727 = vmatprep.subr.bf16.mxu0 0
        %1728 = vmatpush1.bf16.msra.mxu0 0
        %1729 = vmatprep.subr.bf16.mxu0 0
        %1730 = vmatpush1.bf16.msra.mxu0 0
        %1731 = vmatprep.subr.bf16.mxu0 0
        %1732 = vmatpush1.bf16.msra.mxu0 0
        %1733 = vmatprep.subr.bf16.mxu0 0
        %1734 = vmatpush1.bf16.msra.mxu0 0
        %1735 = vmatprep.subr.bf16.mxu0 0
        %1736 = vmatpush1.bf16.msra.mxu0 0
        %1737 = vmatprep.subr.bf16.mxu0 0
        %1738 = vmatpush1.bf16.msra.mxu0 %v1395
        %1739 = vmatprep.subr.bf16.mxu0 0
        %1740 = vmatpush1.bf16.msra.mxu0 %v1394
        %1741 = vmatprep.subr.bf16.mxu0 0
        %1742 = vmatpush2.bf16.msra.mxu0 0
        %1743 = vmatprep.subr.bf16.mxu0 0
        %1744 = vmatpush2.bf16.msra.mxu0 0
        %1745 = vmatprep.subr.bf16.mxu0 0
        %1746 = vmatpush2.bf16.msra.mxu0 0
        %1747 = vmatprep.subr.bf16.mxu0 0
        %1748 = vmatpush2.bf16.msra.mxu0 0
        %1749 = vmatprep.subr.bf16.mxu0 0
        %1750 = vmatpush2.bf16.msra.mxu0 0
        %1751 = vmatprep.subr.bf16.mxu0 0
        %1752 = vmatpush2.bf16.msra.mxu0 0
        %1753 = vmatprep.subr.bf16.mxu0 0
        %1754 = vmatpush2.bf16.msra.mxu0 0
        %1755 = vmatprep.subr.bf16.mxu0 0
        %1756 = vmatpush2.bf16.msra.mxu0 0
        %1757 = vmatprep.mubr.bf16.mxu0 0
        %1758 = vmatmul.mubr.bf16.gmra.mxu0 %v1723
        %v1759 = vpop.f32.mrf.mxu0
        %v1760 = vadd.f32 0.0, %v1759
        %v1761 = vpop.f32.mrf.mxu0
        %v1762 = vpop.f32.mrf.mxu0
        %v1763 = vpop.f32.mrf.mxu0
        %1764 = vdwg.mxu0
        %v1765 = vadd.f32 %v1719, %v1760
        %v1766 = vxor.u32 %v1765, 2147483648
        %v1767 = vmul.f32 %v1766, 1.442695
        %v1768 = vpow.pop %v1767
        %v1769 = vadd.f32 %v1768, 1.0
        %v1770 = vrcp.pop %v1769
        %v1771 = vmul.f32 1.0, %v1770
        %v1772 = vtanh.pop %v1765
        %v1773 = vmul.f32 %v1771, %v1701
        %1775 = vrot.lane.b32.xlu0 %v1772, 32
        %v1776 = vpop.permute.xlu0 %1775
        %v1778 = vmul.f32 %v1771, %v1776
        %1780 = vrot.lane.b32.xlu0 %v1778, 32
        %v1781 = vpop.permute.xlu0 %1780
        %v1783 = vadd.f32 %v1773, %v1781
        %v1784 = vtanh.pop %v1783
        %1786 = vrot.lane.b32.xlu0 %v1784, 32
        %v1787 = vpop.permute.xlu0 %1786
        %v1789 = vmul.f32 %v1771, %v1787
        %v1790 = vpack.c.bf16 %v1789, %v1789
        %v1792 = vunpack.c.l.b16 %v1790
        %v1793 = vpack.c.b16 %v1792, %v1792
        %1794 = vrot.lane.b32.xlu0 %v1793, 64
        %v1795 = vpop.permute.xlu0 %1794
        %s1797 = scalar_lea.vmem %s353, 16
        %1798 = vst.msk [vmem:[%s1797] sm:$0xf] %vm618, %v1795
        %v1799 = vld [vmem:[%s952] sm:$0xf]
        %v1800 = vunpack.c.l.bf16 %v1799
        %v1801 = vadd.f32 %v1800, %v1232
        %1802 = vrot.lane.b32.xlu0 %v1790, 64
        %v1803 = vpop.permute.xlu0 %1802
        %v1805 = vsel %vm410, %v1803, 0
        %1807 = vmatprep.subr.bf16.mxu0 0
        %1808 = vmatpush1.bf16.msra.mxu0 0
        %1809 = vmatprep.subr.bf16.mxu0 0
        %1810 = vmatpush1.bf16.msra.mxu0 0
        %1811 = vmatprep.subr.bf16.mxu0 0
        %1812 = vmatpush1.bf16.msra.mxu0 0
        %1813 = vmatprep.subr.bf16.mxu0 0
        %1814 = vmatpush1.bf16.msra.mxu0 0
        %1815 = vmatprep.subr.bf16.mxu0 0
        %1816 = vmatpush1.bf16.msra.mxu0 0
        %1817 = vmatprep.subr.bf16.mxu0 0
        %1818 = vmatpush1.bf16.msra.mxu0 0
        %1819 = vmatprep.subr.bf16.mxu0 0
        %1820 = vmatpush1.bf16.msra.mxu0 %v1395
        %1821 = vmatprep.subr.bf16.mxu0 0
        %1822 = vmatpush1.bf16.msra.mxu0 %v1394
        %1823 = vmatprep.subr.bf16.mxu0 0
        %1824 = vmatpush2.bf16.msra.mxu0 0
        %1825 = vmatprep.subr.bf16.mxu0 0
        %1826 = vmatpush2.bf16.msra.mxu0 0
        %1827 = vmatprep.subr.bf16.mxu0 0
        %1828 = vmatpush2.bf16.msra.mxu0 0
        %1829 = vmatprep.subr.bf16.mxu0 0
        %1830 = vmatpush2.bf16.msra.mxu0 0
        %1831 = vmatprep.subr.bf16.mxu0 0
        %1832 = vmatpush2.bf16.msra.mxu0 0
        %1833 = vmatprep.subr.bf16.mxu0 0
        %1834 = vmatpush2.bf16.msra.mxu0 0
        %1835 = vmatprep.subr.bf16.mxu0 0
        %1836 = vmatpush2.bf16.msra.mxu0 0
        %1837 = vmatprep.subr.bf16.mxu0 0
        %1838 = vmatpush2.bf16.msra.mxu0 0
        %1839 = vmatprep.mubr.bf16.mxu0 0
        %1840 = vmatmul.mubr.bf16.gmra.mxu0 %v1805
        %v1841 = vpop.f32.mrf.mxu0
        %v1842 = vadd.f32 0.0, %v1841
        %v1843 = vpop.f32.mrf.mxu0
        %v1844 = vpop.f32.mrf.mxu0
        %v1845 = vpop.f32.mrf.mxu0
        %1846 = vdwg.mxu0
        %v1847 = vadd.f32 %v1801, %v1842
        %v1848 = vxor.u32 %v1847, 2147483648
        %v1849 = vmul.f32 %v1848, 1.442695
        %v1850 = vpow.pop %v1849
        %v1851 = vadd.f32 %v1850, 1.0
        %v1852 = vrcp.pop %v1851
        %v1853 = vmul.f32 1.0, %v1852
        %v1854 = vtanh.pop %v1847
        %v1855 = vmul.f32 %v1853, %v1783
        %1857 = vrot.lane.b32.xlu0 %v1854, 32
        %v1858 = vpop.permute.xlu0 %1857
        %v1860 = vmul.f32 %v1853, %v1858
        %1862 = vrot.lane.b32.xlu0 %v1860, 32
        %v1863 = vpop.permute.xlu0 %1862
        %v1865 = vadd.f32 %v1855, %v1863
        %v1866 = vtanh.pop %v1865
        %1868 = vrot.lane.b32.xlu0 %v1866, 32
        %v1869 = vpop.permute.xlu0 %1868
        %v1871 = vmul.f32 %v1853, %v1869
        %v1872 = vpack.c.bf16 %v1871, %v1871
        %v1874 = vunpack.c.l.b16 %v1872
        %v1875 = vpack.c.b16 %v1874, %v1874
        %1876 = vrot.lane.b32.xlu0 %v1875, 64
        %v1877 = vpop.permute.xlu0 %1876
        %s1879 = scalar_lea.vmem %s353, 20
        %1880 = vst.msk [vmem:[%s1879] sm:$0xf] %vm618, %v1877
        %v1881 = vld [vmem:[%s1035] sm:$0xf]
        %v1882 = vunpack.c.l.bf16 %v1881
        %v1883 = vadd.f32 %v1882, %v1232
        %1884 = vrot.lane.b32.xlu0 %v1872, 64
        %v1885 = vpop.permute.xlu0 %1884
        %v1887 = vsel %vm410, %v1885, 0
        %1889 = vmatprep.subr.bf16.mxu0 0
        %1890 = vmatpush1.bf16.msra.mxu0 0
        %1891 = vmatprep.subr.bf16.mxu0 0
        %1892 = vmatpush1.bf16.msra.mxu0 0
        %1893 = vmatprep.subr.bf16.mxu0 0
        %1894 = vmatpush1.bf16.msra.mxu0 0
        %1895 = vmatprep.subr.bf16.mxu0 0
        %1896 = vmatpush1.bf16.msra.mxu0 0
        %1897 = vmatprep.subr.bf16.mxu0 0
        %1898 = vmatpush1.bf16.msra.mxu0 0
        %1899 = vmatprep.subr.bf16.mxu0 0
        %1900 = vmatpush1.bf16.msra.mxu0 0
        %1901 = vmatprep.subr.bf16.mxu0 0
        %1902 = vmatpush1.bf16.msra.mxu0 %v1395
        %1903 = vmatprep.subr.bf16.mxu0 0
        %1904 = vmatpush1.bf16.msra.mxu0 %v1394
        %1905 = vmatprep.subr.bf16.mxu0 0
        %1906 = vmatpush2.bf16.msra.mxu0 0
        %1907 = vmatprep.subr.bf16.mxu0 0
        %1908 = vmatpush2.bf16.msra.mxu0 0
        %1909 = vmatprep.subr.bf16.mxu0 0
        %1910 = vmatpush2.bf16.msra.mxu0 0
        %1911 = vmatprep.subr.bf16.mxu0 0
        %1912 = vmatpush2.bf16.msra.mxu0 0
        %1913 = vmatprep.subr.bf16.mxu0 0
        %1914 = vmatpush2.bf16.msra.mxu0 0
        %1915 = vmatprep.subr.bf16.mxu0 0
        %1916 = vmatpush2.bf16.msra.mxu0 0
        %1917 = vmatprep.subr.bf16.mxu0 0
        %1918 = vmatpush2.bf16.msra.mxu0 0
        %1919 = vmatprep.subr.bf16.mxu0 0
        %1920 = vmatpush2.bf16.msra.mxu0 0
        %1921 = vmatprep.mubr.bf16.mxu0 0
        %1922 = vmatmul.mubr.bf16.gmra.mxu0 %v1887
        %v1923 = vpop.f32.mrf.mxu0
        %v1924 = vadd.f32 0.0, %v1923
        %v1925 = vpop.f32.mrf.mxu0
        %v1926 = vpop.f32.mrf.mxu0
        %v1927 = vpop.f32.mrf.mxu0
        %1928 = vdwg.mxu0
        %v1929 = vadd.f32 %v1883, %v1924
        %v1930 = vxor.u32 %v1929, 2147483648
        %v1931 = vmul.f32 %v1930, 1.442695
        %v1932 = vpow.pop %v1931
        %v1933 = vadd.f32 %v1932, 1.0
        %v1934 = vrcp.pop %v1933
        %v1935 = vmul.f32 1.0, %v1934
        %v1936 = vtanh.pop %v1929
        %v1937 = vmul.f32 %v1935, %v1865
        %1939 = vrot.lane.b32.xlu0 %v1936, 32
        %v1940 = vpop.permute.xlu0 %1939
        %v1942 = vmul.f32 %v1935, %v1940
        %1944 = vrot.lane.b32.xlu0 %v1942, 32
        %v1945 = vpop.permute.xlu0 %1944
        %v1947 = vadd.f32 %v1937, %v1945
        %v1948 = vtanh.pop %v1947
        %1950 = vrot.lane.b32.xlu0 %v1948, 32
        %v1951 = vpop.permute.xlu0 %1950
        %v1953 = vmul.f32 %v1935, %v1951
        %v1954 = vpack.c.bf16 %v1953, %v1953
        %v1956 = vunpack.c.l.b16 %v1954
        %v1957 = vpack.c.b16 %v1956, %v1956
        %1958 = vrot.lane.b32.xlu0 %v1957, 64
        %v1959 = vpop.permute.xlu0 %1958
        %s1961 = scalar_lea.vmem %s353, 24
        %1962 = vst.msk [vmem:[%s1961] sm:$0xf] %vm618, %v1959
        %v1963 = vld [vmem:[%s1118] sm:$0xf]
        %v1964 = vunpack.c.l.bf16 %v1963
        %v1965 = vadd.f32 %v1964, %v1232
        %1966 = vrot.lane.b32.xlu0 %v1954, 64
        %v1967 = vpop.permute.xlu0 %1966
        %v1969 = vsel %vm410, %v1967, 0
        %1971 = vmatprep.subr.bf16.mxu0 0
        %1972 = vmatpush1.bf16.msra.mxu0 0
        %1973 = vmatprep.subr.bf16.mxu0 0
        %1974 = vmatpush1.bf16.msra.mxu0 0
        %1975 = vmatprep.subr.bf16.mxu0 0
        %1976 = vmatpush1.bf16.msra.mxu0 0
        %1977 = vmatprep.subr.bf16.mxu0 0
        %1978 = vmatpush1.bf16.msra.mxu0 0
        %1979 = vmatprep.subr.bf16.mxu0 0
        %1980 = vmatpush1.bf16.msra.mxu0 0
        %1981 = vmatprep.subr.bf16.mxu0 0
        %1982 = vmatpush1.bf16.msra.mxu0 0
        %1983 = vmatprep.subr.bf16.mxu0 0
        %1984 = vmatpush1.bf16.msra.mxu0 %v1395
        %1985 = vmatprep.subr.bf16.mxu0 0
        %1986 = vmatpush1.bf16.msra.mxu0 %v1394
        %1987 = vmatprep.subr.bf16.mxu0 0
        %1988 = vmatpush2.bf16.msra.mxu0 0
        %1989 = vmatprep.subr.bf16.mxu0 0
        %1990 = vmatpush2.bf16.msra.mxu0 0
        %1991 = vmatprep.subr.bf16.mxu0 0
        %1992 = vmatpush2.bf16.msra.mxu0 0
        %1993 = vmatprep.subr.bf16.mxu0 0
        %1994 = vmatpush2.bf16.msra.mxu0 0
        %1995 = vmatprep.subr.bf16.mxu0 0
        %1996 = vmatpush2.bf16.msra.mxu0 0
        %1997 = vmatprep.subr.bf16.mxu0 0
        %1998 = vmatpush2.bf16.msra.mxu0 0
        %1999 = vmatprep.subr.bf16.mxu0 0
        %2000 = vmatpush2.bf16.msra.mxu0 0
        %2001 = vmatprep.subr.bf16.mxu0 0
        %2002 = vmatpush2.bf16.msra.mxu0 0
        %2003 = vmatprep.mubr.bf16.mxu0 0
        %2004 = vmatmul.mubr.bf16.gmra.mxu0 %v1969
        %v2005 = vpop.f32.mrf.mxu0
        %v2006 = vadd.f32 0.0, %v2005
        %v2007 = vpop.f32.mrf.mxu0
        %v2008 = vpop.f32.mrf.mxu0
        %v2009 = vpop.f32.mrf.mxu0
        %2010 = vdwg.mxu0
        %v2011 = vadd.f32 %v1965, %v2006
        %v2012 = vxor.u32 %v2011, 2147483648
        %v2013 = vmul.f32 %v2012, 1.442695
        %v2014 = vpow.pop %v2013
        %v2015 = vadd.f32 %v2014, 1.0
        %v2016 = vrcp.pop %v2015
        %v2017 = vmul.f32 1.0, %v2016
        %v2018 = vtanh.pop %v2011
        %v2019 = vmul.f32 %v2017, %v1947
        %2021 = vrot.lane.b32.xlu0 %v2018, 32
        %v2022 = vpop.permute.xlu0 %2021
        %v2024 = vmul.f32 %v2017, %v2022
        %2026 = vrot.lane.b32.xlu0 %v2024, 32
        %v2027 = vpop.permute.xlu0 %2026
        %v2029 = vadd.f32 %v2019, %v2027
        %v2030 = vtanh.pop %v2029
        %2032 = vrot.lane.b32.xlu0 %v2030, 32
        %v2033 = vpop.permute.xlu0 %2032
        %v2035 = vmul.f32 %v2017, %v2033
        %v2036 = vpack.c.bf16 %v2035, %v2035
        %v2038 = vunpack.c.l.b16 %v2036
        %v2039 = vpack.c.b16 %v2038, %v2038
        %2040 = vrot.lane.b32.xlu0 %v2039, 64
        %v2041 = vpop.permute.xlu0 %2040
        %s2043 = scalar_lea.vmem %s353, 28
        %2044 = vst.msk [vmem:[%s2043] sm:$0xf] %vm618, %v2041
        %2046 = vrot.lane.b32.xlu0 %v2035, 64
        %v2047 = vpop.permute.xlu0 %2046
        %s2049 = scalar_lea.vmem %s336, 8 [#allocation4]
        %2050 = vst.msk [vmem:[%s2049] sm:$0xff] %vm410, %v2047
        %2052 = vrot.lane.b32.xlu0 %v2029, 96
        %v2053 = vpop.permute.xlu0 %2052
        %s2055 = scalar_lea.vmem %s343, 8 [#allocation6]
        %2056 = vst.msk [vmem:[%s2055] sm:$0xff] %vm410, %v2053
        %p2057 = scmp.lt.s32.totalorder %s27, 1
        %s2058 = scalar_select %p2057, %s27, 1
        %s2059 = smul.addr %s2058, 8
        %s2060 = smul.addr %s2059, 4
        %s2061 = scalar_lea.vmem %s7, %s2060
        %s2062 = sand.u32 %s213, 1
        %s2063 = scalar_lea.sflag [#allocation5], %s2062
        %s2064 = sand.u32 %s213, 1
        %s2065 = smul.addr %s2064, 16
        %s2066 = scalar_lea.vmem [#allocation4], %s2065
        %s2067 = sand.u32 %s239, 1
        %s2068 = scalar_lea.sflag [#allocation7], %s2067
        %s2069 = sand.u32 %s239, 1
        %s2070 = smul.addr %s2069, 16
        %s2071 = scalar_lea.vmem [#allocation6], %s2070
        // Predicated region
        $region49: #{encoder_forward.2} parent=47 // pred_check
          %p2072 = pneg %p197
        $region50: #{encoder_forward.2} parent=47 // pred_check_branch
          %2074 = sbr.rel (%p2072) target = $region52
        $region51: #{encoder_forward.2} parent=47 // pred_region
          _
        $region52: #{encoder_forward.2} parent=47 // pred_fallthru
          _
        // Predicated region
        $region53: #{encoder_forward.2} parent=47 // pred_check
          %p2075 = pneg %p223
        $region54: #{encoder_forward.2} parent=47 // pred_check_branch
          %2077 = sbr.rel (%p2075) target = $region56
        $region55: #{encoder_forward.2} parent=47 // pred_region
          %s2079 = ssub.s32 256, 256
          %2080 = vsyncadd %s2063, %s2079
          %s2081 = smul.addr %s27, 128
          %s2082 = scalar_lea.hbm %s8, %s2081
          %s2083 = sshll.u32 %s2066, 4
          %s2084 = int_to_ptr.vmem [resolvable:$true] %s2083
          %2089 = dma.vmem_to_hbm [thread:$0]  %s2084, 256, %s2082, %s2063, 128, 256, 8
        $region56: #{encoder_forward.2} parent=47 // pred_fallthru
          _
        // Predicated region
        $region57: #{encoder_forward.2} parent=47 // pred_check
          %p2090 = pneg %p249
        $region58: #{encoder_forward.2} parent=47 // pred_check_branch
          %2092 = sbr.rel (%p2090) target = $region60
        $region59: #{encoder_forward.2} parent=47 // pred_region
          %s2094 = ssub.s32 256, 256
          %2095 = vsyncadd %s2068, %s2094
          %s2096 = smul.addr %s27, 128
          %s2097 = scalar_lea.hbm %s9, %s2096
          %s2098 = sshll.u32 %s2071, 4
          %s2099 = int_to_ptr.vmem [resolvable:$true] %s2098
          %2104 = dma.vmem_to_hbm [thread:$0]  %s2099, 256, %s2097, %s2068, 128, 256, 8
        $region60: #{encoder_forward.2} parent=47 // pred_fallthru
          _
      $region48: #{encoder_forward.2} parent=5 // pred_fallthru
        _
      %p2105 = scmp.le.s32.totalorder 2, %s22
      // Predicated region
      $region61: #{encoder_forward.2} parent=5 // pred_check
        %p2106 = pneg %p2105
      $region62: #{encoder_forward.2} parent=5 // pred_check_branch
        %2108 = sbr.rel (%p2106) target = $region64
      $region63: #{encoder_forward.2} parent=5 // pred_region
        %s2109 = ssub.s32 %s22, 2
        // Predicated region
        $region65: #{encoder_forward.2} parent=63 // pred_check
          %p2110 = pneg %p203
        $region66: #{encoder_forward.2} parent=63 // pred_check_branch
          %2112 = sbr.rel (%p2110) target = $region68
        $region67: #{encoder_forward.2} parent=63 // pred_region
          %p2113 = scmp.lt.s32.totalorder %s28, 1
          %s2114 = scalar_select %p2113, %s28, 1
          %s2115 = smul.addr %s2114, 8
          %s2116 = smul.addr %s2115, 4
          %s2117 = scalar_lea.vmem %s7, %s2116
        $region68: #{encoder_forward.2} parent=63 // pred_fallthru
          _
        // Predicated region
        $region69: #{encoder_forward.2} parent=63 // pred_check
          %p2118 = pneg %p229
        $region70: #{encoder_forward.2} parent=63 // pred_check_branch
          %2120 = sbr.rel (%p2118) target = $region72
        $region71: #{encoder_forward.2} parent=63 // pred_region
          %s2121 = sand.u32 %s214, 1
          %s2122 = scalar_lea.sflag [#allocation5], %s2121
          %s2123 = sand.u32 %s214, 1
          %s2124 = smul.addr %s2123, 16
          %s2125 = scalar_lea.vmem [#allocation4], %s2124
          %2126 = dma.done %s2122, 256
        $region72: #{encoder_forward.2} parent=63 // pred_fallthru
          _
        // Predicated region
        $region73: #{encoder_forward.2} parent=63 // pred_check
          %p2127 = pneg %p255
        $region74: #{encoder_forward.2} parent=63 // pred_check_branch
          %2129 = sbr.rel (%p2127) target = $region76
        $region75: #{encoder_forward.2} parent=63 // pred_region
          %s2130 = sand.u32 %s240, 1
          %s2131 = scalar_lea.sflag [#allocation7], %s2130
          %s2132 = sand.u32 %s240, 1
          %s2133 = smul.addr %s2132, 16
          %s2134 = scalar_lea.vmem [#allocation6], %s2133
          %2135 = dma.done %s2131, 256
        $region76: #{encoder_forward.2} parent=63 // pred_fallthru
          _
      $region64: #{encoder_forward.2} parent=5 // pred_fallthru
        _
    $region6: #{encoder_forward.2} parent=1 // loop_footer
      %s26 = sadd.s32 1, %s22
    $region7: #{encoder_forward.2} parent=1 // loop_footer_branch
      %21 = sbr.rel target = $region3
    $region8: #{encoder_forward.2} parent=1 // loop_exit
      _
    %2136 = vsyncpa [#allocation5], 1
    %s2137 = scalar_lea.sflag [#allocation5], 1
    %2138 = vsyncpa %s2137, 1
    %2139 = vsyncpa [#allocation7], 1
    %s2140 = scalar_lea.sflag [#allocation7], 1
    %2141 = vsyncpa %s2140, 1

</llo_original>
